<compile_context>
chip_gen: v7x
topology: tpu7x:2x2x1
jax: 0.10.0
libtpu: 0.0.40
codegen_flags: <defaults>
</compile_context>

<pallas_src>
import functools

import jax
import jax.numpy as jnp
from jax.experimental import pallas as pl
from jax.experimental.pallas import tpu as pltpu

_NUM_CLASSES = 13
_OUT_PAD = 128      # lane-dense padded width of the final linear
_ROW_TILE = 256     # row tile for the MLP head grid


# ------------------------- fused bidirectional RNN -------------------------

def _birnn_layer_kernel(x_ref, wih_ref, b_ref, whhf_ref, whhb_ref, out_ref,
                        *, seq_len, batch):
    """One bidirectional Elman-RNN layer (tanh), both directions fused.

    x_ref:   (T*B, D_in)   time-major, flattened
    wih_ref: (D_in, 2H)    [W_ih_fwd | W_ih_bwd]
    b_ref:   (1, 2H)       [b_fwd | b_bwd]  (= b_ih + b_hh per direction)
    whhf/whhb: (H, H)
    out_ref: (T*B, 2H)     out[t*B:(t+1)*B, :H] = fwd_t, [..., H:] = bwd_t
    """
    H = whhf_ref.shape[0]

    # Hoisted input projection for every timestep and both directions:
    # a single (T*B, D_in) @ (D_in, 2H) MXU matmul off the serial path.
    proj = (jnp.dot(x_ref[...], wih_ref[...],
                    preferred_element_type=jnp.float32)
            + b_ref[...])                                   # (T*B, 2H)

    whh_f = whhf_ref[...]
    whh_b = whhb_ref[...]
    h_f = jnp.zeros((batch, H), jnp.float32)
    h_b = jnp.zeros((batch, H), jnp.float32)

    # Fully unrolled static recurrence (T is small & static): only the tiny
    # h @ W_hh matmul + tanh sit on the serialized chain.  The backward
    # direction is handled by reversed (static) indices — no host-side reverse.
    for t in range(seq_len):
        rt = seq_len - 1 - t
        h_f = jnp.tanh(proj[t * batch:(t + 1) * batch, :H]
                       + jnp.dot(h_f, whh_f,
                                 preferred_element_type=jnp.float32))
        h_b = jnp.tanh(proj[rt * batch:(rt + 1) * batch, H:]
                       + jnp.dot(h_b, whh_b,
                                 preferred_element_type=jnp.float32))
        out_ref[t * batch:(t + 1) * batch, :H] = h_f
        out_ref[rt * batch:(rt + 1) * batch, H:] = h_b


def birnn_layer(x2d, w_ih, b, w_hh_f, w_hh_b, seq_len, batch):
    """x2d: (T*B, D_in) -> (T*B, 2H), time-major flattened."""
    H = w_hh_f.shape[0]
    kernel = functools.partial(_birnn_layer_kernel,
                               seq_len=seq_len, batch=batch)
    # TODO(synk): for long sequences add a T-chunk "arbitrary" grid axis with h
    # carried in VMEM scratch so the kernel stays within v7x's 64 MiB VMEM.
    return pl.pallas_call(
        kernel,
        out_shape=jax.ShapeDtypeStruct((seq_len * batch, 2 * H), jnp.float32),
    )(x2d, w_ih, b, w_hh_f, w_hh_b)


# -------------------------------- MLP head ----------------------------------

def _mlp_kernel(x_ref, w1_ref, b1_ref, w2_ref, b2_ref, w3_ref, b3_ref, out_ref):
    h1 = jnp.maximum(
        jnp.dot(x_ref[...], w1_ref[...], preferred_element_type=jnp.float32)
        + b1_ref[...], 0.0)
    h2 = jnp.maximum(
        jnp.dot(h1, w2_ref[...], preferred_element_type=jnp.float32)
        + b2_ref[...], 0.0)
    out_ref[...] = (jnp.dot(h2, w3_ref[...], preferred_element_type=jnp.float32)
                    + b3_ref[...])


def mlp_head(x, w1, b1, w2, b2, w3p, b3p):
    """x: (N, 2H) -> (N, _OUT_PAD); w3p/b3p are lane-dense (128-wide) padded."""
    N, F = x.shape
    if N <= _ROW_TILE:
        row_tile, xp = N, x          # single tile == full dims (always legal)
    else:
        row_tile = _ROW_TILE
        pad = (-N) % row_tile
        xp = jnp.pad(x, ((0, pad), (0, 0))) if pad else x
    Np = xp.shape[0]
    n_out = w3p.shape[1]

    out = pl.pallas_call(
        _mlp_kernel,
        out_shape=jax.ShapeDtypeStruct((Np, n_out), jnp.float32),
        grid=(Np // row_tile,),
        in_specs=[
            pl.BlockSpec((row_tile, F), lambda i: (i, 0)),
            pl.BlockSpec(w1.shape, lambda i: (0, 0)),
            pl.BlockSpec(b1.shape, lambda i: (0, 0)),
            pl.BlockSpec(w2.shape, lambda i: (0, 0)),
            pl.BlockSpec(b2.shape, lambda i: (0, 0)),
            pl.BlockSpec(w3p.shape, lambda i: (0, 0)),
            pl.BlockSpec(b3p.shape, lambda i: (0, 0)),
        ],
        out_specs=pl.BlockSpec((row_tile, n_out), lambda i: (i, 0)),
        compiler_params=pltpu.CompilerParams(
            dimension_semantics=("parallel",)),
    )(xp, w1, b1, w2, b2, w3p, b3p)
    return out[:N]


# ----------------------------- parameter init -------------------------------

def init_params(key, vocab_size, dim_emb, num_layers, hidden):
    keys = iter(jax.random.split(key, 1 + 8 * num_layers + 6))

    def u(k, shape, scale):
        return jax.random.uniform(k, shape, jnp.float32, -scale, scale)

    emb = jax.random.normal(next(keys), (vocab_size, dim_emb), jnp.float32)
    emb = emb.at[0].set(0.0)  # padding_idx=0 row is zero in nn.Embedding

    s = hidden ** -0.5
    rnn = []
    d_in = dim_emb
    for _ in range(num_layers):
        w_ih_f = u(next(keys), (d_in, hidden), s)
        w_ih_b = u(next(keys), (d_in, hidden), s)
        w_hh_f = u(next(keys), (hidden, hidden), s)
        w_hh_b = u(next(keys), (hidden, hidden), s)
        b_f = u(next(keys), (1, hidden), s) + u(next(keys), (1, hidden), s)
        b_b = u(next(keys), (1, hidden), s) + u(next(keys), (1, hidden), s)
        rnn.append(dict(
            w_ih=jnp.concatenate([w_ih_f, w_ih_b], axis=1),   # (d_in, 2H)
            b=jnp.concatenate([b_f, b_b], axis=1),             # (1, 2H)
            w_hh_f=w_hh_f, w_hh_b=w_hh_b))
        d_in = 2 * hidden

    def linear(d_i, d_o):
        sc = d_i ** -0.5
        return u(next(keys), (d_i, d_o), sc), u(next(keys), (1, d_o), sc)

    w1, b1 = linear(2 * hidden, 512)
    w2, b2 = linear(512, 256)
    w3, b3 = linear(256, _NUM_CLASSES)
    return dict(embedding=emb, rnn=rnn, w1=w1, b1=b1, w2=w2, b2=b2, w3=w3, b3=b3)


# -------------------------------- forward -----------------------------------

@jax.jit
def ner_forward(params, tokens):
    """tokens: (B, T) int32 -> logits (B, T, 13), batch-first like PyTorch."""
    B, T = tokens.shape
    # Gather in time-major order so no activation transpose is needed later.
    emb = params["embedding"][tokens.T]                 # (T, B, E)
    x = emb.reshape(T * B, emb.shape[-1])               # contiguous -> free

    for layer in params["rnn"]:
        x = birnn_layer(x, layer["w_ih"], layer["b"],
                        layer["w_hh_f"], layer["w_hh_b"], T, B)

    # Lane-dense (128-wide) padded final linear; slice back to 13 afterwards.
    w3p = jnp.pad(params["w3"],
                  ((0, 0), (0, _OUT_PAD - params["w3"].shape[1])))
    b3p = jnp.pad(params["b3"],
                  ((0, 0), (0, _OUT_PAD - params["b3"].shape[1])))
    out = mlp_head(x, params["w1"], params["b1"],
                   params["w2"], params["b2"], w3p, b3p)
    logits = out[:, :_NUM_CLASSES].reshape(T, B, _NUM_CLASSES)
    return jnp.transpose(logits, (1, 0, 2))             # (B, T, 13)


# --------------------------- pure-JAX reference ------------------------------

def _rnn_dir_ref(x_tbd, w_ih, w_hh, b):
    def step(h, x_t):
        h_new = jnp.tanh(x_t @ w_ih + h @ w_hh + b)
        return h_new, h_new
    h0 = jnp.zeros((x_tbd.shape[1], w_hh.shape[0]), jnp.float32)
    _, ys = jax.lax.scan(step, h0, x_tbd)
    return ys


def ner_forward_ref(params, tokens):
    emb = params["embedding"][tokens]                   # (B, T, E)
    x = jnp.transpose(emb, (1, 0, 2))                   # (T, B, E)
    for layer in params["rnn"]:
        H = layer["w_hh_f"].shape[0]
        wf, wb = layer["w_ih"][:, :H], layer["w_ih"][:, H:]
        bf, bb = layer["b"][:, :H], layer["b"][:, H:]
        fwd = _rnn_dir_ref(x, wf, layer["w_hh_f"], bf)
        bwd = _rnn_dir_ref(x[::-1], wb, layer["w_hh_b"], bb)[::-1]
        x = jnp.concatenate([fwd, bwd], axis=-1)
    T, B, F = x.shape
    flat = x.reshape(T * B, F)
    h1 = jnp.maximum(flat @ params["w1"] + params["b1"], 0.0)
    h2 = jnp.maximum(h1 @ params["w2"] + params["b2"], 0.0)
    out = h2 @ params["w3"] + params["b3"]
    return jnp.transpose(out.reshape(T, B, _NUM_CLASSES), (1, 0, 2))


# ----------------------------------- main ------------------------------------

if __name__ == "__main__":
    TOKEN_VOCAB = 64
    DIM_EMB = 32
    NUM_LAYERS = 2
    HIDDEN = 32
    B, T = 2, 8

    key = jax.random.PRNGKey(0)
    pkey, tkey = jax.random.split(key)
    params = init_params(pkey, TOKEN_VOCAB, DIM_EMB, NUM_LAYERS, HIDDEN)
    tokens = jax.random.randint(tkey, (B, T), 0, TOKEN_VOCAB, dtype=jnp.int32)

    out = jax.block_until_ready(ner_forward(params, tokens))
    assert out.shape == (B, T, _NUM_CLASSES), out.shape

    ref = jax.block_until_ready(ner_forward_ref(params, tokens))
    if not jnp.allclose(out, ref, rtol=2e-2, atol=2e-2):
        raise AssertionError("Pallas output diverges from JAX reference")

    print("KERNEL_OK")
</pallas_src>

<mosaic_0001>
module attributes {stable_mosaic.version = 11 : i64} {
  func.func @_birnn_layer_kernel(%arg0: memref<16x64xf32, #tpu.memory_space<vmem>>, %arg1: memref<64x64xf32, #tpu.memory_space<vmem>>, %arg2: memref<1x64xf32, #tpu.memory_space<vmem>>, %arg3: memref<32x32xf32, #tpu.memory_space<vmem>>, %arg4: memref<32x32xf32, #tpu.memory_space<vmem>>, %arg5: memref<16x64xf32, #tpu.memory_space<vmem>>) attributes {dimension_semantics = [], scalar_prefetch = 0 : i64, scratch_operands = 0 : i64, tpu.core_type = #tpu.core_type<tc>} {
    %c0 = arith.constant 0 : index
    %c0_0 = arith.constant 0 : index
    %0 = vector.load %arg0[%c0, %c0_0] : memref<16x64xf32, #tpu.memory_space<vmem>>, vector<16x64xf32>
    %c0_1 = arith.constant 0 : index
    %c0_2 = arith.constant 0 : index
    %1 = vector.load %arg1[%c0_1, %c0_2] : memref<64x64xf32, #tpu.memory_space<vmem>>, vector<64x64xf32>
    %cst = arith.constant dense<0.000000e+00> : vector<16x64xf32>
    %2 = tpu.matmul %0, %1, %cst {dimension_numbers = #tpu.dot_dimension_numbers<[1], [0], [0], [1], [0, 0, 1, 1], [], []>} : vector<16x64xf32>, vector<64x64xf32>, vector<16x64xf32> -> vector<16x64xf32>
    %c0_3 = arith.constant 0 : index
    %c0_4 = arith.constant 0 : index
    %3 = vector.load %arg2[%c0_3, %c0_4] : memref<1x64xf32, #tpu.memory_space<vmem>>, vector<1x64xf32>
    %4 = vector.broadcast %3 : vector<1x64xf32> to vector<16x64xf32>
    %5 = arith.addf %2, %4 : vector<16x64xf32>
    %c0_5 = arith.constant 0 : index
    %c0_6 = arith.constant 0 : index
    %6 = vector.load %arg3[%c0_5, %c0_6] : memref<32x32xf32, #tpu.memory_space<vmem>>, vector<32x32xf32>
    %c0_7 = arith.constant 0 : index
    %c0_8 = arith.constant 0 : index
    %7 = vector.load %arg4[%c0_7, %c0_8] : memref<32x32xf32, #tpu.memory_space<vmem>>, vector<32x32xf32>
    %cst_9 = arith.constant 0.000000e+00 : f32
    %8 = vector.broadcast %cst_9 : f32 to vector<2x32xf32>
    %cst_10 = arith.constant 0.000000e+00 : f32
    %9 = vector.broadcast %cst_10 : f32 to vector<2x32xf32>
    %10 = vector.extract_strided_slice %5 {offsets = [0, 0], sizes = [2, 32], strides = [1, 1]} : vector<16x64xf32> to vector<2x32xf32>
    %cst_11 = arith.constant dense<0.000000e+00> : vector<2x32xf32>
    %11 = tpu.matmul %8, %6, %cst_11 {dimension_numbers = #tpu.dot_dimension_numbers<[1], [0], [0], [1], [0, 0, 1, 1], [], []>} : vector<2x32xf32>, vector<32x32xf32>, vector<2x32xf32> -> vector<2x32xf32>
    %12 = arith.addf %10, %11 : vector<2x32xf32>
    %13 = math.tanh %12 : vector<2x32xf32>
    %14 = vector.extract_strided_slice %5 {offsets = [14, 32], sizes = [2, 32], strides = [1, 1]} : vector<16x64xf32> to vector<2x32xf32>
    %cst_12 = arith.constant dense<0.000000e+00> : vector<2x32xf32>
    %15 = tpu.matmul %9, %7, %cst_12 {dimension_numbers = #tpu.dot_dimension_numbers<[1], [0], [0], [1], [0, 0, 1, 1], [], []>} : vector<2x32xf32>, vector<32x32xf32>, vector<2x32xf32> -> vector<2x32xf32>
    %16 = arith.addf %14, %15 : vector<2x32xf32>
    %17 = math.tanh %16 : vector<2x32xf32>
    %c0_13 = arith.constant 0 : index
    %c0_14 = arith.constant 0 : index
    %18 = vector.load %arg5[%c0_13, %c0_14] : memref<16x64xf32, #tpu.memory_space<vmem>>, vector<2x32xf32>
    tpu.vector_store %arg5[%c0_13, %c0_14], %13 {strides = array<i32>} : memref<16x64xf32, #tpu.memory_space<vmem>>, vector<2x32xf32>,
    %c14 = arith.constant 14 : index
    %c32 = arith.constant 32 : index
    %19 = vector.load %arg5[%c14, %c32] : memref<16x64xf32, #tpu.memory_space<vmem>>, vector<2x32xf32>
    tpu.vector_store %arg5[%c14, %c32], %17 {strides = array<i32>} : memref<16x64xf32, #tpu.memory_space<vmem>>, vector<2x32xf32>,
    %20 = vector.extract_strided_slice %5 {offsets = [2, 0], sizes = [2, 32], strides = [1, 1]} : vector<16x64xf32> to vector<2x32xf32>
    %cst_15 = arith.constant dense<0.000000e+00> : vector<2x32xf32>
    %21 = tpu.matmul %13, %6, %cst_15 {dimension_numbers = #tpu.dot_dimension_numbers<[1], [0], [0], [1], [0, 0, 1, 1], [], []>} : vector<2x32xf32>, vector<32x32xf32>, vector<2x32xf32> -> vector<2x32xf32>
    %22 = arith.addf %20, %21 : vector<2x32xf32>
    %23 = math.tanh %22 : vector<2x32xf32>
    %24 = vector.extract_strided_slice %5 {offsets = [12, 32], sizes = [2, 32], strides = [1, 1]} : vector<16x64xf32> to vector<2x32xf32>
    %cst_16 = arith.constant dense<0.000000e+00> : vector<2x32xf32>
    %25 = tpu.matmul %17, %7, %cst_16 {dimension_numbers = #tpu.dot_dimension_numbers<[1], [0], [0], [1], [0, 0, 1, 1], [], []>} : vector<2x32xf32>, vector<32x32xf32>, vector<2x32xf32> -> vector<2x32xf32>
    %26 = arith.addf %24, %25 : vector<2x32xf32>
    %27 = math.tanh %26 : vector<2x32xf32>
    %c2 = arith.constant 2 : index
    %c0_17 = arith.constant 0 : index
    %28 = vector.load %arg5[%c2, %c0_17] : memref<16x64xf32, #tpu.memory_space<vmem>>, vector<2x32xf32>
    tpu.vector_store %arg5[%c2, %c0_17], %23 {strides = array<i32>} : memref<16x64xf32, #tpu.memory_space<vmem>>, vector<2x32xf32>,
    %c12 = arith.constant 12 : index
    %c32_18 = arith.constant 32 : index
    %29 = vector.load %arg5[%c12, %c32_18] : memref<16x64xf32, #tpu.memory_space<vmem>>, vector<2x32xf32>
    tpu.vector_store %arg5[%c12, %c32_18], %27 {strides = array<i32>} : memref<16x64xf32, #tpu.memory_space<vmem>>, vector<2x32xf32>,
    %30 = vector.extract_strided_slice %5 {offsets = [4, 0], sizes = [2, 32], strides = [1, 1]} : vector<16x64xf32> to vector<2x32xf32>
    %cst_19 = arith.constant dense<0.000000e+00> : vector<2x32xf32>
    %31 = tpu.matmul %23, %6, %cst_19 {dimension_numbers = #tpu.dot_dimension_numbers<[1], [0], [0], [1], [0, 0, 1, 1], [], []>} : vector<2x32xf32>, vector<32x32xf32>, vector<2x32xf32> -> vector<2x32xf32>
    %32 = arith.addf %30, %31 : vector<2x32xf32>
    %33 = math.tanh %32 : vector<2x32xf32>
    %34 = vector.extract_strided_slice %5 {offsets = [10, 32], sizes = [2, 32], strides = [1, 1]} : vector<16x64xf32> to vector<2x32xf32>
    %cst_20 = arith.constant dense<0.000000e+00> : vector<2x32xf32>
    %35 = tpu.matmul %27, %7, %cst_20 {dimension_numbers = #tpu.dot_dimension_numbers<[1], [0], [0], [1], [0, 0, 1, 1], [], []>} : vector<2x32xf32>, vector<32x32xf32>, vector<2x32xf32> -> vector<2x32xf32>
    %36 = arith.addf %34, %35 : vector<2x32xf32>
    %37 = math.tanh %36 : vector<2x32xf32>
    %c4 = arith.constant 4 : index
    %c0_21 = arith.constant 0 : index
    %38 = vector.load %arg5[%c4, %c0_21] : memref<16x64xf32, #tpu.memory_space<vmem>>, vector<2x32xf32>
    tpu.vector_store %arg5[%c4, %c0_21], %33 {strides = array<i32>} : memref<16x64xf32, #tpu.memory_space<vmem>>, vector<2x32xf32>,
    %c10 = arith.constant 10 : index
    %c32_22 = arith.constant 32 : index
    %39 = vector.load %arg5[%c10, %c32_22] : memref<16x64xf32, #tpu.memory_space<vmem>>, vector<2x32xf32>
    tpu.vector_store %arg5[%c10, %c32_22], %37 {strides = array<i32>} : memref<16x64xf32, #tpu.memory_space<vmem>>, vector<2x32xf32>,
    %40 = vector.extract_strided_slice %5 {offsets = [6, 0], sizes = [2, 32], strides = [1, 1]} : vector<16x64xf32> to vector<2x32xf32>
    %cst_23 = arith.constant dense<0.000000e+00> : vector<2x32xf32>
    %41 = tpu.matmul %33, %6, %cst_23 {dimension_numbers = #tpu.dot_dimension_numbers<[1], [0], [0], [1], [0, 0, 1, 1], [], []>} : vector<2x32xf32>, vector<32x32xf32>, vector<2x32xf32> -> vector<2x32xf32>
    %42 = arith.addf %40, %41 : vector<2x32xf32>
    %43 = math.tanh %42 : vector<2x32xf32>
    %44 = vector.extract_strided_slice %5 {offsets = [8, 32], sizes = [2, 32], strides = [1, 1]} : vector<16x64xf32> to vector<2x32xf32>
    %cst_24 = arith.constant dense<0.000000e+00> : vector<2x32xf32>
    %45 = tpu.matmul %37, %7, %cst_24 {dimension_numbers = #tpu.dot_dimension_numbers<[1], [0], [0], [1], [0, 0, 1, 1], [], []>} : vector<2x32xf32>, vector<32x32xf32>, vector<2x32xf32> -> vector<2x32xf32>
    %46 = arith.addf %44, %45 : vector<2x32xf32>
    %47 = math.tanh %46 : vector<2x32xf32>
    %c6 = arith.constant 6 : index
    %c0_25 = arith.constant 0 : index
    %48 = vector.load %arg5[%c6, %c0_25] : memref<16x64xf32, #tpu.memory_space<vmem>>, vector<2x32xf32>
    tpu.vector_store %arg5[%c6, %c0_25], %43 {strides = array<i32>} : memref<16x64xf32, #tpu.memory_space<vmem>>, vector<2x32xf32>,
    %c8 = arith.constant 8 : index
    %c32_26 = arith.constant 32 : index
    %49 = vector.load %arg5[%c8, %c32_26] : memref<16x64xf32, #tpu.memory_space<vmem>>, vector<2x32xf32>
    tpu.vector_store %arg5[%c8, %c32_26], %47 {strides = array<i32>} : memref<16x64xf32, #tpu.memory_space<vmem>>, vector<2x32xf32>,
    %50 = vector.extract_strided_slice %5 {offsets = [8, 0], sizes = [2, 32], strides = [1, 1]} : vector<16x64xf32> to vector<2x32xf32>
    %cst_27 = arith.constant dense<0.000000e+00> : vector<2x32xf32>
    %51 = tpu.matmul %43, %6, %cst_27 {dimension_numbers = #tpu.dot_dimension_numbers<[1], [0], [0], [1], [0, 0, 1, 1], [], []>} : vector<2x32xf32>, vector<32x32xf32>, vector<2x32xf32> -> vector<2x32xf32>
    %52 = arith.addf %50, %51 : vector<2x32xf32>
    %53 = math.tanh %52 : vector<2x32xf32>
    %54 = vector.extract_strided_slice %5 {offsets = [6, 32], sizes = [2, 32], strides = [1, 1]} : vector<16x64xf32> to vector<2x32xf32>
    %cst_28 = arith.constant dense<0.000000e+00> : vector<2x32xf32>
    %55 = tpu.matmul %47, %7, %cst_28 {dimension_numbers = #tpu.dot_dimension_numbers<[1], [0], [0], [1], [0, 0, 1, 1], [], []>} : vector<2x32xf32>, vector<32x32xf32>, vector<2x32xf32> -> vector<2x32xf32>
    %56 = arith.addf %54, %55 : vector<2x32xf32>
    %57 = math.tanh %56 : vector<2x32xf32>
    %c8_29 = arith.constant 8 : index
    %c0_30 = arith.constant 0 : index
    %58 = vector.load %arg5[%c8_29, %c0_30] : memref<16x64xf32, #tpu.memory_space<vmem>>, vector<2x32xf32>
    tpu.vector_store %arg5[%c8_29, %c0_30], %53 {strides = array<i32>} : memref<16x64xf32, #tpu.memory_space<vmem>>, vector<2x32xf32>,
    %c6_31 = arith.constant 6 : index
    %c32_32 = arith.constant 32 : index
    %59 = vector.load %arg5[%c6_31, %c32_32] : memref<16x64xf32, #tpu.memory_space<vmem>>, vector<2x32xf32>
    tpu.vector_store %arg5[%c6_31, %c32_32], %57 {strides = array<i32>} : memref<16x64xf32, #tpu.memory_space<vmem>>, vector<2x32xf32>,
    %60 = vector.extract_strided_slice %5 {offsets = [10, 0], sizes = [2, 32], strides = [1, 1]} : vector<16x64xf32> to vector<2x32xf32>
    %cst_33 = arith.constant dense<0.000000e+00> : vector<2x32xf32>
    %61 = tpu.matmul %53, %6, %cst_33 {dimension_numbers = #tpu.dot_dimension_numbers<[1], [0], [0], [1], [0, 0, 1, 1], [], []>} : vector<2x32xf32>, vector<32x32xf32>, vector<2x32xf32> -> vector<2x32xf32>
    %62 = arith.addf %60, %61 : vector<2x32xf32>
    %63 = math.tanh %62 : vector<2x32xf32>
    %64 = vector.extract_strided_slice %5 {offsets = [4, 32], sizes = [2, 32], strides = [1, 1]} : vector<16x64xf32> to vector<2x32xf32>
    %cst_34 = arith.constant dense<0.000000e+00> : vector<2x32xf32>
    %65 = tpu.matmul %57, %7, %cst_34 {dimension_numbers = #tpu.dot_dimension_numbers<[1], [0], [0], [1], [0, 0, 1, 1], [], []>} : vector<2x32xf32>, vector<32x32xf32>, vector<2x32xf32> -> vector<2x32xf32>
    %66 = arith.addf %64, %65 : vector<2x32xf32>
    %67 = math.tanh %66 : vector<2x32xf32>
    %c10_35 = arith.constant 10 : index
    %c0_36 = arith.constant 0 : index
    %68 = vector.load %arg5[%c10_35, %c0_36] : memref<16x64xf32, #tpu.memory_space<vmem>>, vector<2x32xf32>
    tpu.vector_store %arg5[%c10_35, %c0_36], %63 {strides = array<i32>} : memref<16x64xf32, #tpu.memory_space<vmem>>, vector<2x32xf32>,
    %c4_37 = arith.constant 4 : index
    %c32_38 = arith.constant 32 : index
    %69 = vector.load %arg5[%c4_37, %c32_38] : memref<16x64xf32, #tpu.memory_space<vmem>>, vector<2x32xf32>
    tpu.vector_store %arg5[%c4_37, %c32_38], %67 {strides = array<i32>} : memref<16x64xf32, #tpu.memory_space<vmem>>, vector<2x32xf32>,
    %70 = vector.extract_strided_slice %5 {offsets = [12, 0], sizes = [2, 32], strides = [1, 1]} : vector<16x64xf32> to vector<2x32xf32>
    %cst_39 = arith.constant dense<0.000000e+00> : vector<2x32xf32>
    %71 = tpu.matmul %63, %6, %cst_39 {dimension_numbers = #tpu.dot_dimension_numbers<[1], [0], [0], [1], [0, 0, 1, 1], [], []>} : vector<2x32xf32>, vector<32x32xf32>, vector<2x32xf32> -> vector<2x32xf32>
    %72 = arith.addf %70, %71 : vector<2x32xf32>
    %73 = math.tanh %72 : vector<2x32xf32>
    %74 = vector.extract_strided_slice %5 {offsets = [2, 32], sizes = [2, 32], strides = [1, 1]} : vector<16x64xf32> to vector<2x32xf32>
    %cst_40 = arith.constant dense<0.000000e+00> : vector<2x32xf32>
    %75 = tpu.matmul %67, %7, %cst_40 {dimension_numbers = #tpu.dot_dimension_numbers<[1], [0], [0], [1], [0, 0, 1, 1], [], []>} : vector<2x32xf32>, vector<32x32xf32>, vector<2x32xf32> -> vector<2x32xf32>
    %76 = arith.addf %74, %75 : vector<2x32xf32>
    %77 = math.tanh %76 : vector<2x32xf32>
    %c12_41 = arith.constant 12 : index
    %c0_42 = arith.constant 0 : index
    %78 = vector.load %arg5[%c12_41, %c0_42] : memref<16x64xf32, #tpu.memory_space<vmem>>, vector<2x32xf32>
    tpu.vector_store %arg5[%c12_41, %c0_42], %73 {strides = array<i32>} : memref<16x64xf32, #tpu.memory_space<vmem>>, vector<2x32xf32>,
    %c2_43 = arith.constant 2 : index
    %c32_44 = arith.constant 32 : index
    %79 = vector.load %arg5[%c2_43, %c32_44] : memref<16x64xf32, #tpu.memory_space<vmem>>, vector<2x32xf32>
    tpu.vector_store %arg5[%c2_43, %c32_44], %77 {strides = array<i32>} : memref<16x64xf32, #tpu.memory_space<vmem>>, vector<2x32xf32>,
    %80 = vector.extract_strided_slice %5 {offsets = [14, 0], sizes = [2, 32], strides = [1, 1]} : vector<16x64xf32> to vector<2x32xf32>
    %cst_45 = arith.constant dense<0.000000e+00> : vector<2x32xf32>
    %81 = tpu.matmul %73, %6, %cst_45 {dimension_numbers = #tpu.dot_dimension_numbers<[1], [0], [0], [1], [0, 0, 1, 1], [], []>} : vector<2x32xf32>, vector<32x32xf32>, vector<2x32xf32> -> vector<2x32xf32>
    %82 = arith.addf %80, %81 : vector<2x32xf32>
    %83 = math.tanh %82 : vector<2x32xf32>
    %84 = vector.extract_strided_slice %5 {offsets = [0, 32], sizes = [2, 32], strides = [1, 1]} : vector<16x64xf32> to vector<2x32xf32>
    %cst_46 = arith.constant dense<0.000000e+00> : vector<2x32xf32>
    %85 = tpu.matmul %77, %7, %cst_46 {dimension_numbers = #tpu.dot_dimension_numbers<[1], [0], [0], [1], [0, 0, 1, 1], [], []>} : vector<2x32xf32>, vector<32x32xf32>, vector<2x32xf32> -> vector<2x32xf32>
    %86 = arith.addf %84, %85 : vector<2x32xf32>
    %87 = math.tanh %86 : vector<2x32xf32>
    %c14_47 = arith.constant 14 : index
    %c0_48 = arith.constant 0 : index
    %88 = vector.load %arg5[%c14_47, %c0_48] : memref<16x64xf32, #tpu.memory_space<vmem>>, vector<2x32xf32>
    tpu.vector_store %arg5[%c14_47, %c0_48], %83 {strides = array<i32>} : memref<16x64xf32, #tpu.memory_space<vmem>>, vector<2x32xf32>,
    %c0_49 = arith.constant 0 : index
    %c32_50 = arith.constant 32 : index
    %89 = vector.load %arg5[%c0_49, %c32_50] : memref<16x64xf32, #tpu.memory_space<vmem>>, vector<2x32xf32>
    tpu.vector_store %arg5[%c0_49, %c32_50], %87 {strides = array<i32>} : memref<16x64xf32, #tpu.memory_space<vmem>>, vector<2x32xf32>,
    return
  }
}

module attributes {stable_mosaic.version = 11 : i64} {
  func.func @_mlp_kernel(%arg0: i32, %arg1: memref<16x64xf32, #tpu.memory_space<vmem>>, %arg2: memref<64x512xf32, #tpu.memory_space<vmem>>, %arg3: memref<1x512xf32, #tpu.memory_space<vmem>>, %arg4: memref<512x256xf32, #tpu.memory_space<vmem>>, %arg5: memref<1x256xf32, #tpu.memory_space<vmem>>, %arg6: memref<256x128xf32, #tpu.memory_space<vmem>>, %arg7: memref<1x128xf32, #tpu.memory_space<vmem>>, %arg8: memref<16x128xf32, #tpu.memory_space<vmem>>) attributes {dimension_semantics = [#tpu.dimension_semantics<parallel>], iteration_bounds = array<i64: 1>, scalar_prefetch = 0 : i64, scratch_operands = 0 : i64, tpu.core_type = #tpu.core_type<tc>, window_params = [{transform_indices = @transform_0, window_bounds = array<i64: 16, 64>}, {pipeline_mode = #tpu.pipeline_mode<synchronous>, transform_indices = @transform_1, window_bounds = array<i64: 64, 512>}, {pipeline_mode = #tpu.pipeline_mode<synchronous>, transform_indices = @transform_2, window_bounds = array<i64: 1, 512>}, {pipeline_mode = #tpu.pipeline_mode<synchronous>, transform_indices = @transform_3, window_bounds = array<i64: 512, 256>}, {pipeline_mode = #tpu.pipeline_mode<synchronous>, transform_indices = @transform_4, window_bounds = array<i64: 1, 256>}, {pipeline_mode = #tpu.pipeline_mode<synchronous>, transform_indices = @transform_5, window_bounds = array<i64: 256, 128>}, {pipeline_mode = #tpu.pipeline_mode<synchronous>, transform_indices = @transform_6, window_bounds = array<i64: 1, 128>}, {transform_indices = @transform_7, window_bounds = array<i64: 16, 128>}]} {
    %c0 = arith.constant 0 : index
    %c0_0 = arith.constant 0 : index
    %0 = vector.load %arg1[%c0, %c0_0] : memref<16x64xf32, #tpu.memory_space<vmem>>, vector<16x64xf32>
    %c0_1 = arith.constant 0 : index
    %c0_2 = arith.constant 0 : index
    %1 = vector.load %arg2[%c0_1, %c0_2] : memref<64x512xf32, #tpu.memory_space<vmem>>, vector<64x512xf32>
    %cst = arith.constant dense<0.000000e+00> : vector<16x512xf32>
    %2 = tpu.matmul %0, %1, %cst {dimension_numbers = #tpu.dot_dimension_numbers<[1], [0], [0], [1], [0, 0, 1, 1], [], []>} : vector<16x64xf32>, vector<64x512xf32>, vector<16x512xf32> -> vector<16x512xf32>
    %c0_3 = arith.constant 0 : index
    %c0_4 = arith.constant 0 : index
    %3 = vector.load %arg3[%c0_3, %c0_4] : memref<1x512xf32, #tpu.memory_space<vmem>>, vector<1x512xf32>
    %4 = vector.broadcast %3 : vector<1x512xf32> to vector<16x512xf32>
    %5 = arith.addf %2, %4 : vector<16x512xf32>
    %cst_5 = arith.constant 0.000000e+00 : f32
    %6 = vector.broadcast %cst_5 : f32 to vector<16x512xf32>
    %7 = arith.maximumf %5, %6 : vector<16x512xf32>
    %c0_6 = arith.constant 0 : index
    %c0_7 = arith.constant 0 : index
    %8 = vector.load %arg4[%c0_6, %c0_7] : memref<512x256xf32, #tpu.memory_space<vmem>>, vector<512x256xf32>
    %cst_8 = arith.constant dense<0.000000e+00> : vector<16x256xf32>
    %9 = tpu.matmul %7, %8, %cst_8 {dimension_numbers = #tpu.dot_dimension_numbers<[1], [0], [0], [1], [0, 0, 1, 1], [], []>} : vector<16x512xf32>, vector<512x256xf32>, vector<16x256xf32> -> vector<16x256xf32>
    %c0_9 = arith.constant 0 : index
    %c0_10 = arith.constant 0 : index
    %10 = vector.load %arg5[%c0_9, %c0_10] : memref<1x256xf32, #tpu.memory_space<vmem>>, vector<1x256xf32>
    %11 = vector.broadcast %10 : vector<1x256xf32> to vector<16x256xf32>
    %12 = arith.addf %9, %11 : vector<16x256xf32>
    %cst_11 = arith.constant 0.000000e+00 : f32
    %13 = vector.broadcast %cst_11 : f32 to vector<16x256xf32>
    %14 = arith.maximumf %12, %13 : vector<16x256xf32>
    %c0_12 = arith.constant 0 : index
    %c0_13 = arith.constant 0 : index
    %15 = vector.load %arg6[%c0_12, %c0_13] : memref<256x128xf32, #tpu.memory_space<vmem>>, vector<256x128xf32>
    %cst_14 = arith.constant dense<0.000000e+00> : vector<16x128xf32>
    %16 = tpu.matmul %14, %15, %cst_14 {dimension_numbers = #tpu.dot_dimension_numbers<[1], [0], [0], [1], [0, 0, 1, 1], [], []>} : vector<16x256xf32>, vector<256x128xf32>, vector<16x128xf32> -> vector<16x128xf32>
    %c0_15 = arith.constant 0 : index
    %c0_16 = arith.constant 0 : index
    %17 = vector.load %arg7[%c0_15, %c0_16] : memref<1x128xf32, #tpu.memory_space<vmem>>, vector<1x128xf32>
    %18 = vector.broadcast %17 : vector<1x128xf32> to vector<16x128xf32>
    %19 = arith.addf %16, %18 : vector<16x128xf32>
    %c0_17 = arith.constant 0 : index
    %c0_18 = arith.constant 0 : index
    %20 = vector.load %arg8[%c0_17, %c0_18] : memref<16x128xf32, #tpu.memory_space<vmem>>, vector<16x128xf32>
    tpu.vector_store %arg8[%c0_17, %c0_18], %19 {strides = array<i32>} : memref<16x128xf32, #tpu.memory_space<vmem>>, vector<16x128xf32>,
    return
  }
  func.func @transform_0(%arg0: i32) -> (i32, i32) {
    %c0_i32 = arith.constant 0 : i32
    %c0_i32_0 = arith.constant 0 : i32
    return %arg0, %c0_i32 : i32, i32
  }
  func.func @transform_1(%arg0: i32) -> (i32, i32) {
    %c0_i32 = arith.constant 0 : i32
    %c0_i32_0 = arith.constant 0 : i32
    %c0_i32_1 = arith.constant 0 : i32
    return %c0_i32, %c0_i32_0 : i32, i32
  }
  func.func @transform_2(%arg0: i32) -> (i32, i32) {
    %c0_i32 = arith.constant 0 : i32
    %c0_i32_0 = arith.constant 0 : i32
    %c0_i32_1 = arith.constant 0 : i32
    return %c0_i32, %c0_i32_0 : i32, i32
  }
  func.func @transform_3(%arg0: i32) -> (i32, i32) {
    %c0_i32 = arith.constant 0 : i32
    %c0_i32_0 = arith.constant 0 : i32
    %c0_i32_1 = arith.constant 0 : i32
    return %c0_i32, %c0_i32_0 : i32, i32
  }
  func.func @transform_4(%arg0: i32) -> (i32, i32) {
    %c0_i32 = arith.constant 0 : i32
    %c0_i32_0 = arith.constant 0 : i32
    %c0_i32_1 = arith.constant 0 : i32
    return %c0_i32, %c0_i32_0 : i32, i32
  }
  func.func @transform_5(%arg0: i32) -> (i32, i32) {
    %c0_i32 = arith.constant 0 : i32
    %c0_i32_0 = arith.constant 0 : i32
    %c0_i32_1 = arith.constant 0 : i32
    return %c0_i32, %c0_i32_0 : i32, i32
  }
  func.func @transform_6(%arg0: i32) -> (i32, i32) {
    %c0_i32 = arith.constant 0 : i32
    %c0_i32_0 = arith.constant 0 : i32
    %c0_i32_1 = arith.constant 0 : i32
    return %c0_i32, %c0_i32_0 : i32, i32
  }
  func.func @transform_7(%arg0: i32) -> (i32, i32) {
    %c0_i32 = arith.constant 0 : i32
    %c0_i32_0 = arith.constant 0 : i32
    return %arg0, %c0_i32 : i32, i32
  }
}

module attributes {stable_mosaic.version = 11 : i64} {
  func.func @_birnn_layer_kernel(%arg0: memref<16x32xf32, #tpu.memory_space<vmem>>, %arg1: memref<32x64xf32, #tpu.memory_space<vmem>>, %arg2: memref<1x64xf32, #tpu.memory_space<vmem>>, %arg3: memref<32x32xf32, #tpu.memory_space<vmem>>, %arg4: memref<32x32xf32, #tpu.memory_space<vmem>>, %arg5: memref<16x64xf32, #tpu.memory_space<vmem>>) attributes {dimension_semantics = [], scalar_prefetch = 0 : i64, scratch_operands = 0 : i64, tpu.core_type = #tpu.core_type<tc>} {
    %c0 = arith.constant 0 : index
    %c0_0 = arith.constant 0 : index
    %0 = vector.load %arg0[%c0, %c0_0] : memref<16x32xf32, #tpu.memory_space<vmem>>, vector<16x32xf32>
    %c0_1 = arith.constant 0 : index
    %c0_2 = arith.constant 0 : index
    %1 = vector.load %arg1[%c0_1, %c0_2] : memref<32x64xf32, #tpu.memory_space<vmem>>, vector<32x64xf32>
    %cst = arith.constant dense<0.000000e+00> : vector<16x64xf32>
    %2 = tpu.matmul %0, %1, %cst {dimension_numbers = #tpu.dot_dimension_numbers<[1], [0], [0], [1], [0, 0, 1, 1], [], []>} : vector<16x32xf32>, vector<32x64xf32>, vector<16x64xf32> -> vector<16x64xf32>
    %c0_3 = arith.constant 0 : index
    %c0_4 = arith.constant 0 : index
    %3 = vector.load %arg2[%c0_3, %c0_4] : memref<1x64xf32, #tpu.memory_space<vmem>>, vector<1x64xf32>
    %4 = vector.broadcast %3 : vector<1x64xf32> to vector<16x64xf32>
    %5 = arith.addf %2, %4 : vector<16x64xf32>
    %c0_5 = arith.constant 0 : index
    %c0_6 = arith.constant 0 : index
    %6 = vector.load %arg3[%c0_5, %c0_6] : memref<32x32xf32, #tpu.memory_space<vmem>>, vector<32x32xf32>
    %c0_7 = arith.constant 0 : index
    %c0_8 = arith.constant 0 : index
    %7 = vector.load %arg4[%c0_7, %c0_8] : memref<32x32xf32, #tpu.memory_space<vmem>>, vector<32x32xf32>
    %cst_9 = arith.constant 0.000000e+00 : f32
    %8 = vector.broadcast %cst_9 : f32 to vector<2x32xf32>
    %cst_10 = arith.constant 0.000000e+00 : f32
    %9 = vector.broadcast %cst_10 : f32 to vector<2x32xf32>
    %10 = vector.extract_strided_slice %5 {offsets = [0, 0], sizes = [2, 32], strides = [1, 1]} : vector<16x64xf32> to vector<2x32xf32>
    %cst_11 = arith.constant dense<0.000000e+00> : vector<2x32xf32>
    %11 = tpu.matmul %8, %6, %cst_11 {dimension_numbers = #tpu.dot_dimension_numbers<[1], [0], [0], [1], [0, 0, 1, 1], [], []>} : vector<2x32xf32>, vector<32x32xf32>, vector<2x32xf32> -> vector<2x32xf32>
    %12 = arith.addf %10, %11 : vector<2x32xf32>
    %13 = math.tanh %12 : vector<2x32xf32>
    %14 = vector.extract_strided_slice %5 {offsets = [14, 32], sizes = [2, 32], strides = [1, 1]} : vector<16x64xf32> to vector<2x32xf32>
    %cst_12 = arith.constant dense<0.000000e+00> : vector<2x32xf32>
    %15 = tpu.matmul %9, %7, %cst_12 {dimension_numbers = #tpu.dot_dimension_numbers<[1], [0], [0], [1], [0, 0, 1, 1], [], []>} : vector<2x32xf32>, vector<32x32xf32>, vector<2x32xf32> -> vector<2x32xf32>
    %16 = arith.addf %14, %15 : vector<2x32xf32>
    %17 = math.tanh %16 : vector<2x32xf32>
    %c0_13 = arith.constant 0 : index
    %c0_14 = arith.constant 0 : index
    %18 = vector.load %arg5[%c0_13, %c0_14] : memref<16x64xf32, #tpu.memory_space<vmem>>, vector<2x32xf32>
    tpu.vector_store %arg5[%c0_13, %c0_14], %13 {strides = array<i32>} : memref<16x64xf32, #tpu.memory_space<vmem>>, vector<2x32xf32>,
    %c14 = arith.constant 14 : index
    %c32 = arith.constant 32 : index
    %19 = vector.load %arg5[%c14, %c32] : memref<16x64xf32, #tpu.memory_space<vmem>>, vector<2x32xf32>
    tpu.vector_store %arg5[%c14, %c32], %17 {strides = array<i32>} : memref<16x64xf32, #tpu.memory_space<vmem>>, vector<2x32xf32>,
    %20 = vector.extract_strided_slice %5 {offsets = [2, 0], sizes = [2, 32], strides = [1, 1]} : vector<16x64xf32> to vector<2x32xf32>
    %cst_15 = arith.constant dense<0.000000e+00> : vector<2x32xf32>
    %21 = tpu.matmul %13, %6, %cst_15 {dimension_numbers = #tpu.dot_dimension_numbers<[1], [0], [0], [1], [0, 0, 1, 1], [], []>} : vector<2x32xf32>, vector<32x32xf32>, vector<2x32xf32> -> vector<2x32xf32>
    %22 = arith.addf %20, %21 : vector<2x32xf32>
    %23 = math.tanh %22 : vector<2x32xf32>
    %24 = vector.extract_strided_slice %5 {offsets = [12, 32], sizes = [2, 32], strides = [1, 1]} : vector<16x64xf32> to vector<2x32xf32>
    %cst_16 = arith.constant dense<0.000000e+00> : vector<2x32xf32>
    %25 = tpu.matmul %17, %7, %cst_16 {dimension_numbers = #tpu.dot_dimension_numbers<[1], [0], [0], [1], [0, 0, 1, 1], [], []>} : vector<2x32xf32>, vector<32x32xf32>, vector<2x32xf32> -> vector<2x32xf32>
    %26 = arith.addf %24, %25 : vector<2x32xf32>
    %27 = math.tanh %26 : vector<2x32xf32>
    %c2 = arith.constant 2 : index
    %c0_17 = arith.constant 0 : index
    %28 = vector.load %arg5[%c2, %c0_17] : memref<16x64xf32, #tpu.memory_space<vmem>>, vector<2x32xf32>
    tpu.vector_store %arg5[%c2, %c0_17], %23 {strides = array<i32>} : memref<16x64xf32, #tpu.memory_space<vmem>>, vector<2x32xf32>,
    %c12 = arith.constant 12 : index
    %c32_18 = arith.constant 32 : index
    %29 = vector.load %arg5[%c12, %c32_18] : memref<16x64xf32, #tpu.memory_space<vmem>>, vector<2x32xf32>
    tpu.vector_store %arg5[%c12, %c32_18], %27 {strides = array<i32>} : memref<16x64xf32, #tpu.memory_space<vmem>>, vector<2x32xf32>,
    %30 = vector.extract_strided_slice %5 {offsets = [4, 0], sizes = [2, 32], strides = [1, 1]} : vector<16x64xf32> to vector<2x32xf32>
    %cst_19 = arith.constant dense<0.000000e+00> : vector<2x32xf32>
    %31 = tpu.matmul %23, %6, %cst_19 {dimension_numbers = #tpu.dot_dimension_numbers<[1], [0], [0], [1], [0, 0, 1, 1], [], []>} : vector<2x32xf32>, vector<32x32xf32>, vector<2x32xf32> -> vector<2x32xf32>
    %32 = arith.addf %30, %31 : vector<2x32xf32>
    %33 = math.tanh %32 : vector<2x32xf32>
    %34 = vector.extract_strided_slice %5 {offsets = [10, 32], sizes = [2, 32], strides = [1, 1]} : vector<16x64xf32> to vector<2x32xf32>
    %cst_20 = arith.constant dense<0.000000e+00> : vector<2x32xf32>
    %35 = tpu.matmul %27, %7, %cst_20 {dimension_numbers = #tpu.dot_dimension_numbers<[1], [0], [0], [1], [0, 0, 1, 1], [], []>} : vector<2x32xf32>, vector<32x32xf32>, vector<2x32xf32> -> vector<2x32xf32>
    %36 = arith.addf %34, %35 : vector<2x32xf32>
    %37 = math.tanh %36 : vector<2x32xf32>
    %c4 = arith.constant 4 : index
    %c0_21 = arith.constant 0 : index
    %38 = vector.load %arg5[%c4, %c0_21] : memref<16x64xf32, #tpu.memory_space<vmem>>, vector<2x32xf32>
    tpu.vector_store %arg5[%c4, %c0_21], %33 {strides = array<i32>} : memref<16x64xf32, #tpu.memory_space<vmem>>, vector<2x32xf32>,
    %c10 = arith.constant 10 : index
    %c32_22 = arith.constant 32 : index
    %39 = vector.load %arg5[%c10, %c32_22] : memref<16x64xf32, #tpu.memory_space<vmem>>, vector<2x32xf32>
    tpu.vector_store %arg5[%c10, %c32_22], %37 {strides = array<i32>} : memref<16x64xf32, #tpu.memory_space<vmem>>, vector<2x32xf32>,
    %40 = vector.extract_strided_slice %5 {offsets = [6, 0], sizes = [2, 32], strides = [1, 1]} : vector<16x64xf32> to vector<2x32xf32>
    %cst_23 = arith.constant dense<0.000000e+00> : vector<2x32xf32>
    %41 = tpu.matmul %33, %6, %cst_23 {dimension_numbers = #tpu.dot_dimension_numbers<[1], [0], [0], [1], [0, 0, 1, 1], [], []>} : vector<2x32xf32>, vector<32x32xf32>, vector<2x32xf32> -> vector<2x32xf32>
    %42 = arith.addf %40, %41 : vector<2x32xf32>
    %43 = math.tanh %42 : vector<2x32xf32>
    %44 = vector.extract_strided_slice %5 {offsets = [8, 32], sizes = [2, 32], strides = [1, 1]} : vector<16x64xf32> to vector<2x32xf32>
    %cst_24 = arith.constant dense<0.000000e+00> : vector<2x32xf32>
    %45 = tpu.matmul %37, %7, %cst_24 {dimension_numbers = #tpu.dot_dimension_numbers<[1], [0], [0], [1], [0, 0, 1, 1], [], []>} : vector<2x32xf32>, vector<32x32xf32>, vector<2x32xf32> -> vector<2x32xf32>
    %46 = arith.addf %44, %45 : vector<2x32xf32>
    %47 = math.tanh %46 : vector<2x32xf32>
    %c6 = arith.constant 6 : index
    %c0_25 = arith.constant 0 : index
    %48 = vector.load %arg5[%c6, %c0_25] : memref<16x64xf32, #tpu.memory_space<vmem>>, vector<2x32xf32>
    tpu.vector_store %arg5[%c6, %c0_25], %43 {strides = array<i32>} : memref<16x64xf32, #tpu.memory_space<vmem>>, vector<2x32xf32>,
    %c8 = arith.constant 8 : index
    %c32_26 = arith.constant 32 : index
    %49 = vector.load %arg5[%c8, %c32_26] : memref<16x64xf32, #tpu.memory_space<vmem>>, vector<2x32xf32>
    tpu.vector_store %arg5[%c8, %c32_26], %47 {strides = array<i32>} : memref<16x64xf32, #tpu.memory_space<vmem>>, vector<2x32xf32>,
    %50 = vector.extract_strided_slice %5 {offsets = [8, 0], sizes = [2, 32], strides = [1, 1]} : vector<16x64xf32> to vector<2x32xf32>
    %cst_27 = arith.constant dense<0.000000e+00> : vector<2x32xf32>
    %51 = tpu.matmul %43, %6, %cst_27 {dimension_numbers = #tpu.dot_dimension_numbers<[1], [0], [0], [1], [0, 0, 1, 1], [], []>} : vector<2x32xf32>, vector<32x32xf32>, vector<2x32xf32> -> vector<2x32xf32>
    %52 = arith.addf %50, %51 : vector<2x32xf32>
    %53 = math.tanh %52 : vector<2x32xf32>
    %54 = vector.extract_strided_slice %5 {offsets = [6, 32], sizes = [2, 32], strides = [1, 1]} : vector<16x64xf32> to vector<2x32xf32>
    %cst_28 = arith.constant dense<0.000000e+00> : vector<2x32xf32>
    %55 = tpu.matmul %47, %7, %cst_28 {dimension_numbers = #tpu.dot_dimension_numbers<[1], [0], [0], [1], [0, 0, 1, 1], [], []>} : vector<2x32xf32>, vector<32x32xf32>, vector<2x32xf32> -> vector<2x32xf32>
    %56 = arith.addf %54, %55 : vector<2x32xf32>
    %57 = math.tanh %56 : vector<2x32xf32>
    %c8_29 = arith.constant 8 : index
    %c0_30 = arith.constant 0 : index
    %58 = vector.load %arg5[%c8_29, %c0_30] : memref<16x64xf32, #tpu.memory_space<vmem>>, vector<2x32xf32>
    tpu.vector_store %arg5[%c8_29, %c0_30], %53 {strides = array<i32>} : memref<16x64xf32, #tpu.memory_space<vmem>>, vector<2x32xf32>,
    %c6_31 = arith.constant 6 : index
    %c32_32 = arith.constant 32 : index
    %59 = vector.load %arg5[%c6_31, %c32_32] : memref<16x64xf32, #tpu.memory_space<vmem>>, vector<2x32xf32>
    tpu.vector_store %arg5[%c6_31, %c32_32], %57 {strides = array<i32>} : memref<16x64xf32, #tpu.memory_space<vmem>>, vector<2x32xf32>,
    %60 = vector.extract_strided_slice %5 {offsets = [10, 0], sizes = [2, 32], strides = [1, 1]} : vector<16x64xf32> to vector<2x32xf32>
    %cst_33 = arith.constant dense<0.000000e+00> : vector<2x32xf32>
    %61 = tpu.matmul %53, %6, %cst_33 {dimension_numbers = #tpu.dot_dimension_numbers<[1], [0], [0], [1], [0, 0, 1, 1], [], []>} : vector<2x32xf32>, vector<32x32xf32>, vector<2x32xf32> -> vector<2x32xf32>
    %62 = arith.addf %60, %61 : vector<2x32xf32>
    %63 = math.tanh %62 : vector<2x32xf32>
    %64 = vector.extract_strided_slice %5 {offsets = [4, 32], sizes = [2, 32], strides = [1, 1]} : vector<16x64xf32> to vector<2x32xf32>
    %cst_34 = arith.constant dense<0.000000e+00> : vector<2x32xf32>
    %65 = tpu.matmul %57, %7, %cst_34 {dimension_numbers = #tpu.dot_dimension_numbers<[1], [0], [0], [1], [0, 0, 1, 1], [], []>} : vector<2x32xf32>, vector<32x32xf32>, vector<2x32xf32> -> vector<2x32xf32>
    %66 = arith.addf %64, %65 : vector<2x32xf32>
    %67 = math.tanh %66 : vector<2x32xf32>
    %c10_35 = arith.constant 10 : index
    %c0_36 = arith.constant 0 : index
    %68 = vector.load %arg5[%c10_35, %c0_36] : memref<16x64xf32, #tpu.memory_space<vmem>>, vector<2x32xf32>
    tpu.vector_store %arg5[%c10_35, %c0_36], %63 {strides = array<i32>} : memref<16x64xf32, #tpu.memory_space<vmem>>, vector<2x32xf32>,
    %c4_37 = arith.constant 4 : index
    %c32_38 = arith.constant 32 : index
    %69 = vector.load %arg5[%c4_37, %c32_38] : memref<16x64xf32, #tpu.memory_space<vmem>>, vector<2x32xf32>
    tpu.vector_store %arg5[%c4_37, %c32_38], %67 {strides = array<i32>} : memref<16x64xf32, #tpu.memory_space<vmem>>, vector<2x32xf32>,
    %70 = vector.extract_strided_slice %5 {offsets = [12, 0], sizes = [2, 32], strides = [1, 1]} : vector<16x64xf32> to vector<2x32xf32>
    %cst_39 = arith.constant dense<0.000000e+00> : vector<2x32xf32>
    %71 = tpu.matmul %63, %6, %cst_39 {dimension_numbers = #tpu.dot_dimension_numbers<[1], [0], [0], [1], [0, 0, 1, 1], [], []>} : vector<2x32xf32>, vector<32x32xf32>, vector<2x32xf32> -> vector<2x32xf32>
    %72 = arith.addf %70, %71 : vector<2x32xf32>
    %73 = math.tanh %72 : vector<2x32xf32>
    %74 = vector.extract_strided_slice %5 {offsets = [2, 32], sizes = [2, 32], strides = [1, 1]} : vector<16x64xf32> to vector<2x32xf32>
    %cst_40 = arith.constant dense<0.000000e+00> : vector<2x32xf32>
    %75 = tpu.matmul %67, %7, %cst_40 {dimension_numbers = #tpu.dot_dimension_numbers<[1], [0], [0], [1], [0, 0, 1, 1], [], []>} : vector<2x32xf32>, vector<32x32xf32>, vector<2x32xf32> -> vector<2x32xf32>
    %76 = arith.addf %74, %75 : vector<2x32xf32>
    %77 = math.tanh %76 : vector<2x32xf32>
    %c12_41 = arith.constant 12 : index
    %c0_42 = arith.constant 0 : index
    %78 = vector.load %arg5[%c12_41, %c0_42] : memref<16x64xf32, #tpu.memory_space<vmem>>, vector<2x32xf32>
    tpu.vector_store %arg5[%c12_41, %c0_42], %73 {strides = array<i32>} : memref<16x64xf32, #tpu.memory_space<vmem>>, vector<2x32xf32>,
    %c2_43 = arith.constant 2 : index
    %c32_44 = arith.constant 32 : index
    %79 = vector.load %arg5[%c2_43, %c32_44] : memref<16x64xf32, #tpu.memory_space<vmem>>, vector<2x32xf32>
    tpu.vector_store %arg5[%c2_43, %c32_44], %77 {strides = array<i32>} : memref<16x64xf32, #tpu.memory_space<vmem>>, vector<2x32xf32>,
    %80 = vector.extract_strided_slice %5 {offsets = [14, 0], sizes = [2, 32], strides = [1, 1]} : vector<16x64xf32> to vector<2x32xf32>
    %cst_45 = arith.constant dense<0.000000e+00> : vector<2x32xf32>
    %81 = tpu.matmul %73, %6, %cst_45 {dimension_numbers = #tpu.dot_dimension_numbers<[1], [0], [0], [1], [0, 0, 1, 1], [], []>} : vector<2x32xf32>, vector<32x32xf32>, vector<2x32xf32> -> vector<2x32xf32>
    %82 = arith.addf %80, %81 : vector<2x32xf32>
    %83 = math.tanh %82 : vector<2x32xf32>
    %84 = vector.extract_strided_slice %5 {offsets = [0, 32], sizes = [2, 32], strides = [1, 1]} : vector<16x64xf32> to vector<2x32xf32>
    %cst_46 = arith.constant dense<0.000000e+00> : vector<2x32xf32>
    %85 = tpu.matmul %77, %7, %cst_46 {dimension_numbers = #tpu.dot_dimension_numbers<[1], [0], [0], [1], [0, 0, 1, 1], [], []>} : vector<2x32xf32>, vector<32x32xf32>, vector<2x32xf32> -> vector<2x32xf32>
    %86 = arith.addf %84, %85 : vector<2x32xf32>
    %87 = math.tanh %86 : vector<2x32xf32>
    %c14_47 = arith.constant 14 : index
    %c0_48 = arith.constant 0 : index
    %88 = vector.load %arg5[%c14_47, %c0_48] : memref<16x64xf32, #tpu.memory_space<vmem>>, vector<2x32xf32>
    tpu.vector_store %arg5[%c14_47, %c0_48], %83 {strides = array<i32>} : memref<16x64xf32, #tpu.memory_space<vmem>>, vector<2x32xf32>,
    %c0_49 = arith.constant 0 : index
    %c32_50 = arith.constant 32 : index
    %89 = vector.load %arg5[%c0_49, %c32_50] : memref<16x64xf32, #tpu.memory_space<vmem>>, vector<2x32xf32>
    tpu.vector_store %arg5[%c0_49, %c32_50], %87 {strides = array<i32>} : memref<16x64xf32, #tpu.memory_space<vmem>>, vector<2x32xf32>,
    return
  }
}

</mosaic_0001>

<llo_original>
// kernel: ner_forward.3
$region0: #{ner_forward.3}
  #allocation0 [shape = 'u32[]', space=smem, size = 0x4, offset = 0x4, fixed_abs, tag = 'smem constant byte address 0x4 - core index']
  #allocation1 [shape = 'u32[144,128]{1,0:T(1,128)}', space=vmem, size = 0x12000, scoped, tag = 'internal scratch']
  %s0 = inlined_call_operand.vmem [shape: f32[16,32], index: 0, kind: input, shape index: {}]
  %s1 = inlined_call_operand.hbm [shape: f32[32,64], index: 1, kind: input, shape index: {}]
  %s2 = inlined_call_operand.vmem [shape: f32[1,64], index: 2, kind: input, shape index: {}]
  %s3 = inlined_call_operand.hbm [shape: f32[32,32], index: 3, kind: input, shape index: {}]
  %s4 = inlined_call_operand.hbm [shape: f32[32,32], index: 4, kind: input, shape index: {}]
  %s5 = inlined_call_operand.vmem [shape: f32[16,64], index: 5, kind: output, shape index: {}]
  %s6 = sld [smem:[#allocation0]]
  $region42: #{ner_forward.3} parent=0
    _
  %s8 = ssub.s32 1, %s6
  %s9 = scalar_select 0, %s8, %s6
  $region1: #{ner_forward.3} parent=0
    #allocation2 [shape = 'u8[16384]{0}', space=vmem, size = 0x4000, scoped, tag = 'input window, operand 1, single buffered']
    #allocation3 [shape = 's32[1]{0}', space=sflag, size = 0x4, scoped, tag = 'scoped memory for ner_forward.3']
    #allocation4 [shape = 'u8[16384]{0}', space=vmem, size = 0x4000, scoped, tag = 'input window, operand 3, single buffered']
    #allocation5 [shape = 's32[1]{0}', space=sflag, size = 0x4, scoped, tag = 'scoped memory for ner_forward.3']
    #allocation6 [shape = 'u8[16384]{0}', space=vmem, size = 0x4000, scoped, tag = 'input window, operand 4, single buffered']
    %10 = vsyncpa [#allocation3], 0
    %11 = vsyncpa [#allocation5], 0
    // Predicated region
    $region2: #{ner_forward.3} parent=1 // pred_check
      _
    $region3: #{ner_forward.3} parent=1 // pred_check_branch
      %13 = sbr.rel (0) target = $region5
    $region4: #{ner_forward.3} parent=1 // pred_region
      _
    $region5: #{ner_forward.3} parent=1 // pred_fallthru
      _
    // Predicated region
    $region6: #{ner_forward.3} parent=1 // pred_check
      _
    $region7: #{ner_forward.3} parent=1 // pred_check_branch
      %15 = sbr.rel (0) target = $region9
    $region8: #{ner_forward.3} parent=1 // pred_region
      %s17 = ssub.s32 512, 512
      %18 = vsyncadd [#allocation3], %s17
      %s19 = sshll.u32 [#allocation2], 4
      %s20 = int_to_ptr.vmem [resolvable:$true] %s19
      %25 = dma.hbm_to_vmem [thread:$0]  %s1, 512, %s20, [#allocation3], 128, 128, 8
    $region9: #{ner_forward.3} parent=1 // pred_fallthru
      _
    // Predicated region
    $region10: #{ner_forward.3} parent=1 // pred_check
      _
    $region11: #{ner_forward.3} parent=1 // pred_check_branch
      %27 = sbr.rel (0) target = $region13
    $region12: #{ner_forward.3} parent=1 // pred_region
      _
    $region13: #{ner_forward.3} parent=1 // pred_fallthru
      _
    // Predicated region
    $region14: #{ner_forward.3} parent=1 // pred_check
      _
    $region15: #{ner_forward.3} parent=1 // pred_check_branch
      %29 = sbr.rel (0) target = $region17
    $region16: #{ner_forward.3} parent=1 // pred_region
      %s31 = ssub.s32 512, 512
      %32 = vsyncadd [#allocation5], %s31
      %s33 = sshll.u32 [#allocation4], 4
      %s34 = int_to_ptr.vmem [resolvable:$true] %s33
      %39 = dma.hbm_to_vmem [thread:$0]  %s3, 512, %s34, [#allocation5], 128, 128, 8
    $region17: #{ner_forward.3} parent=1 // pred_fallthru
      _
    // Predicated region
    $region18: #{ner_forward.3} parent=1 // pred_check
      _
    $region19: #{ner_forward.3} parent=1 // pred_check_branch
      %41 = sbr.rel (0) target = $region21
    $region20: #{ner_forward.3} parent=1 // pred_region
      %s43 = ssub.s32 512, 512
      %44 = vsyncadd [#allocation5], %s43
      %s45 = sshll.u32 [#allocation6], 4
      %s46 = int_to_ptr.vmem [resolvable:$true] %s45
      %51 = dma.hbm_to_vmem [thread:$0]  %s4, 512, %s46, [#allocation5], 128, 128, 8
    $region21: #{ner_forward.3} parent=1 // pred_fallthru
      _
    // Predicated region
    $region22: #{ner_forward.3} parent=1 // pred_check
      _
    $region23: #{ner_forward.3} parent=1 // pred_check_branch
      %53 = sbr.rel (0) target = $region25
    $region24: #{ner_forward.3} parent=1 // pred_region
      %54 = dma.done [#allocation3], 512
    $region25: #{ner_forward.3} parent=1 // pred_fallthru
      _
    // Predicated region
    $region26: #{ner_forward.3} parent=1 // pred_check
      _
    $region27: #{ner_forward.3} parent=1 // pred_check_branch
      %56 = sbr.rel (0) target = $region29
    $region28: #{ner_forward.3} parent=1 // pred_region
      %57 = dma.done [#allocation5], 512
    $region29: #{ner_forward.3} parent=1 // pred_fallthru
      _
    // Predicated region
    $region30: #{ner_forward.3} parent=1 // pred_check
      _
    $region31: #{ner_forward.3} parent=1 // pred_check_branch
      %59 = sbr.rel (0) target = $region33
    $region32: #{ner_forward.3} parent=1 // pred_region
      %60 = dma.done [#allocation5], 512
    $region33: #{ner_forward.3} parent=1 // pred_fallthru
      _
    %v61 = vld [vmem:[%s0] sm:$0xff]
    %v62 = vld [vmem:[%s0 + $0x8] sm:$0xff]
    %v63 = vld [vmem:[#allocation2] sm:$0xff]
    %v64 = vld [vmem:[#allocation2 + $0x8] sm:$0xff]
    %v65 = vld [vmem:[#allocation2 + $0x10] sm:$0xff]
    %v66 = vld [vmem:[#allocation2 + $0x18] sm:$0xff]
    %v67 = vld [vmem:[%s2] sm:$0x1]
    %v69 = vlaneseq
    %v70 = vshrl.u32 %v69, 7
    %v71 = vsub.s32 0, %v70
    %v72 = vrot.slane %v67, %v71
    %vm74 = vcmask 261120
    %v76 = vsel %vm74, %v61, 0
    %v79 = vsel %vm74, %v62, 0
    %81 = vmatprep.subr.mxu0 0.0
    %82 = vmatpush1.msra.mxu0 %v63
    %83 = vmatprep.subr.mxu0 0.0
    %84 = vmatpush1.msra.mxu0 %v64
    %85 = vmatprep.subr.mxu0 0.0
    %86 = vmatpush1.msra.mxu0 %v65
    %87 = vmatprep.subr.mxu0 0.0
    %88 = vmatpush1.msra.mxu0 %v66
    %89 = vmatprep.subr.mxu0 0.0
    %90 = vmatpush1.msra.mxu0 0.0
    %91 = vmatprep.subr.mxu0 0.0
    %92 = vmatpush1.msra.mxu0 0.0
    %93 = vmatprep.subr.mxu0 0.0
    %94 = vmatpush1.msra.mxu0 0.0
    %95 = vmatprep.subr.mxu0 0.0
    %96 = vmatpush1.msra.mxu0 0.0
    %97 = vmatprep.subr.mxu0 0.0
    %98 = vmatpush1.msra.mxu0 0.0
    %99 = vmatprep.subr.mxu0 0.0
    %100 = vmatpush1.msra.mxu0 0.0
    %101 = vmatprep.subr.mxu0 0.0
    %102 = vmatpush1.msra.mxu0 0.0
    %103 = vmatprep.subr.mxu0 0.0
    %104 = vmatpush1.msra.mxu0 0.0
    %105 = vmatprep.subr.mxu0 0.0
    %106 = vmatpush1.msra.mxu0 0.0
    %107 = vmatprep.subr.mxu0 0.0
    %108 = vmatpush1.msra.mxu0 0.0
    %109 = vmatprep.subr.mxu0 0.0
    %110 = vmatpush1.msra.mxu0 0.0
    %111 = vmatprep.subr.mxu0 0.0
    %112 = vmatpush1.msra.mxu0 0.0
    %113 = vmatprep.subr.mxu0 0.0
    %114 = vmatpush1.msra.mxu0 0.0
    %115 = vmatprep.subr.mxu0 0.0
    %116 = vmatpush1.msra.mxu0 0.0
    %117 = vmatprep.subr.mxu0 0.0
    %118 = vmatpush1.msra.mxu0 0.0
    %119 = vmatprep.subr.mxu0 0.0
    %120 = vmatpush1.msra.mxu0 0.0
    %121 = vmatprep.subr.mxu0 0.0
    %122 = vmatpush1.msra.mxu0 0.0
    %123 = vmatprep.subr.mxu0 0.0
    %124 = vmatpush1.msra.mxu0 0.0
    %125 = vmatprep.subr.mxu0 0.0
    %126 = vmatpush1.msra.mxu0 0.0
    %127 = vmatprep.subr.mxu0 0.0
    %128 = vmatpush1.msra.mxu0 0.0
    %129 = vmatprep.subr.mxu0 0.0
    %130 = vmatpush1.msra.mxu0 0.0
    %131 = vmatprep.subr.mxu0 0.0
    %132 = vmatpush1.msra.mxu0 0.0
    %133 = vmatprep.subr.mxu0 0.0
    %134 = vmatpush1.msra.mxu0 0.0
    %135 = vmatprep.subr.mxu0 0.0
    %136 = vmatpush1.msra.mxu0 0.0
    %137 = vmatprep.subr.mxu0 0.0
    %138 = vmatpush1.msra.mxu0 0.0
    %139 = vmatprep.subr.mxu0 0.0
    %140 = vmatpush1.msra.mxu0 0.0
    %141 = vmatprep.subr.mxu0 0.0
    %142 = vmatpush1.msra.mxu0 0.0
    %143 = vmatprep.subr.mxu0 0.0
    %144 = vmatpush1.msra.mxu0 0.0
    %145 = vmatprep.mubr.f32.mxu0 0.0
    %146 = vmatmul.mubr.f32.gmra.mrb[0].mxu0 %v76
    %v147 = vpop.f32.mrb[0].mxu0
    %v148 = vadd.f32 %v72, %v147
    %v149 = vpop.f32.mrb[0].mxu0
    %150 = vmatprep.mubr.f32.mxu0 0.0
    %151 = vmatmul.mubr.f32.gmra.mrb[0].mxu0 %v79
    %v152 = vpop.f32.mrb[0].mxu0
    %v153 = vadd.f32 %v72, %v152
    %v154 = vpop.f32.mrb[0].mxu0
    %155 = vdwg.mxu0
    %v156 = vld [vmem:[#allocation4] sm:$0xff]
    %v157 = vld [vmem:[#allocation4 + $0x8] sm:$0xff]
    %v158 = vld [vmem:[#allocation4 + $0x10] sm:$0xff]
    %v159 = vld [vmem:[#allocation4 + $0x18] sm:$0xff]
    %v160 = vld [vmem:[#allocation6] sm:$0xff]
    %v161 = vld [vmem:[#allocation6 + $0x8] sm:$0xff]
    %v162 = vld [vmem:[#allocation6 + $0x10] sm:$0xff]
    %v163 = vld [vmem:[#allocation6 + $0x18] sm:$0xff]
    %v165 = vsel %vm74, 0.0, 0
    %167 = vmatprep.subr.mxu0 0.0
    %168 = vmatpush1.msra.mxu0 %v156
    %169 = vmatprep.subr.mxu0 0.0
    %170 = vmatpush1.msra.mxu0 %v157
    %171 = vmatprep.subr.mxu0 0.0
    %172 = vmatpush1.msra.mxu0 %v158
    %173 = vmatprep.subr.mxu0 0.0
    %174 = vmatpush1.msra.mxu0 %v159
    %175 = vmatprep.subr.mxu0 0.0
    %176 = vmatpush1.msra.mxu0 0.0
    %177 = vmatprep.subr.mxu0 0.0
    %178 = vmatpush1.msra.mxu0 0.0
    %179 = vmatprep.subr.mxu0 0.0
    %180 = vmatpush1.msra.mxu0 0.0
    %181 = vmatprep.subr.mxu0 0.0
    %182 = vmatpush1.msra.mxu0 0.0
    %183 = vmatprep.subr.mxu0 0.0
    %184 = vmatpush1.msra.mxu0 0.0
    %185 = vmatprep.subr.mxu0 0.0
    %186 = vmatpush1.msra.mxu0 0.0
    %187 = vmatprep.subr.mxu0 0.0
    %188 = vmatpush1.msra.mxu0 0.0
    %189 = vmatprep.subr.mxu0 0.0
    %190 = vmatpush1.msra.mxu0 0.0
    %191 = vmatprep.subr.mxu0 0.0
    %192 = vmatpush1.msra.mxu0 0.0
    %193 = vmatprep.subr.mxu0 0.0
    %194 = vmatpush1.msra.mxu0 0.0
    %195 = vmatprep.subr.mxu0 0.0
    %196 = vmatpush1.msra.mxu0 0.0
    %197 = vmatprep.subr.mxu0 0.0
    %198 = vmatpush1.msra.mxu0 0.0
    %199 = vmatprep.subr.mxu0 0.0
    %200 = vmatpush1.msra.mxu0 0.0
    %201 = vmatprep.subr.mxu0 0.0
    %202 = vmatpush1.msra.mxu0 0.0
    %203 = vmatprep.subr.mxu0 0.0
    %204 = vmatpush1.msra.mxu0 0.0
    %205 = vmatprep.subr.mxu0 0.0
    %206 = vmatpush1.msra.mxu0 0.0
    %207 = vmatprep.subr.mxu0 0.0
    %208 = vmatpush1.msra.mxu0 0.0
    %209 = vmatprep.subr.mxu0 0.0
    %210 = vmatpush1.msra.mxu0 0.0
    %211 = vmatprep.subr.mxu0 0.0
    %212 = vmatpush1.msra.mxu0 0.0
    %213 = vmatprep.subr.mxu0 0.0
    %214 = vmatpush1.msra.mxu0 0.0
    %215 = vmatprep.subr.mxu0 0.0
    %216 = vmatpush1.msra.mxu0 0.0
    %217 = vmatprep.subr.mxu0 0.0
    %218 = vmatpush1.msra.mxu0 0.0
    %219 = vmatprep.subr.mxu0 0.0
    %220 = vmatpush1.msra.mxu0 0.0
    %221 = vmatprep.subr.mxu0 0.0
    %222 = vmatpush1.msra.mxu0 0.0
    %223 = vmatprep.subr.mxu0 0.0
    %224 = vmatpush1.msra.mxu0 0.0
    %225 = vmatprep.subr.mxu0 0.0
    %226 = vmatpush1.msra.mxu0 0.0
    %227 = vmatprep.subr.mxu0 0.0
    %228 = vmatpush1.msra.mxu0 0.0
    %229 = vmatprep.subr.mxu0 0.0
    %230 = vmatpush1.msra.mxu0 0.0
    %231 = vmatprep.mubr.f32.mxu0 0.0
    %232 = vmatmul.mubr.f32.gmra.mrb[0].mxu0 %v165
    %v233 = vpop.f32.mrb[0].mxu0
    %v234 = vadd.f32 0.0, %v233
    %v235 = vpop.f32.mrb[0].mxu0
    %236 = vdwg.mxu0
    %v237 = vadd.f32 %v148, %v234
    %v238 = vtanh.pop %v237
    %239 = vmatprep.subr.mxu0 0.0
    %240 = vmatpush1.msra.mxu0 %v160
    %241 = vmatprep.subr.mxu0 0.0
    %242 = vmatpush1.msra.mxu0 %v161
    %243 = vmatprep.subr.mxu0 0.0
    %244 = vmatpush1.msra.mxu0 %v162
    %245 = vmatprep.subr.mxu0 0.0
    %246 = vmatpush1.msra.mxu0 %v163
    %247 = vmatprep.subr.mxu0 0.0
    %248 = vmatpush1.msra.mxu0 0.0
    %249 = vmatprep.subr.mxu0 0.0
    %250 = vmatpush1.msra.mxu0 0.0
    %251 = vmatprep.subr.mxu0 0.0
    %252 = vmatpush1.msra.mxu0 0.0
    %253 = vmatprep.subr.mxu0 0.0
    %254 = vmatpush1.msra.mxu0 0.0
    %255 = vmatprep.subr.mxu0 0.0
    %256 = vmatpush1.msra.mxu0 0.0
    %257 = vmatprep.subr.mxu0 0.0
    %258 = vmatpush1.msra.mxu0 0.0
    %259 = vmatprep.subr.mxu0 0.0
    %260 = vmatpush1.msra.mxu0 0.0
    %261 = vmatprep.subr.mxu0 0.0
    %262 = vmatpush1.msra.mxu0 0.0
    %263 = vmatprep.subr.mxu0 0.0
    %264 = vmatpush1.msra.mxu0 0.0
    %265 = vmatprep.subr.mxu0 0.0
    %266 = vmatpush1.msra.mxu0 0.0
    %267 = vmatprep.subr.mxu0 0.0
    %268 = vmatpush1.msra.mxu0 0.0
    %269 = vmatprep.subr.mxu0 0.0
    %270 = vmatpush1.msra.mxu0 0.0
    %271 = vmatprep.subr.mxu0 0.0
    %272 = vmatpush1.msra.mxu0 0.0
    %273 = vmatprep.subr.mxu0 0.0
    %274 = vmatpush1.msra.mxu0 0.0
    %275 = vmatprep.subr.mxu0 0.0
    %276 = vmatpush1.msra.mxu0 0.0
    %277 = vmatprep.subr.mxu0 0.0
    %278 = vmatpush1.msra.mxu0 0.0
    %279 = vmatprep.subr.mxu0 0.0
    %280 = vmatpush1.msra.mxu0 0.0
    %281 = vmatprep.subr.mxu0 0.0
    %282 = vmatpush1.msra.mxu0 0.0
    %283 = vmatprep.subr.mxu0 0.0
    %284 = vmatpush1.msra.mxu0 0.0
    %285 = vmatprep.subr.mxu0 0.0
    %286 = vmatpush1.msra.mxu0 0.0
    %287 = vmatprep.subr.mxu0 0.0
    %288 = vmatpush1.msra.mxu0 0.0
    %289 = vmatprep.subr.mxu0 0.0
    %290 = vmatpush1.msra.mxu0 0.0
    %291 = vmatprep.subr.mxu0 0.0
    %292 = vmatpush1.msra.mxu0 0.0
    %293 = vmatprep.subr.mxu0 0.0
    %294 = vmatpush1.msra.mxu0 0.0
    %295 = vmatprep.subr.mxu0 0.0
    %296 = vmatpush1.msra.mxu0 0.0
    %297 = vmatprep.subr.mxu0 0.0
    %298 = vmatpush1.msra.mxu0 0.0
    %299 = vmatprep.subr.mxu0 0.0
    %300 = vmatpush1.msra.mxu0 0.0
    %301 = vmatprep.subr.mxu0 0.0
    %302 = vmatpush1.msra.mxu0 0.0
    %303 = vmatprep.mubr.f32.mxu0 0.0
    %304 = vmatmul.mubr.f32.gmra.mrb[0].mxu0 %v165
    %v305 = vpop.f32.mrb[0].mxu0
    %v306 = vadd.f32 0.0, %v305
    %v307 = vpop.f32.mrb[0].mxu0
    %308 = vdwg.mxu0
    %v310 = vrot.slane %v306, 2
    %311 = vrot.lane.b32.xlu0 %v310, 32
    %v312 = vpop.permute.xlu0 %311
    %v314 = vadd.f32 %v153, %v312
    %v315 = vtanh.pop %v314
    %vm316 = vcmask 254976
    %317 = vst.msk [vmem:[%s5] sm:$0x3] %vm316, %v238
    %vm318 = vcmask 523526
    %319 = vst.msk [vmem:[%s5 + $0x8] sm:$0xc0] %vm318, %v315
    %v321 = vsel %vm74, %v238, 0
    %323 = vmatprep.subr.mxu0 0.0
    %324 = vmatpush1.msra.mxu0 %v156
    %325 = vmatprep.subr.mxu0 0.0
    %326 = vmatpush1.msra.mxu0 %v157
    %327 = vmatprep.subr.mxu0 0.0
    %328 = vmatpush1.msra.mxu0 %v158
    %329 = vmatprep.subr.mxu0 0.0
    %330 = vmatpush1.msra.mxu0 %v159
    %331 = vmatprep.subr.mxu0 0.0
    %332 = vmatpush1.msra.mxu0 0.0
    %333 = vmatprep.subr.mxu0 0.0
    %334 = vmatpush1.msra.mxu0 0.0
    %335 = vmatprep.subr.mxu0 0.0
    %336 = vmatpush1.msra.mxu0 0.0
    %337 = vmatprep.subr.mxu0 0.0
    %338 = vmatpush1.msra.mxu0 0.0
    %339 = vmatprep.subr.mxu0 0.0
    %340 = vmatpush1.msra.mxu0 0.0
    %341 = vmatprep.subr.mxu0 0.0
    %342 = vmatpush1.msra.mxu0 0.0
    %343 = vmatprep.subr.mxu0 0.0
    %344 = vmatpush1.msra.mxu0 0.0
    %345 = vmatprep.subr.mxu0 0.0
    %346 = vmatpush1.msra.mxu0 0.0
    %347 = vmatprep.subr.mxu0 0.0
    %348 = vmatpush1.msra.mxu0 0.0
    %349 = vmatprep.subr.mxu0 0.0
    %350 = vmatpush1.msra.mxu0 0.0
    %351 = vmatprep.subr.mxu0 0.0
    %352 = vmatpush1.msra.mxu0 0.0
    %353 = vmatprep.subr.mxu0 0.0
    %354 = vmatpush1.msra.mxu0 0.0
    %355 = vmatprep.subr.mxu0 0.0
    %356 = vmatpush1.msra.mxu0 0.0
    %357 = vmatprep.subr.mxu0 0.0
    %358 = vmatpush1.msra.mxu0 0.0
    %359 = vmatprep.subr.mxu0 0.0
    %360 = vmatpush1.msra.mxu0 0.0
    %361 = vmatprep.subr.mxu0 0.0
    %362 = vmatpush1.msra.mxu0 0.0
    %363 = vmatprep.subr.mxu0 0.0
    %364 = vmatpush1.msra.mxu0 0.0
    %365 = vmatprep.subr.mxu0 0.0
    %366 = vmatpush1.msra.mxu0 0.0
    %367 = vmatprep.subr.mxu0 0.0
    %368 = vmatpush1.msra.mxu0 0.0
    %369 = vmatprep.subr.mxu0 0.0
    %370 = vmatpush1.msra.mxu0 0.0
    %371 = vmatprep.subr.mxu0 0.0
    %372 = vmatpush1.msra.mxu0 0.0
    %373 = vmatprep.subr.mxu0 0.0
    %374 = vmatpush1.msra.mxu0 0.0
    %375 = vmatprep.subr.mxu0 0.0
    %376 = vmatpush1.msra.mxu0 0.0
    %377 = vmatprep.subr.mxu0 0.0
    %378 = vmatpush1.msra.mxu0 0.0
    %379 = vmatprep.subr.mxu0 0.0
    %380 = vmatpush1.msra.mxu0 0.0
    %381 = vmatprep.subr.mxu0 0.0
    %382 = vmatpush1.msra.mxu0 0.0
    %383 = vmatprep.subr.mxu0 0.0
    %384 = vmatpush1.msra.mxu0 0.0
    %385 = vmatprep.subr.mxu0 0.0
    %386 = vmatpush1.msra.mxu0 0.0
    %387 = vmatprep.mubr.f32.mxu0 0.0
    %388 = vmatmul.mubr.f32.gmra.mrb[0].mxu0 %v321
    %v389 = vpop.f32.mrb[0].mxu0
    %v390 = vadd.f32 0.0, %v389
    %v391 = vpop.f32.mrb[0].mxu0
    %392 = vdwg.mxu0
    %v394 = vrot.slane %v390, 6
    %v396 = vadd.f32 %v148, %v394
    %v397 = vtanh.pop %v396
    %v399 = vrot.slane %v315, 6
    %400 = vrot.lane.b32.xlu0 %v399, 96
    %v401 = vpop.permute.xlu0 %400
    %v402 = vsel %vm74, %v401, 0
    %404 = vmatprep.subr.mxu0 0.0
    %405 = vmatpush1.msra.mxu0 %v160
    %406 = vmatprep.subr.mxu0 0.0
    %407 = vmatpush1.msra.mxu0 %v161
    %408 = vmatprep.subr.mxu0 0.0
    %409 = vmatpush1.msra.mxu0 %v162
    %410 = vmatprep.subr.mxu0 0.0
    %411 = vmatpush1.msra.mxu0 %v163
    %412 = vmatprep.subr.mxu0 0.0
    %413 = vmatpush1.msra.mxu0 0.0
    %414 = vmatprep.subr.mxu0 0.0
    %415 = vmatpush1.msra.mxu0 0.0
    %416 = vmatprep.subr.mxu0 0.0
    %417 = vmatpush1.msra.mxu0 0.0
    %418 = vmatprep.subr.mxu0 0.0
    %419 = vmatpush1.msra.mxu0 0.0
    %420 = vmatprep.subr.mxu0 0.0
    %421 = vmatpush1.msra.mxu0 0.0
    %422 = vmatprep.subr.mxu0 0.0
    %423 = vmatpush1.msra.mxu0 0.0
    %424 = vmatprep.subr.mxu0 0.0
    %425 = vmatpush1.msra.mxu0 0.0
    %426 = vmatprep.subr.mxu0 0.0
    %427 = vmatpush1.msra.mxu0 0.0
    %428 = vmatprep.subr.mxu0 0.0
    %429 = vmatpush1.msra.mxu0 0.0
    %430 = vmatprep.subr.mxu0 0.0
    %431 = vmatpush1.msra.mxu0 0.0
    %432 = vmatprep.subr.mxu0 0.0
    %433 = vmatpush1.msra.mxu0 0.0
    %434 = vmatprep.subr.mxu0 0.0
    %435 = vmatpush1.msra.mxu0 0.0
    %436 = vmatprep.subr.mxu0 0.0
    %437 = vmatpush1.msra.mxu0 0.0
    %438 = vmatprep.subr.mxu0 0.0
    %439 = vmatpush1.msra.mxu0 0.0
    %440 = vmatprep.subr.mxu0 0.0
    %441 = vmatpush1.msra.mxu0 0.0
    %442 = vmatprep.subr.mxu0 0.0
    %443 = vmatpush1.msra.mxu0 0.0
    %444 = vmatprep.subr.mxu0 0.0
    %445 = vmatpush1.msra.mxu0 0.0
    %446 = vmatprep.subr.mxu0 0.0
    %447 = vmatpush1.msra.mxu0 0.0
    %448 = vmatprep.subr.mxu0 0.0
    %449 = vmatpush1.msra.mxu0 0.0
    %450 = vmatprep.subr.mxu0 0.0
    %451 = vmatpush1.msra.mxu0 0.0
    %452 = vmatprep.subr.mxu0 0.0
    %453 = vmatpush1.msra.mxu0 0.0
    %454 = vmatprep.subr.mxu0 0.0
    %455 = vmatpush1.msra.mxu0 0.0
    %456 = vmatprep.subr.mxu0 0.0
    %457 = vmatpush1.msra.mxu0 0.0
    %458 = vmatprep.subr.mxu0 0.0
    %459 = vmatpush1.msra.mxu0 0.0
    %460 = vmatprep.subr.mxu0 0.0
    %461 = vmatpush1.msra.mxu0 0.0
    %462 = vmatprep.subr.mxu0 0.0
    %463 = vmatpush1.msra.mxu0 0.0
    %464 = vmatprep.subr.mxu0 0.0
    %465 = vmatpush1.msra.mxu0 0.0
    %466 = vmatprep.subr.mxu0 0.0
    %467 = vmatpush1.msra.mxu0 0.0
    %468 = vmatprep.mubr.f32.mxu0 0.0
    %469 = vmatmul.mubr.f32.gmra.mrb[0].mxu0 %v402
    %v470 = vpop.f32.mrb[0].mxu0
    %v471 = vadd.f32 0.0, %v470
    %v472 = vpop.f32.mrb[0].mxu0
    %473 = vdwg.mxu0
    %v475 = vrot.slane %v471, 4
    %476 = vrot.lane.b32.xlu0 %v475, 32
    %v477 = vpop.permute.xlu0 %476
    %v479 = vadd.f32 %v153, %v477
    %v480 = vtanh.pop %v479
    %vm481 = vcmask 257026
    %482 = vst.msk [vmem:[%s5] sm:$0xc] %vm481, %v397
    %vm483 = vcmask 521476
    %484 = vst.msk [vmem:[%s5 + $0x8] sm:$0x30] %vm483, %v480
    %v486 = vrot.slane %v397, 2
    %v487 = vsel %vm74, %v486, 0
    %489 = vmatprep.subr.mxu0 0.0
    %490 = vmatpush1.msra.mxu0 %v156
    %491 = vmatprep.subr.mxu0 0.0
    %492 = vmatpush1.msra.mxu0 %v157
    %493 = vmatprep.subr.mxu0 0.0
    %494 = vmatpush1.msra.mxu0 %v158
    %495 = vmatprep.subr.mxu0 0.0
    %496 = vmatpush1.msra.mxu0 %v159
    %497 = vmatprep.subr.mxu0 0.0
    %498 = vmatpush1.msra.mxu0 0.0
    %499 = vmatprep.subr.mxu0 0.0
    %500 = vmatpush1.msra.mxu0 0.0
    %501 = vmatprep.subr.mxu0 0.0
    %502 = vmatpush1.msra.mxu0 0.0
    %503 = vmatprep.subr.mxu0 0.0
    %504 = vmatpush1.msra.mxu0 0.0
    %505 = vmatprep.subr.mxu0 0.0
    %506 = vmatpush1.msra.mxu0 0.0
    %507 = vmatprep.subr.mxu0 0.0
    %508 = vmatpush1.msra.mxu0 0.0
    %509 = vmatprep.subr.mxu0 0.0
    %510 = vmatpush1.msra.mxu0 0.0
    %511 = vmatprep.subr.mxu0 0.0
    %512 = vmatpush1.msra.mxu0 0.0
    %513 = vmatprep.subr.mxu0 0.0
    %514 = vmatpush1.msra.mxu0 0.0
    %515 = vmatprep.subr.mxu0 0.0
    %516 = vmatpush1.msra.mxu0 0.0
    %517 = vmatprep.subr.mxu0 0.0
    %518 = vmatpush1.msra.mxu0 0.0
    %519 = vmatprep.subr.mxu0 0.0
    %520 = vmatpush1.msra.mxu0 0.0
    %521 = vmatprep.subr.mxu0 0.0
    %522 = vmatpush1.msra.mxu0 0.0
    %523 = vmatprep.subr.mxu0 0.0
    %524 = vmatpush1.msra.mxu0 0.0
    %525 = vmatprep.subr.mxu0 0.0
    %526 = vmatpush1.msra.mxu0 0.0
    %527 = vmatprep.subr.mxu0 0.0
    %528 = vmatpush1.msra.mxu0 0.0
    %529 = vmatprep.subr.mxu0 0.0
    %530 = vmatpush1.msra.mxu0 0.0
    %531 = vmatprep.subr.mxu0 0.0
    %532 = vmatpush1.msra.mxu0 0.0
    %533 = vmatprep.subr.mxu0 0.0
    %534 = vmatpush1.msra.mxu0 0.0
    %535 = vmatprep.subr.mxu0 0.0
    %536 = vmatpush1.msra.mxu0 0.0
    %537 = vmatprep.subr.mxu0 0.0
    %538 = vmatpush1.msra.mxu0 0.0
    %539 = vmatprep.subr.mxu0 0.0
    %540 = vmatpush1.msra.mxu0 0.0
    %541 = vmatprep.subr.mxu0 0.0
    %542 = vmatpush1.msra.mxu0 0.0
    %543 = vmatprep.subr.mxu0 0.0
    %544 = vmatpush1.msra.mxu0 0.0
    %545 = vmatprep.subr.mxu0 0.0
    %546 = vmatpush1.msra.mxu0 0.0
    %547 = vmatprep.subr.mxu0 0.0
    %548 = vmatpush1.msra.mxu0 0.0
    %549 = vmatprep.subr.mxu0 0.0
    %550 = vmatpush1.msra.mxu0 0.0
    %551 = vmatprep.subr.mxu0 0.0
    %552 = vmatpush1.msra.mxu0 0.0
    %553 = vmatprep.mubr.f32.mxu0 0.0
    %554 = vmatmul.mubr.f32.gmra.mrb[0].mxu0 %v487
    %v555 = vpop.f32.mrb[0].mxu0
    %v556 = vadd.f32 0.0, %v555
    %v557 = vpop.f32.mrb[0].mxu0
    %558 = vdwg.mxu0
    %v560 = vrot.slane %v556, 4
    %v562 = vadd.f32 %v148, %v560
    %v563 = vtanh.pop %v562
    %v565 = vrot.slane %v480, 4
    %566 = vrot.lane.b32.xlu0 %v565, 96
    %v567 = vpop.permute.xlu0 %566
    %v568 = vsel %vm74, %v567, 0
    %570 = vmatprep.subr.mxu0 0.0
    %571 = vmatpush1.msra.mxu0 %v160
    %572 = vmatprep.subr.mxu0 0.0
    %573 = vmatpush1.msra.mxu0 %v161
    %574 = vmatprep.subr.mxu0 0.0
    %575 = vmatpush1.msra.mxu0 %v162
    %576 = vmatprep.subr.mxu0 0.0
    %577 = vmatpush1.msra.mxu0 %v163
    %578 = vmatprep.subr.mxu0 0.0
    %579 = vmatpush1.msra.mxu0 0.0
    %580 = vmatprep.subr.mxu0 0.0
    %581 = vmatpush1.msra.mxu0 0.0
    %582 = vmatprep.subr.mxu0 0.0
    %583 = vmatpush1.msra.mxu0 0.0
    %584 = vmatprep.subr.mxu0 0.0
    %585 = vmatpush1.msra.mxu0 0.0
    %586 = vmatprep.subr.mxu0 0.0
    %587 = vmatpush1.msra.mxu0 0.0
    %588 = vmatprep.subr.mxu0 0.0
    %589 = vmatpush1.msra.mxu0 0.0
    %590 = vmatprep.subr.mxu0 0.0
    %591 = vmatpush1.msra.mxu0 0.0
    %592 = vmatprep.subr.mxu0 0.0
    %593 = vmatpush1.msra.mxu0 0.0
    %594 = vmatprep.subr.mxu0 0.0
    %595 = vmatpush1.msra.mxu0 0.0
    %596 = vmatprep.subr.mxu0 0.0
    %597 = vmatpush1.msra.mxu0 0.0
    %598 = vmatprep.subr.mxu0 0.0
    %599 = vmatpush1.msra.mxu0 0.0
    %600 = vmatprep.subr.mxu0 0.0
    %601 = vmatpush1.msra.mxu0 0.0
    %602 = vmatprep.subr.mxu0 0.0
    %603 = vmatpush1.msra.mxu0 0.0
    %604 = vmatprep.subr.mxu0 0.0
    %605 = vmatpush1.msra.mxu0 0.0
    %606 = vmatprep.subr.mxu0 0.0
    %607 = vmatpush1.msra.mxu0 0.0
    %608 = vmatprep.subr.mxu0 0.0
    %609 = vmatpush1.msra.mxu0 0.0
    %610 = vmatprep.subr.mxu0 0.0
    %611 = vmatpush1.msra.mxu0 0.0
    %612 = vmatprep.subr.mxu0 0.0
    %613 = vmatpush1.msra.mxu0 0.0
    %614 = vmatprep.subr.mxu0 0.0
    %615 = vmatpush1.msra.mxu0 0.0
    %616 = vmatprep.subr.mxu0 0.0
    %617 = vmatpush1.msra.mxu0 0.0
    %618 = vmatprep.subr.mxu0 0.0
    %619 = vmatpush1.msra.mxu0 0.0
    %620 = vmatprep.subr.mxu0 0.0
    %621 = vmatpush1.msra.mxu0 0.0
    %622 = vmatprep.subr.mxu0 0.0
    %623 = vmatpush1.msra.mxu0 0.0
    %624 = vmatprep.subr.mxu0 0.0
    %625 = vmatpush1.msra.mxu0 0.0
    %626 = vmatprep.subr.mxu0 0.0
    %627 = vmatpush1.msra.mxu0 0.0
    %628 = vmatprep.subr.mxu0 0.0
    %629 = vmatpush1.msra.mxu0 0.0
    %630 = vmatprep.subr.mxu0 0.0
    %631 = vmatpush1.msra.mxu0 0.0
    %632 = vmatprep.subr.mxu0 0.0
    %633 = vmatpush1.msra.mxu0 0.0
    %634 = vmatprep.mubr.f32.mxu0 0.0
    %635 = vmatmul.mubr.f32.gmra.mrb[0].mxu0 %v568
    %v636 = vpop.f32.mrb[0].mxu0
    %v637 = vadd.f32 0.0, %v636
    %v638 = vpop.f32.mrb[0].mxu0
    %639 = vdwg.mxu0
    %v641 = vrot.slane %v637, 6
    %642 = vrot.lane.b32.xlu0 %v641, 32
    %v643 = vpop.permute.xlu0 %642
    %v645 = vadd.f32 %v153, %v643
    %v646 = vtanh.pop %v645
    %vm647 = vcmask 259076
    %648 = vst.msk [vmem:[%s5] sm:$0x30] %vm647, %v563
    %vm649 = vcmask 519426
    %650 = vst.msk [vmem:[%s5 + $0x8] sm:$0xc] %vm649, %v646
    %v652 = vrot.slane %v563, 4
    %v653 = vsel %vm74, %v652, 0
    %655 = vmatprep.subr.mxu0 0.0
    %656 = vmatpush1.msra.mxu0 %v156
    %657 = vmatprep.subr.mxu0 0.0
    %658 = vmatpush1.msra.mxu0 %v157
    %659 = vmatprep.subr.mxu0 0.0
    %660 = vmatpush1.msra.mxu0 %v158
    %661 = vmatprep.subr.mxu0 0.0
    %662 = vmatpush1.msra.mxu0 %v159
    %663 = vmatprep.subr.mxu0 0.0
    %664 = vmatpush1.msra.mxu0 0.0
    %665 = vmatprep.subr.mxu0 0.0
    %666 = vmatpush1.msra.mxu0 0.0
    %667 = vmatprep.subr.mxu0 0.0
    %668 = vmatpush1.msra.mxu0 0.0
    %669 = vmatprep.subr.mxu0 0.0
    %670 = vmatpush1.msra.mxu0 0.0
    %671 = vmatprep.subr.mxu0 0.0
    %672 = vmatpush1.msra.mxu0 0.0
    %673 = vmatprep.subr.mxu0 0.0
    %674 = vmatpush1.msra.mxu0 0.0
    %675 = vmatprep.subr.mxu0 0.0
    %676 = vmatpush1.msra.mxu0 0.0
    %677 = vmatprep.subr.mxu0 0.0
    %678 = vmatpush1.msra.mxu0 0.0
    %679 = vmatprep.subr.mxu0 0.0
    %680 = vmatpush1.msra.mxu0 0.0
    %681 = vmatprep.subr.mxu0 0.0
    %682 = vmatpush1.msra.mxu0 0.0
    %683 = vmatprep.subr.mxu0 0.0
    %684 = vmatpush1.msra.mxu0 0.0
    %685 = vmatprep.subr.mxu0 0.0
    %686 = vmatpush1.msra.mxu0 0.0
    %687 = vmatprep.subr.mxu0 0.0
    %688 = vmatpush1.msra.mxu0 0.0
    %689 = vmatprep.subr.mxu0 0.0
    %690 = vmatpush1.msra.mxu0 0.0
    %691 = vmatprep.subr.mxu0 0.0
    %692 = vmatpush1.msra.mxu0 0.0
    %693 = vmatprep.subr.mxu0 0.0
    %694 = vmatpush1.msra.mxu0 0.0
    %695 = vmatprep.subr.mxu0 0.0
    %696 = vmatpush1.msra.mxu0 0.0
    %697 = vmatprep.subr.mxu0 0.0
    %698 = vmatpush1.msra.mxu0 0.0
    %699 = vmatprep.subr.mxu0 0.0
    %700 = vmatpush1.msra.mxu0 0.0
    %701 = vmatprep.subr.mxu0 0.0
    %702 = vmatpush1.msra.mxu0 0.0
    %703 = vmatprep.subr.mxu0 0.0
    %704 = vmatpush1.msra.mxu0 0.0
    %705 = vmatprep.subr.mxu0 0.0
    %706 = vmatpush1.msra.mxu0 0.0
    %707 = vmatprep.subr.mxu0 0.0
    %708 = vmatpush1.msra.mxu0 0.0
    %709 = vmatprep.subr.mxu0 0.0
    %710 = vmatpush1.msra.mxu0 0.0
    %711 = vmatprep.subr.mxu0 0.0
    %712 = vmatpush1.msra.mxu0 0.0
    %713 = vmatprep.subr.mxu0 0.0
    %714 = vmatpush1.msra.mxu0 0.0
    %715 = vmatprep.subr.mxu0 0.0
    %716 = vmatpush1.msra.mxu0 0.0
    %717 = vmatprep.subr.mxu0 0.0
    %718 = vmatpush1.msra.mxu0 0.0
    %719 = vmatprep.mubr.f32.mxu0 0.0
    %720 = vmatmul.mubr.f32.gmra.mrb[0].mxu0 %v653
    %v721 = vpop.f32.mrb[0].mxu0
    %v722 = vadd.f32 0.0, %v721
    %v723 = vpop.f32.mrb[0].mxu0
    %724 = vdwg.mxu0
    %v726 = vrot.slane %v722, 2
    %v728 = vadd.f32 %v148, %v726
    %v729 = vtanh.pop %v728
    %v731 = vrot.slane %v646, 2
    %732 = vrot.lane.b32.xlu0 %v731, 96
    %v733 = vpop.permute.xlu0 %732
    %v734 = vsel %vm74, %v733, 0
    %736 = vmatprep.subr.mxu0 0.0
    %737 = vmatpush1.msra.mxu0 %v160
    %738 = vmatprep.subr.mxu0 0.0
    %739 = vmatpush1.msra.mxu0 %v161
    %740 = vmatprep.subr.mxu0 0.0
    %741 = vmatpush1.msra.mxu0 %v162
    %742 = vmatprep.subr.mxu0 0.0
    %743 = vmatpush1.msra.mxu0 %v163
    %744 = vmatprep.subr.mxu0 0.0
    %745 = vmatpush1.msra.mxu0 0.0
    %746 = vmatprep.subr.mxu0 0.0
    %747 = vmatpush1.msra.mxu0 0.0
    %748 = vmatprep.subr.mxu0 0.0
    %749 = vmatpush1.msra.mxu0 0.0
    %750 = vmatprep.subr.mxu0 0.0
    %751 = vmatpush1.msra.mxu0 0.0
    %752 = vmatprep.subr.mxu0 0.0
    %753 = vmatpush1.msra.mxu0 0.0
    %754 = vmatprep.subr.mxu0 0.0
    %755 = vmatpush1.msra.mxu0 0.0
    %756 = vmatprep.subr.mxu0 0.0
    %757 = vmatpush1.msra.mxu0 0.0
    %758 = vmatprep.subr.mxu0 0.0
    %759 = vmatpush1.msra.mxu0 0.0
    %760 = vmatprep.subr.mxu0 0.0
    %761 = vmatpush1.msra.mxu0 0.0
    %762 = vmatprep.subr.mxu0 0.0
    %763 = vmatpush1.msra.mxu0 0.0
    %764 = vmatprep.subr.mxu0 0.0
    %765 = vmatpush1.msra.mxu0 0.0
    %766 = vmatprep.subr.mxu0 0.0
    %767 = vmatpush1.msra.mxu0 0.0
    %768 = vmatprep.subr.mxu0 0.0
    %769 = vmatpush1.msra.mxu0 0.0
    %770 = vmatprep.subr.mxu0 0.0
    %771 = vmatpush1.msra.mxu0 0.0
    %772 = vmatprep.subr.mxu0 0.0
    %773 = vmatpush1.msra.mxu0 0.0
    %774 = vmatprep.subr.mxu0 0.0
    %775 = vmatpush1.msra.mxu0 0.0
    %776 = vmatprep.subr.mxu0 0.0
    %777 = vmatpush1.msra.mxu0 0.0
    %778 = vmatprep.subr.mxu0 0.0
    %779 = vmatpush1.msra.mxu0 0.0
    %780 = vmatprep.subr.mxu0 0.0
    %781 = vmatpush1.msra.mxu0 0.0
    %782 = vmatprep.subr.mxu0 0.0
    %783 = vmatpush1.msra.mxu0 0.0
    %784 = vmatprep.subr.mxu0 0.0
    %785 = vmatpush1.msra.mxu0 0.0
    %786 = vmatprep.subr.mxu0 0.0
    %787 = vmatpush1.msra.mxu0 0.0
    %788 = vmatprep.subr.mxu0 0.0
    %789 = vmatpush1.msra.mxu0 0.0
    %790 = vmatprep.subr.mxu0 0.0
    %791 = vmatpush1.msra.mxu0 0.0
    %792 = vmatprep.subr.mxu0 0.0
    %793 = vmatpush1.msra.mxu0 0.0
    %794 = vmatprep.subr.mxu0 0.0
    %795 = vmatpush1.msra.mxu0 0.0
    %796 = vmatprep.subr.mxu0 0.0
    %797 = vmatpush1.msra.mxu0 0.0
    %798 = vmatprep.subr.mxu0 0.0
    %799 = vmatpush1.msra.mxu0 0.0
    %800 = vmatprep.mubr.f32.mxu0 0.0
    %801 = vmatmul.mubr.f32.gmra.mrb[0].mxu0 %v734
    %v802 = vpop.f32.mrb[0].mxu0
    %v803 = vadd.f32 0.0, %v802
    %v804 = vpop.f32.mrb[0].mxu0
    %805 = vdwg.mxu0
    %807 = vrot.lane.b32.xlu0 %v803, 32
    %v808 = vpop.permute.xlu0 %807
    %v810 = vadd.f32 %v153, %v808
    %v811 = vtanh.pop %v810
    %vm812 = vcmask 261126
    %813 = vst.msk [vmem:[%s5] sm:$0xc0] %vm812, %v729
    %vm814 = vcmask 517376
    %815 = vst.msk [vmem:[%s5 + $0x8] sm:$0x3] %vm814, %v811
    %v817 = vrot.slane %v729, 6
    %v818 = vsel %vm74, %v817, 0
    %820 = vmatprep.subr.mxu0 0.0
    %821 = vmatpush1.msra.mxu0 %v156
    %822 = vmatprep.subr.mxu0 0.0
    %823 = vmatpush1.msra.mxu0 %v157
    %824 = vmatprep.subr.mxu0 0.0
    %825 = vmatpush1.msra.mxu0 %v158
    %826 = vmatprep.subr.mxu0 0.0
    %827 = vmatpush1.msra.mxu0 %v159
    %828 = vmatprep.subr.mxu0 0.0
    %829 = vmatpush1.msra.mxu0 0.0
    %830 = vmatprep.subr.mxu0 0.0
    %831 = vmatpush1.msra.mxu0 0.0
    %832 = vmatprep.subr.mxu0 0.0
    %833 = vmatpush1.msra.mxu0 0.0
    %834 = vmatprep.subr.mxu0 0.0
    %835 = vmatpush1.msra.mxu0 0.0
    %836 = vmatprep.subr.mxu0 0.0
    %837 = vmatpush1.msra.mxu0 0.0
    %838 = vmatprep.subr.mxu0 0.0
    %839 = vmatpush1.msra.mxu0 0.0
    %840 = vmatprep.subr.mxu0 0.0
    %841 = vmatpush1.msra.mxu0 0.0
    %842 = vmatprep.subr.mxu0 0.0
    %843 = vmatpush1.msra.mxu0 0.0
    %844 = vmatprep.subr.mxu0 0.0
    %845 = vmatpush1.msra.mxu0 0.0
    %846 = vmatprep.subr.mxu0 0.0
    %847 = vmatpush1.msra.mxu0 0.0
    %848 = vmatprep.subr.mxu0 0.0
    %849 = vmatpush1.msra.mxu0 0.0
    %850 = vmatprep.subr.mxu0 0.0
    %851 = vmatpush1.msra.mxu0 0.0
    %852 = vmatprep.subr.mxu0 0.0
    %853 = vmatpush1.msra.mxu0 0.0
    %854 = vmatprep.subr.mxu0 0.0
    %855 = vmatpush1.msra.mxu0 0.0
    %856 = vmatprep.subr.mxu0 0.0
    %857 = vmatpush1.msra.mxu0 0.0
    %858 = vmatprep.subr.mxu0 0.0
    %859 = vmatpush1.msra.mxu0 0.0
    %860 = vmatprep.subr.mxu0 0.0
    %861 = vmatpush1.msra.mxu0 0.0
    %862 = vmatprep.subr.mxu0 0.0
    %863 = vmatpush1.msra.mxu0 0.0
    %864 = vmatprep.subr.mxu0 0.0
    %865 = vmatpush1.msra.mxu0 0.0
    %866 = vmatprep.subr.mxu0 0.0
    %867 = vmatpush1.msra.mxu0 0.0
    %868 = vmatprep.subr.mxu0 0.0
    %869 = vmatpush1.msra.mxu0 0.0
    %870 = vmatprep.subr.mxu0 0.0
    %871 = vmatpush1.msra.mxu0 0.0
    %872 = vmatprep.subr.mxu0 0.0
    %873 = vmatpush1.msra.mxu0 0.0
    %874 = vmatprep.subr.mxu0 0.0
    %875 = vmatpush1.msra.mxu0 0.0
    %876 = vmatprep.subr.mxu0 0.0
    %877 = vmatpush1.msra.mxu0 0.0
    %878 = vmatprep.subr.mxu0 0.0
    %879 = vmatpush1.msra.mxu0 0.0
    %880 = vmatprep.subr.mxu0 0.0
    %881 = vmatpush1.msra.mxu0 0.0
    %882 = vmatprep.subr.mxu0 0.0
    %883 = vmatpush1.msra.mxu0 0.0
    %884 = vmatprep.mubr.f32.mxu0 0.0
    %885 = vmatmul.mubr.f32.gmra.mrb[0].mxu0 %v818
    %v886 = vpop.f32.mrb[0].mxu0
    %v887 = vadd.f32 0.0, %v886
    %v888 = vpop.f32.mrb[0].mxu0
    %889 = vdwg.mxu0
    %v890 = vadd.f32 %v153, %v887
    %v891 = vtanh.pop %v890
    %893 = vrot.lane.b32.xlu0 %v811, 96
    %v894 = vpop.permute.xlu0 %893
    %v895 = vsel %vm74, %v894, 0
    %897 = vmatprep.subr.mxu0 0.0
    %898 = vmatpush1.msra.mxu0 %v160
    %899 = vmatprep.subr.mxu0 0.0
    %900 = vmatpush1.msra.mxu0 %v161
    %901 = vmatprep.subr.mxu0 0.0
    %902 = vmatpush1.msra.mxu0 %v162
    %903 = vmatprep.subr.mxu0 0.0
    %904 = vmatpush1.msra.mxu0 %v163
    %905 = vmatprep.subr.mxu0 0.0
    %906 = vmatpush1.msra.mxu0 0.0
    %907 = vmatprep.subr.mxu0 0.0
    %908 = vmatpush1.msra.mxu0 0.0
    %909 = vmatprep.subr.mxu0 0.0
    %910 = vmatpush1.msra.mxu0 0.0
    %911 = vmatprep.subr.mxu0 0.0
    %912 = vmatpush1.msra.mxu0 0.0
    %913 = vmatprep.subr.mxu0 0.0
    %914 = vmatpush1.msra.mxu0 0.0
    %915 = vmatprep.subr.mxu0 0.0
    %916 = vmatpush1.msra.mxu0 0.0
    %917 = vmatprep.subr.mxu0 0.0
    %918 = vmatpush1.msra.mxu0 0.0
    %919 = vmatprep.subr.mxu0 0.0
    %920 = vmatpush1.msra.mxu0 0.0
    %921 = vmatprep.subr.mxu0 0.0
    %922 = vmatpush1.msra.mxu0 0.0
    %923 = vmatprep.subr.mxu0 0.0
    %924 = vmatpush1.msra.mxu0 0.0
    %925 = vmatprep.subr.mxu0 0.0
    %926 = vmatpush1.msra.mxu0 0.0
    %927 = vmatprep.subr.mxu0 0.0
    %928 = vmatpush1.msra.mxu0 0.0
    %929 = vmatprep.subr.mxu0 0.0
    %930 = vmatpush1.msra.mxu0 0.0
    %931 = vmatprep.subr.mxu0 0.0
    %932 = vmatpush1.msra.mxu0 0.0
    %933 = vmatprep.subr.mxu0 0.0
    %934 = vmatpush1.msra.mxu0 0.0
    %935 = vmatprep.subr.mxu0 0.0
    %936 = vmatpush1.msra.mxu0 0.0
    %937 = vmatprep.subr.mxu0 0.0
    %938 = vmatpush1.msra.mxu0 0.0
    %939 = vmatprep.subr.mxu0 0.0
    %940 = vmatpush1.msra.mxu0 0.0
    %941 = vmatprep.subr.mxu0 0.0
    %942 = vmatpush1.msra.mxu0 0.0
    %943 = vmatprep.subr.mxu0 0.0
    %944 = vmatpush1.msra.mxu0 0.0
    %945 = vmatprep.subr.mxu0 0.0
    %946 = vmatpush1.msra.mxu0 0.0
    %947 = vmatprep.subr.mxu0 0.0
    %948 = vmatpush1.msra.mxu0 0.0
    %949 = vmatprep.subr.mxu0 0.0
    %950 = vmatpush1.msra.mxu0 0.0
    %951 = vmatprep.subr.mxu0 0.0
    %952 = vmatpush1.msra.mxu0 0.0
    %953 = vmatprep.subr.mxu0 0.0
    %954 = vmatpush1.msra.mxu0 0.0
    %955 = vmatprep.subr.mxu0 0.0
    %956 = vmatpush1.msra.mxu0 0.0
    %957 = vmatprep.subr.mxu0 0.0
    %958 = vmatpush1.msra.mxu0 0.0
    %959 = vmatprep.subr.mxu0 0.0
    %960 = vmatpush1.msra.mxu0 0.0
    %961 = vmatprep.mubr.f32.mxu0 0.0
    %962 = vmatmul.mubr.f32.gmra.mrb[0].mxu0 %v895
    %v963 = vpop.f32.mrb[0].mxu0
    %v964 = vadd.f32 0.0, %v963
    %v965 = vpop.f32.mrb[0].mxu0
    %966 = vdwg.mxu0
    %v968 = vrot.slane %v964, 2
    %969 = vrot.lane.b32.xlu0 %v968, 32
    %v970 = vpop.permute.xlu0 %969
    %v972 = vadd.f32 %v148, %v970
    %v973 = vtanh.pop %v972
    %974 = vst.msk [vmem:[%s5 + $0x8] sm:$0x3] %vm316, %v891
    %975 = vst.msk [vmem:[%s5] sm:$0xc0] %vm318, %v973
    %v977 = vsel %vm74, %v891, 0
    %979 = vmatprep.subr.mxu0 0.0
    %980 = vmatpush1.msra.mxu0 %v156
    %981 = vmatprep.subr.mxu0 0.0
    %982 = vmatpush1.msra.mxu0 %v157
    %983 = vmatprep.subr.mxu0 0.0
    %984 = vmatpush1.msra.mxu0 %v158
    %985 = vmatprep.subr.mxu0 0.0
    %986 = vmatpush1.msra.mxu0 %v159
    %987 = vmatprep.subr.mxu0 0.0
    %988 = vmatpush1.msra.mxu0 0.0
    %989 = vmatprep.subr.mxu0 0.0
    %990 = vmatpush1.msra.mxu0 0.0
    %991 = vmatprep.subr.mxu0 0.0
    %992 = vmatpush1.msra.mxu0 0.0
    %993 = vmatprep.subr.mxu0 0.0
    %994 = vmatpush1.msra.mxu0 0.0
    %995 = vmatprep.subr.mxu0 0.0
    %996 = vmatpush1.msra.mxu0 0.0
    %997 = vmatprep.subr.mxu0 0.0
    %998 = vmatpush1.msra.mxu0 0.0
    %999 = vmatprep.subr.mxu0 0.0
    %1000 = vmatpush1.msra.mxu0 0.0
    %1001 = vmatprep.subr.mxu0 0.0
    %1002 = vmatpush1.msra.mxu0 0.0
    %1003 = vmatprep.subr.mxu0 0.0
    %1004 = vmatpush1.msra.mxu0 0.0
    %1005 = vmatprep.subr.mxu0 0.0
    %1006 = vmatpush1.msra.mxu0 0.0
    %1007 = vmatprep.subr.mxu0 0.0
    %1008 = vmatpush1.msra.mxu0 0.0
    %1009 = vmatprep.subr.mxu0 0.0
    %1010 = vmatpush1.msra.mxu0 0.0
    %1011 = vmatprep.subr.mxu0 0.0
    %1012 = vmatpush1.msra.mxu0 0.0
    %1013 = vmatprep.subr.mxu0 0.0
    %1014 = vmatpush1.msra.mxu0 0.0
    %1015 = vmatprep.subr.mxu0 0.0
    %1016 = vmatpush1.msra.mxu0 0.0
    %1017 = vmatprep.subr.mxu0 0.0
    %1018 = vmatpush1.msra.mxu0 0.0
    %1019 = vmatprep.subr.mxu0 0.0
    %1020 = vmatpush1.msra.mxu0 0.0
    %1021 = vmatprep.subr.mxu0 0.0
    %1022 = vmatpush1.msra.mxu0 0.0
    %1023 = vmatprep.subr.mxu0 0.0
    %1024 = vmatpush1.msra.mxu0 0.0
    %1025 = vmatprep.subr.mxu0 0.0
    %1026 = vmatpush1.msra.mxu0 0.0
    %1027 = vmatprep.subr.mxu0 0.0
    %1028 = vmatpush1.msra.mxu0 0.0
    %1029 = vmatprep.subr.mxu0 0.0
    %1030 = vmatpush1.msra.mxu0 0.0
    %1031 = vmatprep.subr.mxu0 0.0
    %1032 = vmatpush1.msra.mxu0 0.0
    %1033 = vmatprep.subr.mxu0 0.0
    %1034 = vmatpush1.msra.mxu0 0.0
    %1035 = vmatprep.subr.mxu0 0.0
    %1036 = vmatpush1.msra.mxu0 0.0
    %1037 = vmatprep.subr.mxu0 0.0
    %1038 = vmatpush1.msra.mxu0 0.0
    %1039 = vmatprep.subr.mxu0 0.0
    %1040 = vmatpush1.msra.mxu0 0.0
    %1041 = vmatprep.subr.mxu0 0.0
    %1042 = vmatpush1.msra.mxu0 0.0
    %1043 = vmatprep.mubr.f32.mxu0 0.0
    %1044 = vmatmul.mubr.f32.gmra.mrb[0].mxu0 %v977
    %v1045 = vpop.f32.mrb[0].mxu0
    %v1046 = vadd.f32 0.0, %v1045
    %v1047 = vpop.f32.mrb[0].mxu0
    %1048 = vdwg.mxu0
    %v1050 = vrot.slane %v1046, 6
    %v1052 = vadd.f32 %v153, %v1050
    %v1053 = vtanh.pop %v1052
    %v1055 = vrot.slane %v973, 6
    %1056 = vrot.lane.b32.xlu0 %v1055, 96
    %v1057 = vpop.permute.xlu0 %1056
    %v1058 = vsel %vm74, %v1057, 0
    %1060 = vmatprep.subr.mxu0 0.0
    %1061 = vmatpush1.msra.mxu0 %v160
    %1062 = vmatprep.subr.mxu0 0.0
    %1063 = vmatpush1.msra.mxu0 %v161
    %1064 = vmatprep.subr.mxu0 0.0
    %1065 = vmatpush1.msra.mxu0 %v162
    %1066 = vmatprep.subr.mxu0 0.0
    %1067 = vmatpush1.msra.mxu0 %v163
    %1068 = vmatprep.subr.mxu0 0.0
    %1069 = vmatpush1.msra.mxu0 0.0
    %1070 = vmatprep.subr.mxu0 0.0
    %1071 = vmatpush1.msra.mxu0 0.0
    %1072 = vmatprep.subr.mxu0 0.0
    %1073 = vmatpush1.msra.mxu0 0.0
    %1074 = vmatprep.subr.mxu0 0.0
    %1075 = vmatpush1.msra.mxu0 0.0
    %1076 = vmatprep.subr.mxu0 0.0
    %1077 = vmatpush1.msra.mxu0 0.0
    %1078 = vmatprep.subr.mxu0 0.0
    %1079 = vmatpush1.msra.mxu0 0.0
    %1080 = vmatprep.subr.mxu0 0.0
    %1081 = vmatpush1.msra.mxu0 0.0
    %1082 = vmatprep.subr.mxu0 0.0
    %1083 = vmatpush1.msra.mxu0 0.0
    %1084 = vmatprep.subr.mxu0 0.0
    %1085 = vmatpush1.msra.mxu0 0.0
    %1086 = vmatprep.subr.mxu0 0.0
    %1087 = vmatpush1.msra.mxu0 0.0
    %1088 = vmatprep.subr.mxu0 0.0
    %1089 = vmatpush1.msra.mxu0 0.0
    %1090 = vmatprep.subr.mxu0 0.0
    %1091 = vmatpush1.msra.mxu0 0.0
    %1092 = vmatprep.subr.mxu0 0.0
    %1093 = vmatpush1.msra.mxu0 0.0
    %1094 = vmatprep.subr.mxu0 0.0
    %1095 = vmatpush1.msra.mxu0 0.0
    %1096 = vmatprep.subr.mxu0 0.0
    %1097 = vmatpush1.msra.mxu0 0.0
    %1098 = vmatprep.subr.mxu0 0.0
    %1099 = vmatpush1.msra.mxu0 0.0
    %1100 = vmatprep.subr.mxu0 0.0
    %1101 = vmatpush1.msra.mxu0 0.0
    %1102 = vmatprep.subr.mxu0 0.0
    %1103 = vmatpush1.msra.mxu0 0.0
    %1104 = vmatprep.subr.mxu0 0.0
    %1105 = vmatpush1.msra.mxu0 0.0
    %1106 = vmatprep.subr.mxu0 0.0
    %1107 = vmatpush1.msra.mxu0 0.0
    %1108 = vmatprep.subr.mxu0 0.0
    %1109 = vmatpush1.msra.mxu0 0.0
    %1110 = vmatprep.subr.mxu0 0.0
    %1111 = vmatpush1.msra.mxu0 0.0
    %1112 = vmatprep.subr.mxu0 0.0
    %1113 = vmatpush1.msra.mxu0 0.0
    %1114 = vmatprep.subr.mxu0 0.0
    %1115 = vmatpush1.msra.mxu0 0.0
    %1116 = vmatprep.subr.mxu0 0.0
    %1117 = vmatpush1.msra.mxu0 0.0
    %1118 = vmatprep.subr.mxu0 0.0
    %1119 = vmatpush1.msra.mxu0 0.0
    %1120 = vmatprep.subr.mxu0 0.0
    %1121 = vmatpush1.msra.mxu0 0.0
    %1122 = vmatprep.subr.mxu0 0.0
    %1123 = vmatpush1.msra.mxu0 0.0
    %1124 = vmatprep.mubr.f32.mxu0 0.0
    %1125 = vmatmul.mubr.f32.gmra.mrb[0].mxu0 %v1058
    %v1126 = vpop.f32.mrb[0].mxu0
    %v1127 = vadd.f32 0.0, %v1126
    %v1128 = vpop.f32.mrb[0].mxu0
    %1129 = vdwg.mxu0
    %v1131 = vrot.slane %v1127, 4
    %1132 = vrot.lane.b32.xlu0 %v1131, 32
    %v1133 = vpop.permute.xlu0 %1132
    %v1135 = vadd.f32 %v148, %v1133
    %v1136 = vtanh.pop %v1135
    %1137 = vst.msk [vmem:[%s5 + $0x8] sm:$0xc] %vm481, %v1053
    %1138 = vst.msk [vmem:[%s5] sm:$0x30] %vm483, %v1136
    %v1140 = vrot.slane %v1053, 2
    %v1141 = vsel %vm74, %v1140, 0
    %1143 = vmatprep.subr.mxu0 0.0
    %1144 = vmatpush1.msra.mxu0 %v156
    %1145 = vmatprep.subr.mxu0 0.0
    %1146 = vmatpush1.msra.mxu0 %v157
    %1147 = vmatprep.subr.mxu0 0.0
    %1148 = vmatpush1.msra.mxu0 %v158
    %1149 = vmatprep.subr.mxu0 0.0
    %1150 = vmatpush1.msra.mxu0 %v159
    %1151 = vmatprep.subr.mxu0 0.0
    %1152 = vmatpush1.msra.mxu0 0.0
    %1153 = vmatprep.subr.mxu0 0.0
    %1154 = vmatpush1.msra.mxu0 0.0
    %1155 = vmatprep.subr.mxu0 0.0
    %1156 = vmatpush1.msra.mxu0 0.0
    %1157 = vmatprep.subr.mxu0 0.0
    %1158 = vmatpush1.msra.mxu0 0.0
    %1159 = vmatprep.subr.mxu0 0.0
    %1160 = vmatpush1.msra.mxu0 0.0
    %1161 = vmatprep.subr.mxu0 0.0
    %1162 = vmatpush1.msra.mxu0 0.0
    %1163 = vmatprep.subr.mxu0 0.0
    %1164 = vmatpush1.msra.mxu0 0.0
    %1165 = vmatprep.subr.mxu0 0.0
    %1166 = vmatpush1.msra.mxu0 0.0
    %1167 = vmatprep.subr.mxu0 0.0
    %1168 = vmatpush1.msra.mxu0 0.0
    %1169 = vmatprep.subr.mxu0 0.0
    %1170 = vmatpush1.msra.mxu0 0.0
    %1171 = vmatprep.subr.mxu0 0.0
    %1172 = vmatpush1.msra.mxu0 0.0
    %1173 = vmatprep.subr.mxu0 0.0
    %1174 = vmatpush1.msra.mxu0 0.0
    %1175 = vmatprep.subr.mxu0 0.0
    %1176 = vmatpush1.msra.mxu0 0.0
    %1177 = vmatprep.subr.mxu0 0.0
    %1178 = vmatpush1.msra.mxu0 0.0
    %1179 = vmatprep.subr.mxu0 0.0
    %1180 = vmatpush1.msra.mxu0 0.0
    %1181 = vmatprep.subr.mxu0 0.0
    %1182 = vmatpush1.msra.mxu0 0.0
    %1183 = vmatprep.subr.mxu0 0.0
    %1184 = vmatpush1.msra.mxu0 0.0
    %1185 = vmatprep.subr.mxu0 0.0
    %1186 = vmatpush1.msra.mxu0 0.0
    %1187 = vmatprep.subr.mxu0 0.0
    %1188 = vmatpush1.msra.mxu0 0.0
    %1189 = vmatprep.subr.mxu0 0.0
    %1190 = vmatpush1.msra.mxu0 0.0
    %1191 = vmatprep.subr.mxu0 0.0
    %1192 = vmatpush1.msra.mxu0 0.0
    %1193 = vmatprep.subr.mxu0 0.0
    %1194 = vmatpush1.msra.mxu0 0.0
    %1195 = vmatprep.subr.mxu0 0.0
    %1196 = vmatpush1.msra.mxu0 0.0
    %1197 = vmatprep.subr.mxu0 0.0
    %1198 = vmatpush1.msra.mxu0 0.0
    %1199 = vmatprep.subr.mxu0 0.0
    %1200 = vmatpush1.msra.mxu0 0.0
    %1201 = vmatprep.subr.mxu0 0.0
    %1202 = vmatpush1.msra.mxu0 0.0
    %1203 = vmatprep.subr.mxu0 0.0
    %1204 = vmatpush1.msra.mxu0 0.0
    %1205 = vmatprep.subr.mxu0 0.0
    %1206 = vmatpush1.msra.mxu0 0.0
    %1207 = vmatprep.mubr.f32.mxu0 0.0
    %1208 = vmatmul.mubr.f32.gmra.mrb[0].mxu0 %v1141
    %v1209 = vpop.f32.mrb[0].mxu0
    %v1210 = vadd.f32 0.0, %v1209
    %v1211 = vpop.f32.mrb[0].mxu0
    %1212 = vdwg.mxu0
    %v1214 = vrot.slane %v1210, 4
    %v1216 = vadd.f32 %v153, %v1214
    %v1217 = vtanh.pop %v1216
    %v1219 = vrot.slane %v1136, 4
    %1220 = vrot.lane.b32.xlu0 %v1219, 96
    %v1221 = vpop.permute.xlu0 %1220
    %v1222 = vsel %vm74, %v1221, 0
    %1224 = vmatprep.subr.mxu0 0.0
    %1225 = vmatpush1.msra.mxu0 %v160
    %1226 = vmatprep.subr.mxu0 0.0
    %1227 = vmatpush1.msra.mxu0 %v161
    %1228 = vmatprep.subr.mxu0 0.0
    %1229 = vmatpush1.msra.mxu0 %v162
    %1230 = vmatprep.subr.mxu0 0.0
    %1231 = vmatpush1.msra.mxu0 %v163
    %1232 = vmatprep.subr.mxu0 0.0
    %1233 = vmatpush1.msra.mxu0 0.0
    %1234 = vmatprep.subr.mxu0 0.0
    %1235 = vmatpush1.msra.mxu0 0.0
    %1236 = vmatprep.subr.mxu0 0.0
    %1237 = vmatpush1.msra.mxu0 0.0
    %1238 = vmatprep.subr.mxu0 0.0
    %1239 = vmatpush1.msra.mxu0 0.0
    %1240 = vmatprep.subr.mxu0 0.0
    %1241 = vmatpush1.msra.mxu0 0.0
    %1242 = vmatprep.subr.mxu0 0.0
    %1243 = vmatpush1.msra.mxu0 0.0
    %1244 = vmatprep.subr.mxu0 0.0
    %1245 = vmatpush1.msra.mxu0 0.0
    %1246 = vmatprep.subr.mxu0 0.0
    %1247 = vmatpush1.msra.mxu0 0.0
    %1248 = vmatprep.subr.mxu0 0.0
    %1249 = vmatpush1.msra.mxu0 0.0
    %1250 = vmatprep.subr.mxu0 0.0
    %1251 = vmatpush1.msra.mxu0 0.0
    %1252 = vmatprep.subr.mxu0 0.0
    %1253 = vmatpush1.msra.mxu0 0.0
    %1254 = vmatprep.subr.mxu0 0.0
    %1255 = vmatpush1.msra.mxu0 0.0
    %1256 = vmatprep.subr.mxu0 0.0
    %1257 = vmatpush1.msra.mxu0 0.0
    %1258 = vmatprep.subr.mxu0 0.0
    %1259 = vmatpush1.msra.mxu0 0.0
    %1260 = vmatprep.subr.mxu0 0.0
    %1261 = vmatpush1.msra.mxu0 0.0
    %1262 = vmatprep.subr.mxu0 0.0
    %1263 = vmatpush1.msra.mxu0 0.0
    %1264 = vmatprep.subr.mxu0 0.0
    %1265 = vmatpush1.msra.mxu0 0.0
    %1266 = vmatprep.subr.mxu0 0.0
    %1267 = vmatpush1.msra.mxu0 0.0
    %1268 = vmatprep.subr.mxu0 0.0
    %1269 = vmatpush1.msra.mxu0 0.0
    %1270 = vmatprep.subr.mxu0 0.0
    %1271 = vmatpush1.msra.mxu0 0.0
    %1272 = vmatprep.subr.mxu0 0.0
    %1273 = vmatpush1.msra.mxu0 0.0
    %1274 = vmatprep.subr.mxu0 0.0
    %1275 = vmatpush1.msra.mxu0 0.0
    %1276 = vmatprep.subr.mxu0 0.0
    %1277 = vmatpush1.msra.mxu0 0.0
    %1278 = vmatprep.subr.mxu0 0.0
    %1279 = vmatpush1.msra.mxu0 0.0
    %1280 = vmatprep.subr.mxu0 0.0
    %1281 = vmatpush1.msra.mxu0 0.0
    %1282 = vmatprep.subr.mxu0 0.0
    %1283 = vmatpush1.msra.mxu0 0.0
    %1284 = vmatprep.subr.mxu0 0.0
    %1285 = vmatpush1.msra.mxu0 0.0
    %1286 = vmatprep.subr.mxu0 0.0
    %1287 = vmatpush1.msra.mxu0 0.0
    %1288 = vmatprep.mubr.f32.mxu0 0.0
    %1289 = vmatmul.mubr.f32.gmra.mrb[0].mxu0 %v1222
    %v1290 = vpop.f32.mrb[0].mxu0
    %v1291 = vadd.f32 0.0, %v1290
    %v1292 = vpop.f32.mrb[0].mxu0
    %1293 = vdwg.mxu0
    %v1295 = vrot.slane %v1291, 6
    %1296 = vrot.lane.b32.xlu0 %v1295, 32
    %v1297 = vpop.permute.xlu0 %1296
    %v1299 = vadd.f32 %v148, %v1297
    %v1300 = vtanh.pop %v1299
    %1301 = vst.msk [vmem:[%s5 + $0x8] sm:$0x30] %vm647, %v1217
    %1302 = vst.msk [vmem:[%s5] sm:$0xc] %vm649, %v1300
    %v1304 = vrot.slane %v1217, 4
    %v1305 = vsel %vm74, %v1304, 0
    %1307 = vmatprep.subr.mxu0 0.0
    %1308 = vmatpush1.msra.mxu0 %v156
    %1309 = vmatprep.subr.mxu0 0.0
    %1310 = vmatpush1.msra.mxu0 %v157
    %1311 = vmatprep.subr.mxu0 0.0
    %1312 = vmatpush1.msra.mxu0 %v158
    %1313 = vmatprep.subr.mxu0 0.0
    %1314 = vmatpush1.msra.mxu0 %v159
    %1315 = vmatprep.subr.mxu0 0.0
    %1316 = vmatpush1.msra.mxu0 0.0
    %1317 = vmatprep.subr.mxu0 0.0
    %1318 = vmatpush1.msra.mxu0 0.0
    %1319 = vmatprep.subr.mxu0 0.0
    %1320 = vmatpush1.msra.mxu0 0.0
    %1321 = vmatprep.subr.mxu0 0.0
    %1322 = vmatpush1.msra.mxu0 0.0
    %1323 = vmatprep.subr.mxu0 0.0
    %1324 = vmatpush1.msra.mxu0 0.0
    %1325 = vmatprep.subr.mxu0 0.0
    %1326 = vmatpush1.msra.mxu0 0.0
    %1327 = vmatprep.subr.mxu0 0.0
    %1328 = vmatpush1.msra.mxu0 0.0
    %1329 = vmatprep.subr.mxu0 0.0
    %1330 = vmatpush1.msra.mxu0 0.0
    %1331 = vmatprep.subr.mxu0 0.0
    %1332 = vmatpush1.msra.mxu0 0.0
    %1333 = vmatprep.subr.mxu0 0.0
    %1334 = vmatpush1.msra.mxu0 0.0
    %1335 = vmatprep.subr.mxu0 0.0
    %1336 = vmatpush1.msra.mxu0 0.0
    %1337 = vmatprep.subr.mxu0 0.0
    %1338 = vmatpush1.msra.mxu0 0.0
    %1339 = vmatprep.subr.mxu0 0.0
    %1340 = vmatpush1.msra.mxu0 0.0
    %1341 = vmatprep.subr.mxu0 0.0
    %1342 = vmatpush1.msra.mxu0 0.0
    %1343 = vmatprep.subr.mxu0 0.0
    %1344 = vmatpush1.msra.mxu0 0.0
    %1345 = vmatprep.subr.mxu0 0.0
    %1346 = vmatpush1.msra.mxu0 0.0
    %1347 = vmatprep.subr.mxu0 0.0
    %1348 = vmatpush1.msra.mxu0 0.0
    %1349 = vmatprep.subr.mxu0 0.0
    %1350 = vmatpush1.msra.mxu0 0.0
    %1351 = vmatprep.subr.mxu0 0.0
    %1352 = vmatpush1.msra.mxu0 0.0
    %1353 = vmatprep.subr.mxu0 0.0
    %1354 = vmatpush1.msra.mxu0 0.0
    %1355 = vmatprep.subr.mxu0 0.0
    %1356 = vmatpush1.msra.mxu0 0.0
    %1357 = vmatprep.subr.mxu0 0.0
    %1358 = vmatpush1.msra.mxu0 0.0
    %1359 = vmatprep.subr.mxu0 0.0
    %1360 = vmatpush1.msra.mxu0 0.0
    %1361 = vmatprep.subr.mxu0 0.0
    %1362 = vmatpush1.msra.mxu0 0.0
    %1363 = vmatprep.subr.mxu0 0.0
    %1364 = vmatpush1.msra.mxu0 0.0
    %1365 = vmatprep.subr.mxu0 0.0
    %1366 = vmatpush1.msra.mxu0 0.0
    %1367 = vmatprep.subr.mxu0 0.0
    %1368 = vmatpush1.msra.mxu0 0.0
    %1369 = vmatprep.subr.mxu0 0.0
    %1370 = vmatpush1.msra.mxu0 0.0
    %1371 = vmatprep.mubr.f32.mxu0 0.0
    %1372 = vmatmul.mubr.f32.gmra.mrb[0].mxu0 %v1305
    %v1373 = vpop.f32.mrb[0].mxu0
    %v1374 = vadd.f32 0.0, %v1373
    %v1375 = vpop.f32.mrb[0].mxu0
    %1376 = vdwg.mxu0
    %v1378 = vrot.slane %v1374, 2
    %v1380 = vadd.f32 %v153, %v1378
    %v1381 = vtanh.pop %v1380
    %v1383 = vrot.slane %v1300, 2
    %1384 = vrot.lane.b32.xlu0 %v1383, 96
    %v1385 = vpop.permute.xlu0 %1384
    %v1386 = vsel %vm74, %v1385, 0
    %1388 = vmatprep.subr.mxu0 0.0
    %1389 = vmatpush1.msra.mxu0 %v160
    %1390 = vmatprep.subr.mxu0 0.0
    %1391 = vmatpush1.msra.mxu0 %v161
    %1392 = vmatprep.subr.mxu0 0.0
    %1393 = vmatpush1.msra.mxu0 %v162
    %1394 = vmatprep.subr.mxu0 0.0
    %1395 = vmatpush1.msra.mxu0 %v163
    %1396 = vmatprep.subr.mxu0 0.0
    %1397 = vmatpush1.msra.mxu0 0.0
    %1398 = vmatprep.subr.mxu0 0.0
    %1399 = vmatpush1.msra.mxu0 0.0
    %1400 = vmatprep.subr.mxu0 0.0
    %1401 = vmatpush1.msra.mxu0 0.0
    %1402 = vmatprep.subr.mxu0 0.0
    %1403 = vmatpush1.msra.mxu0 0.0
    %1404 = vmatprep.subr.mxu0 0.0
    %1405 = vmatpush1.msra.mxu0 0.0
    %1406 = vmatprep.subr.mxu0 0.0
    %1407 = vmatpush1.msra.mxu0 0.0
    %1408 = vmatprep.subr.mxu0 0.0
    %1409 = vmatpush1.msra.mxu0 0.0
    %1410 = vmatprep.subr.mxu0 0.0
    %1411 = vmatpush1.msra.mxu0 0.0
    %1412 = vmatprep.subr.mxu0 0.0
    %1413 = vmatpush1.msra.mxu0 0.0
    %1414 = vmatprep.subr.mxu0 0.0
    %1415 = vmatpush1.msra.mxu0 0.0
    %1416 = vmatprep.subr.mxu0 0.0
    %1417 = vmatpush1.msra.mxu0 0.0
    %1418 = vmatprep.subr.mxu0 0.0
    %1419 = vmatpush1.msra.mxu0 0.0
    %1420 = vmatprep.subr.mxu0 0.0
    %1421 = vmatpush1.msra.mxu0 0.0
    %1422 = vmatprep.subr.mxu0 0.0
    %1423 = vmatpush1.msra.mxu0 0.0
    %1424 = vmatprep.subr.mxu0 0.0
    %1425 = vmatpush1.msra.mxu0 0.0
    %1426 = vmatprep.subr.mxu0 0.0
    %1427 = vmatpush1.msra.mxu0 0.0
    %1428 = vmatprep.subr.mxu0 0.0
    %1429 = vmatpush1.msra.mxu0 0.0
    %1430 = vmatprep.subr.mxu0 0.0
    %1431 = vmatpush1.msra.mxu0 0.0
    %1432 = vmatprep.subr.mxu0 0.0
    %1433 = vmatpush1.msra.mxu0 0.0
    %1434 = vmatprep.subr.mxu0 0.0
    %1435 = vmatpush1.msra.mxu0 0.0
    %1436 = vmatprep.subr.mxu0 0.0
    %1437 = vmatpush1.msra.mxu0 0.0
    %1438 = vmatprep.subr.mxu0 0.0
    %1439 = vmatpush1.msra.mxu0 0.0
    %1440 = vmatprep.subr.mxu0 0.0
    %1441 = vmatpush1.msra.mxu0 0.0
    %1442 = vmatprep.subr.mxu0 0.0
    %1443 = vmatpush1.msra.mxu0 0.0
    %1444 = vmatprep.subr.mxu0 0.0
    %1445 = vmatpush1.msra.mxu0 0.0
    %1446 = vmatprep.subr.mxu0 0.0
    %1447 = vmatpush1.msra.mxu0 0.0
    %1448 = vmatprep.subr.mxu0 0.0
    %1449 = vmatpush1.msra.mxu0 0.0
    %1450 = vmatprep.subr.mxu0 0.0
    %1451 = vmatpush1.msra.mxu0 0.0
    %1452 = vmatprep.mubr.f32.mxu0 0.0
    %1453 = vmatmul.mubr.f32.gmra.mrb[0].mxu0 %v1386
    %v1454 = vpop.f32.mrb[0].mxu0
    %v1455 = vadd.f32 0.0, %v1454
    %v1456 = vpop.f32.mrb[0].mxu0
    %1457 = vdwg.mxu0
    %1459 = vrot.lane.b32.xlu0 %v1455, 32
    %v1460 = vpop.permute.xlu0 %1459
    %v1462 = vadd.f32 %v148, %v1460
    %v1463 = vtanh.pop %v1462
    %1464 = vst.msk [vmem:[%s5 + $0x8] sm:$0xc0] %vm812, %v1381
    %1465 = vst.msk [vmem:[%s5] sm:$0x3] %vm814, %v1463
    // Predicated region
    $region34: #{ner_forward.3} parent=1 // pred_check
      _
    $region35: #{ner_forward.3} parent=1 // pred_check_branch
      %1467 = sbr.rel (0) target = $region37
    $region36: #{ner_forward.3} parent=1 // pred_region
      _
    $region37: #{ner_forward.3} parent=1 // pred_fallthru
      _
    // Predicated region
    $region38: #{ner_forward.3} parent=1 // pred_check
      _
    $region39: #{ner_forward.3} parent=1 // pred_check_branch
      %1469 = sbr.rel (0) target = $region41
    $region40: #{ner_forward.3} parent=1 // pred_region
      _
    $region41: #{ner_forward.3} parent=1 // pred_fallthru
      _
    %1470 = vsyncpa [#allocation3], 1
    %1471 = vsyncpa [#allocation5], 1

// kernel: ner_forward.4
$region0: #{ner_forward.4}
  #allocation0 [shape = 'u32[]', space=smem, size = 0x4, offset = 0x4, fixed_abs, tag = 'smem constant byte address 0x4 - core index']
  #allocation1 [shape = 'u32[144,128]{1,0:T(1,128)}', space=vmem, size = 0x12000, scoped, tag = 'internal scratch']
  %s0 = inlined_call_operand.vmem [shape: f32[16,64], index: 0, kind: input, shape index: {}]
  %s1 = inlined_call_operand.vmem [shape: f32[64,64], index: 1, kind: input, shape index: {}]
  %s2 = inlined_call_operand.vmem [shape: f32[1,64], index: 2, kind: input, shape index: {}]
  %s3 = inlined_call_operand.hbm [shape: f32[32,32], index: 3, kind: input, shape index: {}]
  %s4 = inlined_call_operand.hbm [shape: f32[32,32], index: 4, kind: input, shape index: {}]
  %s5 = inlined_call_operand.vmem [shape: f32[16,64], index: 5, kind: output, shape index: {}]
  %s6 = sld [smem:[#allocation0]]
  $region38: #{ner_forward.4} parent=0
    _
  %s8 = ssub.s32 1, %s6
  %s9 = scalar_select 0, %s8, %s6
  $region1: #{ner_forward.4} parent=0
    #allocation2 [shape = 'u8[16384]{0}', space=vmem, size = 0x4000, scoped, tag = 'input window, operand 3, single buffered']
    #allocation3 [shape = 's32[1]{0}', space=sflag, size = 0x4, scoped, tag = 'scoped memory for ner_forward.4']
    #allocation4 [shape = 'u8[16384]{0}', space=vmem, size = 0x4000, scoped, tag = 'input window, operand 4, single buffered']
    #allocation5 [shape = 's32[1]{0}', space=sflag, size = 0x4, scoped, tag = 'scoped memory for ner_forward.4']
    %10 = vsyncpa [#allocation3], 0
    %11 = vsyncpa [#allocation5], 0
    // Predicated region
    $region2: #{ner_forward.4} parent=1 // pred_check
      _
    $region3: #{ner_forward.4} parent=1 // pred_check_branch
      %13 = sbr.rel (0) target = $region5
    $region4: #{ner_forward.4} parent=1 // pred_region
      _
    $region5: #{ner_forward.4} parent=1 // pred_fallthru
      _
    // Predicated region
    $region6: #{ner_forward.4} parent=1 // pred_check
      _
    $region7: #{ner_forward.4} parent=1 // pred_check_branch
      %15 = sbr.rel (0) target = $region9
    $region8: #{ner_forward.4} parent=1 // pred_region
      _
    $region9: #{ner_forward.4} parent=1 // pred_fallthru
      _
    // Predicated region
    $region10: #{ner_forward.4} parent=1 // pred_check
      _
    $region11: #{ner_forward.4} parent=1 // pred_check_branch
      %17 = sbr.rel (0) target = $region13
    $region12: #{ner_forward.4} parent=1 // pred_region
      _
    $region13: #{ner_forward.4} parent=1 // pred_fallthru
      _
    // Predicated region
    $region14: #{ner_forward.4} parent=1 // pred_check
      _
    $region15: #{ner_forward.4} parent=1 // pred_check_branch
      %19 = sbr.rel (0) target = $region17
    $region16: #{ner_forward.4} parent=1 // pred_region
      %s21 = ssub.s32 512, 512
      %22 = vsyncadd [#allocation3], %s21
      %s23 = sshll.u32 [#allocation2], 4
      %s24 = int_to_ptr.vmem [resolvable:$true] %s23
      %29 = dma.hbm_to_vmem [thread:$0]  %s3, 512, %s24, [#allocation3], 128, 128, 8
    $region17: #{ner_forward.4} parent=1 // pred_fallthru
      _
    // Predicated region
    $region18: #{ner_forward.4} parent=1 // pred_check
      _
    $region19: #{ner_forward.4} parent=1 // pred_check_branch
      %31 = sbr.rel (0) target = $region21
    $region20: #{ner_forward.4} parent=1 // pred_region
      %s33 = ssub.s32 512, 512
      %34 = vsyncadd [#allocation5], %s33
      %s35 = sshll.u32 [#allocation4], 4
      %s36 = int_to_ptr.vmem [resolvable:$true] %s35
      %41 = dma.hbm_to_vmem [thread:$0]  %s4, 512, %s36, [#allocation5], 128, 128, 8
    $region21: #{ner_forward.4} parent=1 // pred_fallthru
      _
    // Predicated region
    $region22: #{ner_forward.4} parent=1 // pred_check
      _
    $region23: #{ner_forward.4} parent=1 // pred_check_branch
      %43 = sbr.rel (0) target = $region25
    $region24: #{ner_forward.4} parent=1 // pred_region
      %44 = dma.done [#allocation3], 512
    $region25: #{ner_forward.4} parent=1 // pred_fallthru
      _
    // Predicated region
    $region26: #{ner_forward.4} parent=1 // pred_check
      _
    $region27: #{ner_forward.4} parent=1 // pred_check_branch
      %46 = sbr.rel (0) target = $region29
    $region28: #{ner_forward.4} parent=1 // pred_region
      %47 = dma.done [#allocation5], 512
    $region29: #{ner_forward.4} parent=1 // pred_fallthru
      _
    %v48 = vld [vmem:[%s0] sm:$0xff]
    %v49 = vld [vmem:[%s0 + $0x8] sm:$0xff]
    %v50 = vld [vmem:[%s1] sm:$0xff]
    %v51 = vld [vmem:[%s1 + $0x8] sm:$0xff]
    %v52 = vld [vmem:[%s1 + $0x10] sm:$0xff]
    %v53 = vld [vmem:[%s1 + $0x18] sm:$0xff]
    %v54 = vld [vmem:[%s1 + $0x20] sm:$0xff]
    %v55 = vld [vmem:[%s1 + $0x28] sm:$0xff]
    %v56 = vld [vmem:[%s1 + $0x30] sm:$0xff]
    %v57 = vld [vmem:[%s1 + $0x38] sm:$0xff]
    %v58 = vld [vmem:[%s2] sm:$0x1]
    %v60 = vlaneseq
    %v61 = vshrl.u32 %v60, 7
    %v62 = vsub.s32 0, %v61
    %v63 = vrot.slane %v58, %v62
    %vm65 = vcmask 523264
    %v67 = vsel %vm65, %v48, 0
    %v70 = vsel %vm65, %v49, 0
    %72 = vmatprep.subr.mxu0 0.0
    %73 = vmatpush1.msra.mxu0 %v50
    %74 = vmatprep.subr.mxu0 0.0
    %75 = vmatpush1.msra.mxu0 %v51
    %76 = vmatprep.subr.mxu0 0.0
    %77 = vmatpush1.msra.mxu0 %v52
    %78 = vmatprep.subr.mxu0 0.0
    %79 = vmatpush1.msra.mxu0 %v53
    %80 = vmatprep.subr.mxu0 0.0
    %81 = vmatpush1.msra.mxu0 %v54
    %82 = vmatprep.subr.mxu0 0.0
    %83 = vmatpush1.msra.mxu0 %v55
    %84 = vmatprep.subr.mxu0 0.0
    %85 = vmatpush1.msra.mxu0 %v56
    %86 = vmatprep.subr.mxu0 0.0
    %87 = vmatpush1.msra.mxu0 %v57
    %88 = vmatprep.subr.mxu0 0.0
    %89 = vmatpush1.msra.mxu0 0.0
    %90 = vmatprep.subr.mxu0 0.0
    %91 = vmatpush1.msra.mxu0 0.0
    %92 = vmatprep.subr.mxu0 0.0
    %93 = vmatpush1.msra.mxu0 0.0
    %94 = vmatprep.subr.mxu0 0.0
    %95 = vmatpush1.msra.mxu0 0.0
    %96 = vmatprep.subr.mxu0 0.0
    %97 = vmatpush1.msra.mxu0 0.0
    %98 = vmatprep.subr.mxu0 0.0
    %99 = vmatpush1.msra.mxu0 0.0
    %100 = vmatprep.subr.mxu0 0.0
    %101 = vmatpush1.msra.mxu0 0.0
    %102 = vmatprep.subr.mxu0 0.0
    %103 = vmatpush1.msra.mxu0 0.0
    %104 = vmatprep.subr.mxu0 0.0
    %105 = vmatpush1.msra.mxu0 0.0
    %106 = vmatprep.subr.mxu0 0.0
    %107 = vmatpush1.msra.mxu0 0.0
    %108 = vmatprep.subr.mxu0 0.0
    %109 = vmatpush1.msra.mxu0 0.0
    %110 = vmatprep.subr.mxu0 0.0
    %111 = vmatpush1.msra.mxu0 0.0
    %112 = vmatprep.subr.mxu0 0.0
    %113 = vmatpush1.msra.mxu0 0.0
    %114 = vmatprep.subr.mxu0 0.0
    %115 = vmatpush1.msra.mxu0 0.0
    %116 = vmatprep.subr.mxu0 0.0
    %117 = vmatpush1.msra.mxu0 0.0
    %118 = vmatprep.subr.mxu0 0.0
    %119 = vmatpush1.msra.mxu0 0.0
    %120 = vmatprep.subr.mxu0 0.0
    %121 = vmatpush1.msra.mxu0 0.0
    %122 = vmatprep.subr.mxu0 0.0
    %123 = vmatpush1.msra.mxu0 0.0
    %124 = vmatprep.subr.mxu0 0.0
    %125 = vmatpush1.msra.mxu0 0.0
    %126 = vmatprep.subr.mxu0 0.0
    %127 = vmatpush1.msra.mxu0 0.0
    %128 = vmatprep.subr.mxu0 0.0
    %129 = vmatpush1.msra.mxu0 0.0
    %130 = vmatprep.subr.mxu0 0.0
    %131 = vmatpush1.msra.mxu0 0.0
    %132 = vmatprep.subr.mxu0 0.0
    %133 = vmatpush1.msra.mxu0 0.0
    %134 = vmatprep.subr.mxu0 0.0
    %135 = vmatpush1.msra.mxu0 0.0
    %136 = vmatprep.mubr.f32.mxu0 0.0
    %137 = vmatmul.mubr.f32.gmra.mrb[0].mxu0 %v67
    %v138 = vpop.f32.mrb[0].mxu0
    %v139 = vadd.f32 %v63, %v138
    %v140 = vpop.f32.mrb[0].mxu0
    %141 = vmatprep.mubr.f32.mxu0 0.0
    %142 = vmatmul.mubr.f32.gmra.mrb[0].mxu0 %v70
    %v143 = vpop.f32.mrb[0].mxu0
    %v144 = vadd.f32 %v63, %v143
    %v145 = vpop.f32.mrb[0].mxu0
    %146 = vdwg.mxu0
    %v147 = vld [vmem:[#allocation2] sm:$0xff]
    %v148 = vld [vmem:[#allocation2 + $0x8] sm:$0xff]
    %v149 = vld [vmem:[#allocation2 + $0x10] sm:$0xff]
    %v150 = vld [vmem:[#allocation2 + $0x18] sm:$0xff]
    %v151 = vld [vmem:[#allocation4] sm:$0xff]
    %v152 = vld [vmem:[#allocation4 + $0x8] sm:$0xff]
    %v153 = vld [vmem:[#allocation4 + $0x10] sm:$0xff]
    %v154 = vld [vmem:[#allocation4 + $0x18] sm:$0xff]
    %vm155 = vcmask 261120
    %v157 = vsel %vm155, 0.0, 0
    %159 = vmatprep.subr.mxu0 0.0
    %160 = vmatpush1.msra.mxu0 %v147
    %161 = vmatprep.subr.mxu0 0.0
    %162 = vmatpush1.msra.mxu0 %v148
    %163 = vmatprep.subr.mxu0 0.0
    %164 = vmatpush1.msra.mxu0 %v149
    %165 = vmatprep.subr.mxu0 0.0
    %166 = vmatpush1.msra.mxu0 %v150
    %167 = vmatprep.subr.mxu0 0.0
    %168 = vmatpush1.msra.mxu0 0.0
    %169 = vmatprep.subr.mxu0 0.0
    %170 = vmatpush1.msra.mxu0 0.0
    %171 = vmatprep.subr.mxu0 0.0
    %172 = vmatpush1.msra.mxu0 0.0
    %173 = vmatprep.subr.mxu0 0.0
    %174 = vmatpush1.msra.mxu0 0.0
    %175 = vmatprep.subr.mxu0 0.0
    %176 = vmatpush1.msra.mxu0 0.0
    %177 = vmatprep.subr.mxu0 0.0
    %178 = vmatpush1.msra.mxu0 0.0
    %179 = vmatprep.subr.mxu0 0.0
    %180 = vmatpush1.msra.mxu0 0.0
    %181 = vmatprep.subr.mxu0 0.0
    %182 = vmatpush1.msra.mxu0 0.0
    %183 = vmatprep.subr.mxu0 0.0
    %184 = vmatpush1.msra.mxu0 0.0
    %185 = vmatprep.subr.mxu0 0.0
    %186 = vmatpush1.msra.mxu0 0.0
    %187 = vmatprep.subr.mxu0 0.0
    %188 = vmatpush1.msra.mxu0 0.0
    %189 = vmatprep.subr.mxu0 0.0
    %190 = vmatpush1.msra.mxu0 0.0
    %191 = vmatprep.subr.mxu0 0.0
    %192 = vmatpush1.msra.mxu0 0.0
    %193 = vmatprep.subr.mxu0 0.0
    %194 = vmatpush1.msra.mxu0 0.0
    %195 = vmatprep.subr.mxu0 0.0
    %196 = vmatpush1.msra.mxu0 0.0
    %197 = vmatprep.subr.mxu0 0.0
    %198 = vmatpush1.msra.mxu0 0.0
    %199 = vmatprep.subr.mxu0 0.0
    %200 = vmatpush1.msra.mxu0 0.0
    %201 = vmatprep.subr.mxu0 0.0
    %202 = vmatpush1.msra.mxu0 0.0
    %203 = vmatprep.subr.mxu0 0.0
    %204 = vmatpush1.msra.mxu0 0.0
    %205 = vmatprep.subr.mxu0 0.0
    %206 = vmatpush1.msra.mxu0 0.0
    %207 = vmatprep.subr.mxu0 0.0
    %208 = vmatpush1.msra.mxu0 0.0
    %209 = vmatprep.subr.mxu0 0.0
    %210 = vmatpush1.msra.mxu0 0.0
    %211 = vmatprep.subr.mxu0 0.0
    %212 = vmatpush1.msra.mxu0 0.0
    %213 = vmatprep.subr.mxu0 0.0
    %214 = vmatpush1.msra.mxu0 0.0
    %215 = vmatprep.subr.mxu0 0.0
    %216 = vmatpush1.msra.mxu0 0.0
    %217 = vmatprep.subr.mxu0 0.0
    %218 = vmatpush1.msra.mxu0 0.0
    %219 = vmatprep.subr.mxu0 0.0
    %220 = vmatpush1.msra.mxu0 0.0
    %221 = vmatprep.subr.mxu0 0.0
    %222 = vmatpush1.msra.mxu0 0.0
    %223 = vmatprep.mubr.f32.mxu0 0.0
    %224 = vmatmul.mubr.f32.gmra.mrb[0].mxu0 %v157
    %v225 = vpop.f32.mrb[0].mxu0
    %v226 = vadd.f32 0.0, %v225
    %v227 = vpop.f32.mrb[0].mxu0
    %228 = vdwg.mxu0
    %v229 = vadd.f32 %v139, %v226
    %v230 = vtanh.pop %v229
    %231 = vmatprep.subr.mxu0 0.0
    %232 = vmatpush1.msra.mxu0 %v151
    %233 = vmatprep.subr.mxu0 0.0
    %234 = vmatpush1.msra.mxu0 %v152
    %235 = vmatprep.subr.mxu0 0.0
    %236 = vmatpush1.msra.mxu0 %v153
    %237 = vmatprep.subr.mxu0 0.0
    %238 = vmatpush1.msra.mxu0 %v154
    %239 = vmatprep.subr.mxu0 0.0
    %240 = vmatpush1.msra.mxu0 0.0
    %241 = vmatprep.subr.mxu0 0.0
    %242 = vmatpush1.msra.mxu0 0.0
    %243 = vmatprep.subr.mxu0 0.0
    %244 = vmatpush1.msra.mxu0 0.0
    %245 = vmatprep.subr.mxu0 0.0
    %246 = vmatpush1.msra.mxu0 0.0
    %247 = vmatprep.subr.mxu0 0.0
    %248 = vmatpush1.msra.mxu0 0.0
    %249 = vmatprep.subr.mxu0 0.0
    %250 = vmatpush1.msra.mxu0 0.0
    %251 = vmatprep.subr.mxu0 0.0
    %252 = vmatpush1.msra.mxu0 0.0
    %253 = vmatprep.subr.mxu0 0.0
    %254 = vmatpush1.msra.mxu0 0.0
    %255 = vmatprep.subr.mxu0 0.0
    %256 = vmatpush1.msra.mxu0 0.0
    %257 = vmatprep.subr.mxu0 0.0
    %258 = vmatpush1.msra.mxu0 0.0
    %259 = vmatprep.subr.mxu0 0.0
    %260 = vmatpush1.msra.mxu0 0.0
    %261 = vmatprep.subr.mxu0 0.0
    %262 = vmatpush1.msra.mxu0 0.0
    %263 = vmatprep.subr.mxu0 0.0
    %264 = vmatpush1.msra.mxu0 0.0
    %265 = vmatprep.subr.mxu0 0.0
    %266 = vmatpush1.msra.mxu0 0.0
    %267 = vmatprep.subr.mxu0 0.0
    %268 = vmatpush1.msra.mxu0 0.0
    %269 = vmatprep.subr.mxu0 0.0
    %270 = vmatpush1.msra.mxu0 0.0
    %271 = vmatprep.subr.mxu0 0.0
    %272 = vmatpush1.msra.mxu0 0.0
    %273 = vmatprep.subr.mxu0 0.0
    %274 = vmatpush1.msra.mxu0 0.0
    %275 = vmatprep.subr.mxu0 0.0
    %276 = vmatpush1.msra.mxu0 0.0
    %277 = vmatprep.subr.mxu0 0.0
    %278 = vmatpush1.msra.mxu0 0.0
    %279 = vmatprep.subr.mxu0 0.0
    %280 = vmatpush1.msra.mxu0 0.0
    %281 = vmatprep.subr.mxu0 0.0
    %282 = vmatpush1.msra.mxu0 0.0
    %283 = vmatprep.subr.mxu0 0.0
    %284 = vmatpush1.msra.mxu0 0.0
    %285 = vmatprep.subr.mxu0 0.0
    %286 = vmatpush1.msra.mxu0 0.0
    %287 = vmatprep.subr.mxu0 0.0
    %288 = vmatpush1.msra.mxu0 0.0
    %289 = vmatprep.subr.mxu0 0.0
    %290 = vmatpush1.msra.mxu0 0.0
    %291 = vmatprep.subr.mxu0 0.0
    %292 = vmatpush1.msra.mxu0 0.0
    %293 = vmatprep.subr.mxu0 0.0
    %294 = vmatpush1.msra.mxu0 0.0
    %295 = vmatprep.mubr.f32.mxu0 0.0
    %296 = vmatmul.mubr.f32.gmra.mrb[0].mxu0 %v157
    %v297 = vpop.f32.mrb[0].mxu0
    %v298 = vadd.f32 0.0, %v297
    %v299 = vpop.f32.mrb[0].mxu0
    %300 = vdwg.mxu0
    %v302 = vrot.slane %v298, 2
    %303 = vrot.lane.b32.xlu0 %v302, 32
    %v304 = vpop.permute.xlu0 %303
    %v306 = vadd.f32 %v144, %v304
    %v307 = vtanh.pop %v306
    %vm308 = vcmask 254976
    %309 = vst.msk [vmem:[%s5] sm:$0x3] %vm308, %v230
    %vm310 = vcmask 523526
    %311 = vst.msk [vmem:[%s5 + $0x8] sm:$0xc0] %vm310, %v307
    %v313 = vsel %vm155, %v230, 0
    %315 = vmatprep.subr.mxu0 0.0
    %316 = vmatpush1.msra.mxu0 %v147
    %317 = vmatprep.subr.mxu0 0.0
    %318 = vmatpush1.msra.mxu0 %v148
    %319 = vmatprep.subr.mxu0 0.0
    %320 = vmatpush1.msra.mxu0 %v149
    %321 = vmatprep.subr.mxu0 0.0
    %322 = vmatpush1.msra.mxu0 %v150
    %323 = vmatprep.subr.mxu0 0.0
    %324 = vmatpush1.msra.mxu0 0.0
    %325 = vmatprep.subr.mxu0 0.0
    %326 = vmatpush1.msra.mxu0 0.0
    %327 = vmatprep.subr.mxu0 0.0
    %328 = vmatpush1.msra.mxu0 0.0
    %329 = vmatprep.subr.mxu0 0.0
    %330 = vmatpush1.msra.mxu0 0.0
    %331 = vmatprep.subr.mxu0 0.0
    %332 = vmatpush1.msra.mxu0 0.0
    %333 = vmatprep.subr.mxu0 0.0
    %334 = vmatpush1.msra.mxu0 0.0
    %335 = vmatprep.subr.mxu0 0.0
    %336 = vmatpush1.msra.mxu0 0.0
    %337 = vmatprep.subr.mxu0 0.0
    %338 = vmatpush1.msra.mxu0 0.0
    %339 = vmatprep.subr.mxu0 0.0
    %340 = vmatpush1.msra.mxu0 0.0
    %341 = vmatprep.subr.mxu0 0.0
    %342 = vmatpush1.msra.mxu0 0.0
    %343 = vmatprep.subr.mxu0 0.0
    %344 = vmatpush1.msra.mxu0 0.0
    %345 = vmatprep.subr.mxu0 0.0
    %346 = vmatpush1.msra.mxu0 0.0
    %347 = vmatprep.subr.mxu0 0.0
    %348 = vmatpush1.msra.mxu0 0.0
    %349 = vmatprep.subr.mxu0 0.0
    %350 = vmatpush1.msra.mxu0 0.0
    %351 = vmatprep.subr.mxu0 0.0
    %352 = vmatpush1.msra.mxu0 0.0
    %353 = vmatprep.subr.mxu0 0.0
    %354 = vmatpush1.msra.mxu0 0.0
    %355 = vmatprep.subr.mxu0 0.0
    %356 = vmatpush1.msra.mxu0 0.0
    %357 = vmatprep.subr.mxu0 0.0
    %358 = vmatpush1.msra.mxu0 0.0
    %359 = vmatprep.subr.mxu0 0.0
    %360 = vmatpush1.msra.mxu0 0.0
    %361 = vmatprep.subr.mxu0 0.0
    %362 = vmatpush1.msra.mxu0 0.0
    %363 = vmatprep.subr.mxu0 0.0
    %364 = vmatpush1.msra.mxu0 0.0
    %365 = vmatprep.subr.mxu0 0.0
    %366 = vmatpush1.msra.mxu0 0.0
    %367 = vmatprep.subr.mxu0 0.0
    %368 = vmatpush1.msra.mxu0 0.0
    %369 = vmatprep.subr.mxu0 0.0
    %370 = vmatpush1.msra.mxu0 0.0
    %371 = vmatprep.subr.mxu0 0.0
    %372 = vmatpush1.msra.mxu0 0.0
    %373 = vmatprep.subr.mxu0 0.0
    %374 = vmatpush1.msra.mxu0 0.0
    %375 = vmatprep.subr.mxu0 0.0
    %376 = vmatpush1.msra.mxu0 0.0
    %377 = vmatprep.subr.mxu0 0.0
    %378 = vmatpush1.msra.mxu0 0.0
    %379 = vmatprep.mubr.f32.mxu0 0.0
    %380 = vmatmul.mubr.f32.gmra.mrb[0].mxu0 %v313
    %v381 = vpop.f32.mrb[0].mxu0
    %v382 = vadd.f32 0.0, %v381
    %v383 = vpop.f32.mrb[0].mxu0
    %384 = vdwg.mxu0
    %v386 = vrot.slane %v382, 6
    %v388 = vadd.f32 %v139, %v386
    %v389 = vtanh.pop %v388
    %v391 = vrot.slane %v307, 6
    %392 = vrot.lane.b32.xlu0 %v391, 96
    %v393 = vpop.permute.xlu0 %392
    %v394 = vsel %vm155, %v393, 0
    %396 = vmatprep.subr.mxu0 0.0
    %397 = vmatpush1.msra.mxu0 %v151
    %398 = vmatprep.subr.mxu0 0.0
    %399 = vmatpush1.msra.mxu0 %v152
    %400 = vmatprep.subr.mxu0 0.0
    %401 = vmatpush1.msra.mxu0 %v153
    %402 = vmatprep.subr.mxu0 0.0
    %403 = vmatpush1.msra.mxu0 %v154
    %404 = vmatprep.subr.mxu0 0.0
    %405 = vmatpush1.msra.mxu0 0.0
    %406 = vmatprep.subr.mxu0 0.0
    %407 = vmatpush1.msra.mxu0 0.0
    %408 = vmatprep.subr.mxu0 0.0
    %409 = vmatpush1.msra.mxu0 0.0
    %410 = vmatprep.subr.mxu0 0.0
    %411 = vmatpush1.msra.mxu0 0.0
    %412 = vmatprep.subr.mxu0 0.0
    %413 = vmatpush1.msra.mxu0 0.0
    %414 = vmatprep.subr.mxu0 0.0
    %415 = vmatpush1.msra.mxu0 0.0
    %416 = vmatprep.subr.mxu0 0.0
    %417 = vmatpush1.msra.mxu0 0.0
    %418 = vmatprep.subr.mxu0 0.0
    %419 = vmatpush1.msra.mxu0 0.0
    %420 = vmatprep.subr.mxu0 0.0
    %421 = vmatpush1.msra.mxu0 0.0
    %422 = vmatprep.subr.mxu0 0.0
    %423 = vmatpush1.msra.mxu0 0.0
    %424 = vmatprep.subr.mxu0 0.0
    %425 = vmatpush1.msra.mxu0 0.0
    %426 = vmatprep.subr.mxu0 0.0
    %427 = vmatpush1.msra.mxu0 0.0
    %428 = vmatprep.subr.mxu0 0.0
    %429 = vmatpush1.msra.mxu0 0.0
    %430 = vmatprep.subr.mxu0 0.0
    %431 = vmatpush1.msra.mxu0 0.0
    %432 = vmatprep.subr.mxu0 0.0
    %433 = vmatpush1.msra.mxu0 0.0
    %434 = vmatprep.subr.mxu0 0.0
    %435 = vmatpush1.msra.mxu0 0.0
    %436 = vmatprep.subr.mxu0 0.0
    %437 = vmatpush1.msra.mxu0 0.0
    %438 = vmatprep.subr.mxu0 0.0
    %439 = vmatpush1.msra.mxu0 0.0
    %440 = vmatprep.subr.mxu0 0.0
    %441 = vmatpush1.msra.mxu0 0.0
    %442 = vmatprep.subr.mxu0 0.0
    %443 = vmatpush1.msra.mxu0 0.0
    %444 = vmatprep.subr.mxu0 0.0
    %445 = vmatpush1.msra.mxu0 0.0
    %446 = vmatprep.subr.mxu0 0.0
    %447 = vmatpush1.msra.mxu0 0.0
    %448 = vmatprep.subr.mxu0 0.0
    %449 = vmatpush1.msra.mxu0 0.0
    %450 = vmatprep.subr.mxu0 0.0
    %451 = vmatpush1.msra.mxu0 0.0
    %452 = vmatprep.subr.mxu0 0.0
    %453 = vmatpush1.msra.mxu0 0.0
    %454 = vmatprep.subr.mxu0 0.0
    %455 = vmatpush1.msra.mxu0 0.0
    %456 = vmatprep.subr.mxu0 0.0
    %457 = vmatpush1.msra.mxu0 0.0
    %458 = vmatprep.subr.mxu0 0.0
    %459 = vmatpush1.msra.mxu0 0.0
    %460 = vmatprep.mubr.f32.mxu0 0.0
    %461 = vmatmul.mubr.f32.gmra.mrb[0].mxu0 %v394
    %v462 = vpop.f32.mrb[0].mxu0
    %v463 = vadd.f32 0.0, %v462
    %v464 = vpop.f32.mrb[0].mxu0
    %465 = vdwg.mxu0
    %v467 = vrot.slane %v463, 4
    %468 = vrot.lane.b32.xlu0 %v467, 32
    %v469 = vpop.permute.xlu0 %468
    %v471 = vadd.f32 %v144, %v469
    %v472 = vtanh.pop %v471
    %vm473 = vcmask 257026
    %474 = vst.msk [vmem:[%s5] sm:$0xc] %vm473, %v389
    %vm475 = vcmask 521476
    %476 = vst.msk [vmem:[%s5 + $0x8] sm:$0x30] %vm475, %v472
    %v478 = vrot.slane %v389, 2
    %v479 = vsel %vm155, %v478, 0
    %481 = vmatprep.subr.mxu0 0.0
    %482 = vmatpush1.msra.mxu0 %v147
    %483 = vmatprep.subr.mxu0 0.0
    %484 = vmatpush1.msra.mxu0 %v148
    %485 = vmatprep.subr.mxu0 0.0
    %486 = vmatpush1.msra.mxu0 %v149
    %487 = vmatprep.subr.mxu0 0.0
    %488 = vmatpush1.msra.mxu0 %v150
    %489 = vmatprep.subr.mxu0 0.0
    %490 = vmatpush1.msra.mxu0 0.0
    %491 = vmatprep.subr.mxu0 0.0
    %492 = vmatpush1.msra.mxu0 0.0
    %493 = vmatprep.subr.mxu0 0.0
    %494 = vmatpush1.msra.mxu0 0.0
    %495 = vmatprep.subr.mxu0 0.0
    %496 = vmatpush1.msra.mxu0 0.0
    %497 = vmatprep.subr.mxu0 0.0
    %498 = vmatpush1.msra.mxu0 0.0
    %499 = vmatprep.subr.mxu0 0.0
    %500 = vmatpush1.msra.mxu0 0.0
    %501 = vmatprep.subr.mxu0 0.0
    %502 = vmatpush1.msra.mxu0 0.0
    %503 = vmatprep.subr.mxu0 0.0
    %504 = vmatpush1.msra.mxu0 0.0
    %505 = vmatprep.subr.mxu0 0.0
    %506 = vmatpush1.msra.mxu0 0.0
    %507 = vmatprep.subr.mxu0 0.0
    %508 = vmatpush1.msra.mxu0 0.0
    %509 = vmatprep.subr.mxu0 0.0
    %510 = vmatpush1.msra.mxu0 0.0
    %511 = vmatprep.subr.mxu0 0.0
    %512 = vmatpush1.msra.mxu0 0.0
    %513 = vmatprep.subr.mxu0 0.0
    %514 = vmatpush1.msra.mxu0 0.0
    %515 = vmatprep.subr.mxu0 0.0
    %516 = vmatpush1.msra.mxu0 0.0
    %517 = vmatprep.subr.mxu0 0.0
    %518 = vmatpush1.msra.mxu0 0.0
    %519 = vmatprep.subr.mxu0 0.0
    %520 = vmatpush1.msra.mxu0 0.0
    %521 = vmatprep.subr.mxu0 0.0
    %522 = vmatpush1.msra.mxu0 0.0
    %523 = vmatprep.subr.mxu0 0.0
    %524 = vmatpush1.msra.mxu0 0.0
    %525 = vmatprep.subr.mxu0 0.0
    %526 = vmatpush1.msra.mxu0 0.0
    %527 = vmatprep.subr.mxu0 0.0
    %528 = vmatpush1.msra.mxu0 0.0
    %529 = vmatprep.subr.mxu0 0.0
    %530 = vmatpush1.msra.mxu0 0.0
    %531 = vmatprep.subr.mxu0 0.0
    %532 = vmatpush1.msra.mxu0 0.0
    %533 = vmatprep.subr.mxu0 0.0
    %534 = vmatpush1.msra.mxu0 0.0
    %535 = vmatprep.subr.mxu0 0.0
    %536 = vmatpush1.msra.mxu0 0.0
    %537 = vmatprep.subr.mxu0 0.0
    %538 = vmatpush1.msra.mxu0 0.0
    %539 = vmatprep.subr.mxu0 0.0
    %540 = vmatpush1.msra.mxu0 0.0
    %541 = vmatprep.subr.mxu0 0.0
    %542 = vmatpush1.msra.mxu0 0.0
    %543 = vmatprep.subr.mxu0 0.0
    %544 = vmatpush1.msra.mxu0 0.0
    %545 = vmatprep.mubr.f32.mxu0 0.0
    %546 = vmatmul.mubr.f32.gmra.mrb[0].mxu0 %v479
    %v547 = vpop.f32.mrb[0].mxu0
    %v548 = vadd.f32 0.0, %v547
    %v549 = vpop.f32.mrb[0].mxu0
    %550 = vdwg.mxu0
    %v552 = vrot.slane %v548, 4
    %v554 = vadd.f32 %v139, %v552
    %v555 = vtanh.pop %v554
    %v557 = vrot.slane %v472, 4
    %558 = vrot.lane.b32.xlu0 %v557, 96
    %v559 = vpop.permute.xlu0 %558
    %v560 = vsel %vm155, %v559, 0
    %562 = vmatprep.subr.mxu0 0.0
    %563 = vmatpush1.msra.mxu0 %v151
    %564 = vmatprep.subr.mxu0 0.0
    %565 = vmatpush1.msra.mxu0 %v152
    %566 = vmatprep.subr.mxu0 0.0
    %567 = vmatpush1.msra.mxu0 %v153
    %568 = vmatprep.subr.mxu0 0.0
    %569 = vmatpush1.msra.mxu0 %v154
    %570 = vmatprep.subr.mxu0 0.0
    %571 = vmatpush1.msra.mxu0 0.0
    %572 = vmatprep.subr.mxu0 0.0
    %573 = vmatpush1.msra.mxu0 0.0
    %574 = vmatprep.subr.mxu0 0.0
    %575 = vmatpush1.msra.mxu0 0.0
    %576 = vmatprep.subr.mxu0 0.0
    %577 = vmatpush1.msra.mxu0 0.0
    %578 = vmatprep.subr.mxu0 0.0
    %579 = vmatpush1.msra.mxu0 0.0
    %580 = vmatprep.subr.mxu0 0.0
    %581 = vmatpush1.msra.mxu0 0.0
    %582 = vmatprep.subr.mxu0 0.0
    %583 = vmatpush1.msra.mxu0 0.0
    %584 = vmatprep.subr.mxu0 0.0
    %585 = vmatpush1.msra.mxu0 0.0
    %586 = vmatprep.subr.mxu0 0.0
    %587 = vmatpush1.msra.mxu0 0.0
    %588 = vmatprep.subr.mxu0 0.0
    %589 = vmatpush1.msra.mxu0 0.0
    %590 = vmatprep.subr.mxu0 0.0
    %591 = vmatpush1.msra.mxu0 0.0
    %592 = vmatprep.subr.mxu0 0.0
    %593 = vmatpush1.msra.mxu0 0.0
    %594 = vmatprep.subr.mxu0 0.0
    %595 = vmatpush1.msra.mxu0 0.0
    %596 = vmatprep.subr.mxu0 0.0
    %597 = vmatpush1.msra.mxu0 0.0
    %598 = vmatprep.subr.mxu0 0.0
    %599 = vmatpush1.msra.mxu0 0.0
    %600 = vmatprep.subr.mxu0 0.0
    %601 = vmatpush1.msra.mxu0 0.0
    %602 = vmatprep.subr.mxu0 0.0
    %603 = vmatpush1.msra.mxu0 0.0
    %604 = vmatprep.subr.mxu0 0.0
    %605 = vmatpush1.msra.mxu0 0.0
    %606 = vmatprep.subr.mxu0 0.0
    %607 = vmatpush1.msra.mxu0 0.0
    %608 = vmatprep.subr.mxu0 0.0
    %609 = vmatpush1.msra.mxu0 0.0
    %610 = vmatprep.subr.mxu0 0.0
    %611 = vmatpush1.msra.mxu0 0.0
    %612 = vmatprep.subr.mxu0 0.0
    %613 = vmatpush1.msra.mxu0 0.0
    %614 = vmatprep.subr.mxu0 0.0
    %615 = vmatpush1.msra.mxu0 0.0
    %616 = vmatprep.subr.mxu0 0.0
    %617 = vmatpush1.msra.mxu0 0.0
    %618 = vmatprep.subr.mxu0 0.0
    %619 = vmatpush1.msra.mxu0 0.0
    %620 = vmatprep.subr.mxu0 0.0
    %621 = vmatpush1.msra.mxu0 0.0
    %622 = vmatprep.subr.mxu0 0.0
    %623 = vmatpush1.msra.mxu0 0.0
    %624 = vmatprep.subr.mxu0 0.0
    %625 = vmatpush1.msra.mxu0 0.0
    %626 = vmatprep.mubr.f32.mxu0 0.0
    %627 = vmatmul.mubr.f32.gmra.mrb[0].mxu0 %v560
    %v628 = vpop.f32.mrb[0].mxu0
    %v629 = vadd.f32 0.0, %v628
    %v630 = vpop.f32.mrb[0].mxu0
    %631 = vdwg.mxu0
    %v633 = vrot.slane %v629, 6
    %634 = vrot.lane.b32.xlu0 %v633, 32
    %v635 = vpop.permute.xlu0 %634
    %v637 = vadd.f32 %v144, %v635
    %v638 = vtanh.pop %v637
    %vm639 = vcmask 259076
    %640 = vst.msk [vmem:[%s5] sm:$0x30] %vm639, %v555
    %vm641 = vcmask 519426
    %642 = vst.msk [vmem:[%s5 + $0x8] sm:$0xc] %vm641, %v638
    %v644 = vrot.slane %v555, 4
    %v645 = vsel %vm155, %v644, 0
    %647 = vmatprep.subr.mxu0 0.0
    %648 = vmatpush1.msra.mxu0 %v147
    %649 = vmatprep.subr.mxu0 0.0
    %650 = vmatpush1.msra.mxu0 %v148
    %651 = vmatprep.subr.mxu0 0.0
    %652 = vmatpush1.msra.mxu0 %v149
    %653 = vmatprep.subr.mxu0 0.0
    %654 = vmatpush1.msra.mxu0 %v150
    %655 = vmatprep.subr.mxu0 0.0
    %656 = vmatpush1.msra.mxu0 0.0
    %657 = vmatprep.subr.mxu0 0.0
    %658 = vmatpush1.msra.mxu0 0.0
    %659 = vmatprep.subr.mxu0 0.0
    %660 = vmatpush1.msra.mxu0 0.0
    %661 = vmatprep.subr.mxu0 0.0
    %662 = vmatpush1.msra.mxu0 0.0
    %663 = vmatprep.subr.mxu0 0.0
    %664 = vmatpush1.msra.mxu0 0.0
    %665 = vmatprep.subr.mxu0 0.0
    %666 = vmatpush1.msra.mxu0 0.0
    %667 = vmatprep.subr.mxu0 0.0
    %668 = vmatpush1.msra.mxu0 0.0
    %669 = vmatprep.subr.mxu0 0.0
    %670 = vmatpush1.msra.mxu0 0.0
    %671 = vmatprep.subr.mxu0 0.0
    %672 = vmatpush1.msra.mxu0 0.0
    %673 = vmatprep.subr.mxu0 0.0
    %674 = vmatpush1.msra.mxu0 0.0
    %675 = vmatprep.subr.mxu0 0.0
    %676 = vmatpush1.msra.mxu0 0.0
    %677 = vmatprep.subr.mxu0 0.0
    %678 = vmatpush1.msra.mxu0 0.0
    %679 = vmatprep.subr.mxu0 0.0
    %680 = vmatpush1.msra.mxu0 0.0
    %681 = vmatprep.subr.mxu0 0.0
    %682 = vmatpush1.msra.mxu0 0.0
    %683 = vmatprep.subr.mxu0 0.0
    %684 = vmatpush1.msra.mxu0 0.0
    %685 = vmatprep.subr.mxu0 0.0
    %686 = vmatpush1.msra.mxu0 0.0
    %687 = vmatprep.subr.mxu0 0.0
    %688 = vmatpush1.msra.mxu0 0.0
    %689 = vmatprep.subr.mxu0 0.0
    %690 = vmatpush1.msra.mxu0 0.0
    %691 = vmatprep.subr.mxu0 0.0
    %692 = vmatpush1.msra.mxu0 0.0
    %693 = vmatprep.subr.mxu0 0.0
    %694 = vmatpush1.msra.mxu0 0.0
    %695 = vmatprep.subr.mxu0 0.0
    %696 = vmatpush1.msra.mxu0 0.0
    %697 = vmatprep.subr.mxu0 0.0
    %698 = vmatpush1.msra.mxu0 0.0
    %699 = vmatprep.subr.mxu0 0.0
    %700 = vmatpush1.msra.mxu0 0.0
    %701 = vmatprep.subr.mxu0 0.0
    %702 = vmatpush1.msra.mxu0 0.0
    %703 = vmatprep.subr.mxu0 0.0
    %704 = vmatpush1.msra.mxu0 0.0
    %705 = vmatprep.subr.mxu0 0.0
    %706 = vmatpush1.msra.mxu0 0.0
    %707 = vmatprep.subr.mxu0 0.0
    %708 = vmatpush1.msra.mxu0 0.0
    %709 = vmatprep.subr.mxu0 0.0
    %710 = vmatpush1.msra.mxu0 0.0
    %711 = vmatprep.mubr.f32.mxu0 0.0
    %712 = vmatmul.mubr.f32.gmra.mrb[0].mxu0 %v645
    %v713 = vpop.f32.mrb[0].mxu0
    %v714 = vadd.f32 0.0, %v713
    %v715 = vpop.f32.mrb[0].mxu0
    %716 = vdwg.mxu0
    %v718 = vrot.slane %v714, 2
    %v720 = vadd.f32 %v139, %v718
    %v721 = vtanh.pop %v720
    %v723 = vrot.slane %v638, 2
    %724 = vrot.lane.b32.xlu0 %v723, 96
    %v725 = vpop.permute.xlu0 %724
    %v726 = vsel %vm155, %v725, 0
    %728 = vmatprep.subr.mxu0 0.0
    %729 = vmatpush1.msra.mxu0 %v151
    %730 = vmatprep.subr.mxu0 0.0
    %731 = vmatpush1.msra.mxu0 %v152
    %732 = vmatprep.subr.mxu0 0.0
    %733 = vmatpush1.msra.mxu0 %v153
    %734 = vmatprep.subr.mxu0 0.0
    %735 = vmatpush1.msra.mxu0 %v154
    %736 = vmatprep.subr.mxu0 0.0
    %737 = vmatpush1.msra.mxu0 0.0
    %738 = vmatprep.subr.mxu0 0.0
    %739 = vmatpush1.msra.mxu0 0.0
    %740 = vmatprep.subr.mxu0 0.0
    %741 = vmatpush1.msra.mxu0 0.0
    %742 = vmatprep.subr.mxu0 0.0
    %743 = vmatpush1.msra.mxu0 0.0
    %744 = vmatprep.subr.mxu0 0.0
    %745 = vmatpush1.msra.mxu0 0.0
    %746 = vmatprep.subr.mxu0 0.0
    %747 = vmatpush1.msra.mxu0 0.0
    %748 = vmatprep.subr.mxu0 0.0
    %749 = vmatpush1.msra.mxu0 0.0
    %750 = vmatprep.subr.mxu0 0.0
    %751 = vmatpush1.msra.mxu0 0.0
    %752 = vmatprep.subr.mxu0 0.0
    %753 = vmatpush1.msra.mxu0 0.0
    %754 = vmatprep.subr.mxu0 0.0
    %755 = vmatpush1.msra.mxu0 0.0
    %756 = vmatprep.subr.mxu0 0.0
    %757 = vmatpush1.msra.mxu0 0.0
    %758 = vmatprep.subr.mxu0 0.0
    %759 = vmatpush1.msra.mxu0 0.0
    %760 = vmatprep.subr.mxu0 0.0
    %761 = vmatpush1.msra.mxu0 0.0
    %762 = vmatprep.subr.mxu0 0.0
    %763 = vmatpush1.msra.mxu0 0.0
    %764 = vmatprep.subr.mxu0 0.0
    %765 = vmatpush1.msra.mxu0 0.0
    %766 = vmatprep.subr.mxu0 0.0
    %767 = vmatpush1.msra.mxu0 0.0
    %768 = vmatprep.subr.mxu0 0.0
    %769 = vmatpush1.msra.mxu0 0.0
    %770 = vmatprep.subr.mxu0 0.0
    %771 = vmatpush1.msra.mxu0 0.0
    %772 = vmatprep.subr.mxu0 0.0
    %773 = vmatpush1.msra.mxu0 0.0
    %774 = vmatprep.subr.mxu0 0.0
    %775 = vmatpush1.msra.mxu0 0.0
    %776 = vmatprep.subr.mxu0 0.0
    %777 = vmatpush1.msra.mxu0 0.0
    %778 = vmatprep.subr.mxu0 0.0
    %779 = vmatpush1.msra.mxu0 0.0
    %780 = vmatprep.subr.mxu0 0.0
    %781 = vmatpush1.msra.mxu0 0.0
    %782 = vmatprep.subr.mxu0 0.0
    %783 = vmatpush1.msra.mxu0 0.0
    %784 = vmatprep.subr.mxu0 0.0
    %785 = vmatpush1.msra.mxu0 0.0
    %786 = vmatprep.subr.mxu0 0.0
    %787 = vmatpush1.msra.mxu0 0.0
    %788 = vmatprep.subr.mxu0 0.0
    %789 = vmatpush1.msra.mxu0 0.0
    %790 = vmatprep.subr.mxu0 0.0
    %791 = vmatpush1.msra.mxu0 0.0
    %792 = vmatprep.mubr.f32.mxu0 0.0
    %793 = vmatmul.mubr.f32.gmra.mrb[0].mxu0 %v726
    %v794 = vpop.f32.mrb[0].mxu0
    %v795 = vadd.f32 0.0, %v794
    %v796 = vpop.f32.mrb[0].mxu0
    %797 = vdwg.mxu0
    %799 = vrot.lane.b32.xlu0 %v795, 32
    %v800 = vpop.permute.xlu0 %799
    %v802 = vadd.f32 %v144, %v800
    %v803 = vtanh.pop %v802
    %vm804 = vcmask 261126
    %805 = vst.msk [vmem:[%s5] sm:$0xc0] %vm804, %v721
    %vm806 = vcmask 517376
    %807 = vst.msk [vmem:[%s5 + $0x8] sm:$0x3] %vm806, %v803
    %v809 = vrot.slane %v721, 6
    %v810 = vsel %vm155, %v809, 0
    %812 = vmatprep.subr.mxu0 0.0
    %813 = vmatpush1.msra.mxu0 %v147
    %814 = vmatprep.subr.mxu0 0.0
    %815 = vmatpush1.msra.mxu0 %v148
    %816 = vmatprep.subr.mxu0 0.0
    %817 = vmatpush1.msra.mxu0 %v149
    %818 = vmatprep.subr.mxu0 0.0
    %819 = vmatpush1.msra.mxu0 %v150
    %820 = vmatprep.subr.mxu0 0.0
    %821 = vmatpush1.msra.mxu0 0.0
    %822 = vmatprep.subr.mxu0 0.0
    %823 = vmatpush1.msra.mxu0 0.0
    %824 = vmatprep.subr.mxu0 0.0
    %825 = vmatpush1.msra.mxu0 0.0
    %826 = vmatprep.subr.mxu0 0.0
    %827 = vmatpush1.msra.mxu0 0.0
    %828 = vmatprep.subr.mxu0 0.0
    %829 = vmatpush1.msra.mxu0 0.0
    %830 = vmatprep.subr.mxu0 0.0
    %831 = vmatpush1.msra.mxu0 0.0
    %832 = vmatprep.subr.mxu0 0.0
    %833 = vmatpush1.msra.mxu0 0.0
    %834 = vmatprep.subr.mxu0 0.0
    %835 = vmatpush1.msra.mxu0 0.0
    %836 = vmatprep.subr.mxu0 0.0
    %837 = vmatpush1.msra.mxu0 0.0
    %838 = vmatprep.subr.mxu0 0.0
    %839 = vmatpush1.msra.mxu0 0.0
    %840 = vmatprep.subr.mxu0 0.0
    %841 = vmatpush1.msra.mxu0 0.0
    %842 = vmatprep.subr.mxu0 0.0
    %843 = vmatpush1.msra.mxu0 0.0
    %844 = vmatprep.subr.mxu0 0.0
    %845 = vmatpush1.msra.mxu0 0.0
    %846 = vmatprep.subr.mxu0 0.0
    %847 = vmatpush1.msra.mxu0 0.0
    %848 = vmatprep.subr.mxu0 0.0
    %849 = vmatpush1.msra.mxu0 0.0
    %850 = vmatprep.subr.mxu0 0.0
    %851 = vmatpush1.msra.mxu0 0.0
    %852 = vmatprep.subr.mxu0 0.0
    %853 = vmatpush1.msra.mxu0 0.0
    %854 = vmatprep.subr.mxu0 0.0
    %855 = vmatpush1.msra.mxu0 0.0
    %856 = vmatprep.subr.mxu0 0.0
    %857 = vmatpush1.msra.mxu0 0.0
    %858 = vmatprep.subr.mxu0 0.0
    %859 = vmatpush1.msra.mxu0 0.0
    %860 = vmatprep.subr.mxu0 0.0
    %861 = vmatpush1.msra.mxu0 0.0
    %862 = vmatprep.subr.mxu0 0.0
    %863 = vmatpush1.msra.mxu0 0.0
    %864 = vmatprep.subr.mxu0 0.0
    %865 = vmatpush1.msra.mxu0 0.0
    %866 = vmatprep.subr.mxu0 0.0
    %867 = vmatpush1.msra.mxu0 0.0
    %868 = vmatprep.subr.mxu0 0.0
    %869 = vmatpush1.msra.mxu0 0.0
    %870 = vmatprep.subr.mxu0 0.0
    %871 = vmatpush1.msra.mxu0 0.0
    %872 = vmatprep.subr.mxu0 0.0
    %873 = vmatpush1.msra.mxu0 0.0
    %874 = vmatprep.subr.mxu0 0.0
    %875 = vmatpush1.msra.mxu0 0.0
    %876 = vmatprep.mubr.f32.mxu0 0.0
    %877 = vmatmul.mubr.f32.gmra.mrb[0].mxu0 %v810
    %v878 = vpop.f32.mrb[0].mxu0
    %v879 = vadd.f32 0.0, %v878
    %v880 = vpop.f32.mrb[0].mxu0
    %881 = vdwg.mxu0
    %v882 = vadd.f32 %v144, %v879
    %v883 = vtanh.pop %v882
    %885 = vrot.lane.b32.xlu0 %v803, 96
    %v886 = vpop.permute.xlu0 %885
    %v887 = vsel %vm155, %v886, 0
    %889 = vmatprep.subr.mxu0 0.0
    %890 = vmatpush1.msra.mxu0 %v151
    %891 = vmatprep.subr.mxu0 0.0
    %892 = vmatpush1.msra.mxu0 %v152
    %893 = vmatprep.subr.mxu0 0.0
    %894 = vmatpush1.msra.mxu0 %v153
    %895 = vmatprep.subr.mxu0 0.0
    %896 = vmatpush1.msra.mxu0 %v154
    %897 = vmatprep.subr.mxu0 0.0
    %898 = vmatpush1.msra.mxu0 0.0
    %899 = vmatprep.subr.mxu0 0.0
    %900 = vmatpush1.msra.mxu0 0.0
    %901 = vmatprep.subr.mxu0 0.0
    %902 = vmatpush1.msra.mxu0 0.0
    %903 = vmatprep.subr.mxu0 0.0
    %904 = vmatpush1.msra.mxu0 0.0
    %905 = vmatprep.subr.mxu0 0.0
    %906 = vmatpush1.msra.mxu0 0.0
    %907 = vmatprep.subr.mxu0 0.0
    %908 = vmatpush1.msra.mxu0 0.0
    %909 = vmatprep.subr.mxu0 0.0
    %910 = vmatpush1.msra.mxu0 0.0
    %911 = vmatprep.subr.mxu0 0.0
    %912 = vmatpush1.msra.mxu0 0.0
    %913 = vmatprep.subr.mxu0 0.0
    %914 = vmatpush1.msra.mxu0 0.0
    %915 = vmatprep.subr.mxu0 0.0
    %916 = vmatpush1.msra.mxu0 0.0
    %917 = vmatprep.subr.mxu0 0.0
    %918 = vmatpush1.msra.mxu0 0.0
    %919 = vmatprep.subr.mxu0 0.0
    %920 = vmatpush1.msra.mxu0 0.0
    %921 = vmatprep.subr.mxu0 0.0
    %922 = vmatpush1.msra.mxu0 0.0
    %923 = vmatprep.subr.mxu0 0.0
    %924 = vmatpush1.msra.mxu0 0.0
    %925 = vmatprep.subr.mxu0 0.0
    %926 = vmatpush1.msra.mxu0 0.0
    %927 = vmatprep.subr.mxu0 0.0
    %928 = vmatpush1.msra.mxu0 0.0
    %929 = vmatprep.subr.mxu0 0.0
    %930 = vmatpush1.msra.mxu0 0.0
    %931 = vmatprep.subr.mxu0 0.0
    %932 = vmatpush1.msra.mxu0 0.0
    %933 = vmatprep.subr.mxu0 0.0
    %934 = vmatpush1.msra.mxu0 0.0
    %935 = vmatprep.subr.mxu0 0.0
    %936 = vmatpush1.msra.mxu0 0.0
    %937 = vmatprep.subr.mxu0 0.0
    %938 = vmatpush1.msra.mxu0 0.0
    %939 = vmatprep.subr.mxu0 0.0
    %940 = vmatpush1.msra.mxu0 0.0
    %941 = vmatprep.subr.mxu0 0.0
    %942 = vmatpush1.msra.mxu0 0.0
    %943 = vmatprep.subr.mxu0 0.0
    %944 = vmatpush1.msra.mxu0 0.0
    %945 = vmatprep.subr.mxu0 0.0
    %946 = vmatpush1.msra.mxu0 0.0
    %947 = vmatprep.subr.mxu0 0.0
    %948 = vmatpush1.msra.mxu0 0.0
    %949 = vmatprep.subr.mxu0 0.0
    %950 = vmatpush1.msra.mxu0 0.0
    %951 = vmatprep.subr.mxu0 0.0
    %952 = vmatpush1.msra.mxu0 0.0
    %953 = vmatprep.mubr.f32.mxu0 0.0
    %954 = vmatmul.mubr.f32.gmra.mrb[0].mxu0 %v887
    %v955 = vpop.f32.mrb[0].mxu0
    %v956 = vadd.f32 0.0, %v955
    %v957 = vpop.f32.mrb[0].mxu0
    %958 = vdwg.mxu0
    %v960 = vrot.slane %v956, 2
    %961 = vrot.lane.b32.xlu0 %v960, 32
    %v962 = vpop.permute.xlu0 %961
    %v964 = vadd.f32 %v139, %v962
    %v965 = vtanh.pop %v964
    %966 = vst.msk [vmem:[%s5 + $0x8] sm:$0x3] %vm308, %v883
    %967 = vst.msk [vmem:[%s5] sm:$0xc0] %vm310, %v965
    %v969 = vsel %vm155, %v883, 0
    %971 = vmatprep.subr.mxu0 0.0
    %972 = vmatpush1.msra.mxu0 %v147
    %973 = vmatprep.subr.mxu0 0.0
    %974 = vmatpush1.msra.mxu0 %v148
    %975 = vmatprep.subr.mxu0 0.0
    %976 = vmatpush1.msra.mxu0 %v149
    %977 = vmatprep.subr.mxu0 0.0
    %978 = vmatpush1.msra.mxu0 %v150
    %979 = vmatprep.subr.mxu0 0.0
    %980 = vmatpush1.msra.mxu0 0.0
    %981 = vmatprep.subr.mxu0 0.0
    %982 = vmatpush1.msra.mxu0 0.0
    %983 = vmatprep.subr.mxu0 0.0
    %984 = vmatpush1.msra.mxu0 0.0
    %985 = vmatprep.subr.mxu0 0.0
    %986 = vmatpush1.msra.mxu0 0.0
    %987 = vmatprep.subr.mxu0 0.0
    %988 = vmatpush1.msra.mxu0 0.0
    %989 = vmatprep.subr.mxu0 0.0
    %990 = vmatpush1.msra.mxu0 0.0
    %991 = vmatprep.subr.mxu0 0.0
    %992 = vmatpush1.msra.mxu0 0.0
    %993 = vmatprep.subr.mxu0 0.0
    %994 = vmatpush1.msra.mxu0 0.0
    %995 = vmatprep.subr.mxu0 0.0
    %996 = vmatpush1.msra.mxu0 0.0
    %997 = vmatprep.subr.mxu0 0.0
    %998 = vmatpush1.msra.mxu0 0.0
    %999 = vmatprep.subr.mxu0 0.0
    %1000 = vmatpush1.msra.mxu0 0.0
    %1001 = vmatprep.subr.mxu0 0.0
    %1002 = vmatpush1.msra.mxu0 0.0
    %1003 = vmatprep.subr.mxu0 0.0
    %1004 = vmatpush1.msra.mxu0 0.0
    %1005 = vmatprep.subr.mxu0 0.0
    %1006 = vmatpush1.msra.mxu0 0.0
    %1007 = vmatprep.subr.mxu0 0.0
    %1008 = vmatpush1.msra.mxu0 0.0
    %1009 = vmatprep.subr.mxu0 0.0
    %1010 = vmatpush1.msra.mxu0 0.0
    %1011 = vmatprep.subr.mxu0 0.0
    %1012 = vmatpush1.msra.mxu0 0.0
    %1013 = vmatprep.subr.mxu0 0.0
    %1014 = vmatpush1.msra.mxu0 0.0
    %1015 = vmatprep.subr.mxu0 0.0
    %1016 = vmatpush1.msra.mxu0 0.0
    %1017 = vmatprep.subr.mxu0 0.0
    %1018 = vmatpush1.msra.mxu0 0.0
    %1019 = vmatprep.subr.mxu0 0.0
    %1020 = vmatpush1.msra.mxu0 0.0
    %1021 = vmatprep.subr.mxu0 0.0
    %1022 = vmatpush1.msra.mxu0 0.0
    %1023 = vmatprep.subr.mxu0 0.0
    %1024 = vmatpush1.msra.mxu0 0.0
    %1025 = vmatprep.subr.mxu0 0.0
    %1026 = vmatpush1.msra.mxu0 0.0
    %1027 = vmatprep.subr.mxu0 0.0
    %1028 = vmatpush1.msra.mxu0 0.0
    %1029 = vmatprep.subr.mxu0 0.0
    %1030 = vmatpush1.msra.mxu0 0.0
    %1031 = vmatprep.subr.mxu0 0.0
    %1032 = vmatpush1.msra.mxu0 0.0
    %1033 = vmatprep.subr.mxu0 0.0
    %1034 = vmatpush1.msra.mxu0 0.0
    %1035 = vmatprep.mubr.f32.mxu0 0.0
    %1036 = vmatmul.mubr.f32.gmra.mrb[0].mxu0 %v969
    %v1037 = vpop.f32.mrb[0].mxu0
    %v1038 = vadd.f32 0.0, %v1037
    %v1039 = vpop.f32.mrb[0].mxu0
    %1040 = vdwg.mxu0
    %v1042 = vrot.slane %v1038, 6
    %v1044 = vadd.f32 %v144, %v1042
    %v1045 = vtanh.pop %v1044
    %v1047 = vrot.slane %v965, 6
    %1048 = vrot.lane.b32.xlu0 %v1047, 96
    %v1049 = vpop.permute.xlu0 %1048
    %v1050 = vsel %vm155, %v1049, 0
    %1052 = vmatprep.subr.mxu0 0.0
    %1053 = vmatpush1.msra.mxu0 %v151
    %1054 = vmatprep.subr.mxu0 0.0
    %1055 = vmatpush1.msra.mxu0 %v152
    %1056 = vmatprep.subr.mxu0 0.0
    %1057 = vmatpush1.msra.mxu0 %v153
    %1058 = vmatprep.subr.mxu0 0.0
    %1059 = vmatpush1.msra.mxu0 %v154
    %1060 = vmatprep.subr.mxu0 0.0
    %1061 = vmatpush1.msra.mxu0 0.0
    %1062 = vmatprep.subr.mxu0 0.0
    %1063 = vmatpush1.msra.mxu0 0.0
    %1064 = vmatprep.subr.mxu0 0.0
    %1065 = vmatpush1.msra.mxu0 0.0
    %1066 = vmatprep.subr.mxu0 0.0
    %1067 = vmatpush1.msra.mxu0 0.0
    %1068 = vmatprep.subr.mxu0 0.0
    %1069 = vmatpush1.msra.mxu0 0.0
    %1070 = vmatprep.subr.mxu0 0.0
    %1071 = vmatpush1.msra.mxu0 0.0
    %1072 = vmatprep.subr.mxu0 0.0
    %1073 = vmatpush1.msra.mxu0 0.0
    %1074 = vmatprep.subr.mxu0 0.0
    %1075 = vmatpush1.msra.mxu0 0.0
    %1076 = vmatprep.subr.mxu0 0.0
    %1077 = vmatpush1.msra.mxu0 0.0
    %1078 = vmatprep.subr.mxu0 0.0
    %1079 = vmatpush1.msra.mxu0 0.0
    %1080 = vmatprep.subr.mxu0 0.0
    %1081 = vmatpush1.msra.mxu0 0.0
    %1082 = vmatprep.subr.mxu0 0.0
    %1083 = vmatpush1.msra.mxu0 0.0
    %1084 = vmatprep.subr.mxu0 0.0
    %1085 = vmatpush1.msra.mxu0 0.0
    %1086 = vmatprep.subr.mxu0 0.0
    %1087 = vmatpush1.msra.mxu0 0.0
    %1088 = vmatprep.subr.mxu0 0.0
    %1089 = vmatpush1.msra.mxu0 0.0
    %1090 = vmatprep.subr.mxu0 0.0
    %1091 = vmatpush1.msra.mxu0 0.0
    %1092 = vmatprep.subr.mxu0 0.0
    %1093 = vmatpush1.msra.mxu0 0.0
    %1094 = vmatprep.subr.mxu0 0.0
    %1095 = vmatpush1.msra.mxu0 0.0
    %1096 = vmatprep.subr.mxu0 0.0
    %1097 = vmatpush1.msra.mxu0 0.0
    %1098 = vmatprep.subr.mxu0 0.0
    %1099 = vmatpush1.msra.mxu0 0.0
    %1100 = vmatprep.subr.mxu0 0.0
    %1101 = vmatpush1.msra.mxu0 0.0
    %1102 = vmatprep.subr.mxu0 0.0
    %1103 = vmatpush1.msra.mxu0 0.0
    %1104 = vmatprep.subr.mxu0 0.0
    %1105 = vmatpush1.msra.mxu0 0.0
    %1106 = vmatprep.subr.mxu0 0.0
    %1107 = vmatpush1.msra.mxu0 0.0
    %1108 = vmatprep.subr.mxu0 0.0
    %1109 = vmatpush1.msra.mxu0 0.0
    %1110 = vmatprep.subr.mxu0 0.0
    %1111 = vmatpush1.msra.mxu0 0.0
    %1112 = vmatprep.subr.mxu0 0.0
    %1113 = vmatpush1.msra.mxu0 0.0
    %1114 = vmatprep.subr.mxu0 0.0
    %1115 = vmatpush1.msra.mxu0 0.0
    %1116 = vmatprep.mubr.f32.mxu0 0.0
    %1117 = vmatmul.mubr.f32.gmra.mrb[0].mxu0 %v1050
    %v1118 = vpop.f32.mrb[0].mxu0
    %v1119 = vadd.f32 0.0, %v1118
    %v1120 = vpop.f32.mrb[0].mxu0
    %1121 = vdwg.mxu0
    %v1123 = vrot.slane %v1119, 4
    %1124 = vrot.lane.b32.xlu0 %v1123, 32
    %v1125 = vpop.permute.xlu0 %1124
    %v1127 = vadd.f32 %v139, %v1125
    %v1128 = vtanh.pop %v1127
    %1129 = vst.msk [vmem:[%s5 + $0x8] sm:$0xc] %vm473, %v1045
    %1130 = vst.msk [vmem:[%s5] sm:$0x30] %vm475, %v1128
    %v1132 = vrot.slane %v1045, 2
    %v1133 = vsel %vm155, %v1132, 0
    %1135 = vmatprep.subr.mxu0 0.0
    %1136 = vmatpush1.msra.mxu0 %v147
    %1137 = vmatprep.subr.mxu0 0.0
    %1138 = vmatpush1.msra.mxu0 %v148
    %1139 = vmatprep.subr.mxu0 0.0
    %1140 = vmatpush1.msra.mxu0 %v149
    %1141 = vmatprep.subr.mxu0 0.0
    %1142 = vmatpush1.msra.mxu0 %v150
    %1143 = vmatprep.subr.mxu0 0.0
    %1144 = vmatpush1.msra.mxu0 0.0
    %1145 = vmatprep.subr.mxu0 0.0
    %1146 = vmatpush1.msra.mxu0 0.0
    %1147 = vmatprep.subr.mxu0 0.0
    %1148 = vmatpush1.msra.mxu0 0.0
    %1149 = vmatprep.subr.mxu0 0.0
    %1150 = vmatpush1.msra.mxu0 0.0
    %1151 = vmatprep.subr.mxu0 0.0
    %1152 = vmatpush1.msra.mxu0 0.0
    %1153 = vmatprep.subr.mxu0 0.0
    %1154 = vmatpush1.msra.mxu0 0.0
    %1155 = vmatprep.subr.mxu0 0.0
    %1156 = vmatpush1.msra.mxu0 0.0
    %1157 = vmatprep.subr.mxu0 0.0
    %1158 = vmatpush1.msra.mxu0 0.0
    %1159 = vmatprep.subr.mxu0 0.0
    %1160 = vmatpush1.msra.mxu0 0.0
    %1161 = vmatprep.subr.mxu0 0.0
    %1162 = vmatpush1.msra.mxu0 0.0
    %1163 = vmatprep.subr.mxu0 0.0
    %1164 = vmatpush1.msra.mxu0 0.0
    %1165 = vmatprep.subr.mxu0 0.0
    %1166 = vmatpush1.msra.mxu0 0.0
    %1167 = vmatprep.subr.mxu0 0.0
    %1168 = vmatpush1.msra.mxu0 0.0
    %1169 = vmatprep.subr.mxu0 0.0
    %1170 = vmatpush1.msra.mxu0 0.0
    %1171 = vmatprep.subr.mxu0 0.0
    %1172 = vmatpush1.msra.mxu0 0.0
    %1173 = vmatprep.subr.mxu0 0.0
    %1174 = vmatpush1.msra.mxu0 0.0
    %1175 = vmatprep.subr.mxu0 0.0
    %1176 = vmatpush1.msra.mxu0 0.0
    %1177 = vmatprep.subr.mxu0 0.0
    %1178 = vmatpush1.msra.mxu0 0.0
    %1179 = vmatprep.subr.mxu0 0.0
    %1180 = vmatpush1.msra.mxu0 0.0
    %1181 = vmatprep.subr.mxu0 0.0
    %1182 = vmatpush1.msra.mxu0 0.0
    %1183 = vmatprep.subr.mxu0 0.0
    %1184 = vmatpush1.msra.mxu0 0.0
    %1185 = vmatprep.subr.mxu0 0.0
    %1186 = vmatpush1.msra.mxu0 0.0
    %1187 = vmatprep.subr.mxu0 0.0
    %1188 = vmatpush1.msra.mxu0 0.0
    %1189 = vmatprep.subr.mxu0 0.0
    %1190 = vmatpush1.msra.mxu0 0.0
    %1191 = vmatprep.subr.mxu0 0.0
    %1192 = vmatpush1.msra.mxu0 0.0
    %1193 = vmatprep.subr.mxu0 0.0
    %1194 = vmatpush1.msra.mxu0 0.0
    %1195 = vmatprep.subr.mxu0 0.0
    %1196 = vmatpush1.msra.mxu0 0.0
    %1197 = vmatprep.subr.mxu0 0.0
    %1198 = vmatpush1.msra.mxu0 0.0
    %1199 = vmatprep.mubr.f32.mxu0 0.0
    %1200 = vmatmul.mubr.f32.gmra.mrb[0].mxu0 %v1133
    %v1201 = vpop.f32.mrb[0].mxu0
    %v1202 = vadd.f32 0.0, %v1201
    %v1203 = vpop.f32.mrb[0].mxu0
    %1204 = vdwg.mxu0
    %v1206 = vrot.slane %v1202, 4
    %v1208 = vadd.f32 %v144, %v1206
    %v1209 = vtanh.pop %v1208
    %v1211 = vrot.slane %v1128, 4
    %1212 = vrot.lane.b32.xlu0 %v1211, 96
    %v1213 = vpop.permute.xlu0 %1212
    %v1214 = vsel %vm155, %v1213, 0
    %1216 = vmatprep.subr.mxu0 0.0
    %1217 = vmatpush1.msra.mxu0 %v151
    %1218 = vmatprep.subr.mxu0 0.0
    %1219 = vmatpush1.msra.mxu0 %v152
    %1220 = vmatprep.subr.mxu0 0.0
    %1221 = vmatpush1.msra.mxu0 %v153
    %1222 = vmatprep.subr.mxu0 0.0
    %1223 = vmatpush1.msra.mxu0 %v154
    %1224 = vmatprep.subr.mxu0 0.0
    %1225 = vmatpush1.msra.mxu0 0.0
    %1226 = vmatprep.subr.mxu0 0.0
    %1227 = vmatpush1.msra.mxu0 0.0
    %1228 = vmatprep.subr.mxu0 0.0
    %1229 = vmatpush1.msra.mxu0 0.0
    %1230 = vmatprep.subr.mxu0 0.0
    %1231 = vmatpush1.msra.mxu0 0.0
    %1232 = vmatprep.subr.mxu0 0.0
    %1233 = vmatpush1.msra.mxu0 0.0
    %1234 = vmatprep.subr.mxu0 0.0
    %1235 = vmatpush1.msra.mxu0 0.0
    %1236 = vmatprep.subr.mxu0 0.0
    %1237 = vmatpush1.msra.mxu0 0.0
    %1238 = vmatprep.subr.mxu0 0.0
    %1239 = vmatpush1.msra.mxu0 0.0
    %1240 = vmatprep.subr.mxu0 0.0
    %1241 = vmatpush1.msra.mxu0 0.0
    %1242 = vmatprep.subr.mxu0 0.0
    %1243 = vmatpush1.msra.mxu0 0.0
    %1244 = vmatprep.subr.mxu0 0.0
    %1245 = vmatpush1.msra.mxu0 0.0
    %1246 = vmatprep.subr.mxu0 0.0
    %1247 = vmatpush1.msra.mxu0 0.0
    %1248 = vmatprep.subr.mxu0 0.0
    %1249 = vmatpush1.msra.mxu0 0.0
    %1250 = vmatprep.subr.mxu0 0.0
    %1251 = vmatpush1.msra.mxu0 0.0
    %1252 = vmatprep.subr.mxu0 0.0
    %1253 = vmatpush1.msra.mxu0 0.0
    %1254 = vmatprep.subr.mxu0 0.0
    %1255 = vmatpush1.msra.mxu0 0.0
    %1256 = vmatprep.subr.mxu0 0.0
    %1257 = vmatpush1.msra.mxu0 0.0
    %1258 = vmatprep.subr.mxu0 0.0
    %1259 = vmatpush1.msra.mxu0 0.0
    %1260 = vmatprep.subr.mxu0 0.0
    %1261 = vmatpush1.msra.mxu0 0.0
    %1262 = vmatprep.subr.mxu0 0.0
    %1263 = vmatpush1.msra.mxu0 0.0
    %1264 = vmatprep.subr.mxu0 0.0
    %1265 = vmatpush1.msra.mxu0 0.0
    %1266 = vmatprep.subr.mxu0 0.0
    %1267 = vmatpush1.msra.mxu0 0.0
    %1268 = vmatprep.subr.mxu0 0.0
    %1269 = vmatpush1.msra.mxu0 0.0
    %1270 = vmatprep.subr.mxu0 0.0
    %1271 = vmatpush1.msra.mxu0 0.0
    %1272 = vmatprep.subr.mxu0 0.0
    %1273 = vmatpush1.msra.mxu0 0.0
    %1274 = vmatprep.subr.mxu0 0.0
    %1275 = vmatpush1.msra.mxu0 0.0
    %1276 = vmatprep.subr.mxu0 0.0
    %1277 = vmatpush1.msra.mxu0 0.0
    %1278 = vmatprep.subr.mxu0 0.0
    %1279 = vmatpush1.msra.mxu0 0.0
    %1280 = vmatprep.mubr.f32.mxu0 0.0
    %1281 = vmatmul.mubr.f32.gmra.mrb[0].mxu0 %v1214
    %v1282 = vpop.f32.mrb[0].mxu0
    %v1283 = vadd.f32 0.0, %v1282
    %v1284 = vpop.f32.mrb[0].mxu0
    %1285 = vdwg.mxu0
    %v1287 = vrot.slane %v1283, 6
    %1288 = vrot.lane.b32.xlu0 %v1287, 32
    %v1289 = vpop.permute.xlu0 %1288
    %v1291 = vadd.f32 %v139, %v1289
    %v1292 = vtanh.pop %v1291
    %1293 = vst.msk [vmem:[%s5 + $0x8] sm:$0x30] %vm639, %v1209
    %1294 = vst.msk [vmem:[%s5] sm:$0xc] %vm641, %v1292
    %v1296 = vrot.slane %v1209, 4
    %v1297 = vsel %vm155, %v1296, 0
    %1299 = vmatprep.subr.mxu0 0.0
    %1300 = vmatpush1.msra.mxu0 %v147
    %1301 = vmatprep.subr.mxu0 0.0
    %1302 = vmatpush1.msra.mxu0 %v148
    %1303 = vmatprep.subr.mxu0 0.0
    %1304 = vmatpush1.msra.mxu0 %v149
    %1305 = vmatprep.subr.mxu0 0.0
    %1306 = vmatpush1.msra.mxu0 %v150
    %1307 = vmatprep.subr.mxu0 0.0
    %1308 = vmatpush1.msra.mxu0 0.0
    %1309 = vmatprep.subr.mxu0 0.0
    %1310 = vmatpush1.msra.mxu0 0.0
    %1311 = vmatprep.subr.mxu0 0.0
    %1312 = vmatpush1.msra.mxu0 0.0
    %1313 = vmatprep.subr.mxu0 0.0
    %1314 = vmatpush1.msra.mxu0 0.0
    %1315 = vmatprep.subr.mxu0 0.0
    %1316 = vmatpush1.msra.mxu0 0.0
    %1317 = vmatprep.subr.mxu0 0.0
    %1318 = vmatpush1.msra.mxu0 0.0
    %1319 = vmatprep.subr.mxu0 0.0
    %1320 = vmatpush1.msra.mxu0 0.0
    %1321 = vmatprep.subr.mxu0 0.0
    %1322 = vmatpush1.msra.mxu0 0.0
    %1323 = vmatprep.subr.mxu0 0.0
    %1324 = vmatpush1.msra.mxu0 0.0
    %1325 = vmatprep.subr.mxu0 0.0
    %1326 = vmatpush1.msra.mxu0 0.0
    %1327 = vmatprep.subr.mxu0 0.0
    %1328 = vmatpush1.msra.mxu0 0.0
    %1329 = vmatprep.subr.mxu0 0.0
    %1330 = vmatpush1.msra.mxu0 0.0
    %1331 = vmatprep.subr.mxu0 0.0
    %1332 = vmatpush1.msra.mxu0 0.0
    %1333 = vmatprep.subr.mxu0 0.0
    %1334 = vmatpush1.msra.mxu0 0.0
    %1335 = vmatprep.subr.mxu0 0.0
    %1336 = vmatpush1.msra.mxu0 0.0
    %1337 = vmatprep.subr.mxu0 0.0
    %1338 = vmatpush1.msra.mxu0 0.0
    %1339 = vmatprep.subr.mxu0 0.0
    %1340 = vmatpush1.msra.mxu0 0.0
    %1341 = vmatprep.subr.mxu0 0.0
    %1342 = vmatpush1.msra.mxu0 0.0
    %1343 = vmatprep.subr.mxu0 0.0
    %1344 = vmatpush1.msra.mxu0 0.0
    %1345 = vmatprep.subr.mxu0 0.0
    %1346 = vmatpush1.msra.mxu0 0.0
    %1347 = vmatprep.subr.mxu0 0.0
    %1348 = vmatpush1.msra.mxu0 0.0
    %1349 = vmatprep.subr.mxu0 0.0
    %1350 = vmatpush1.msra.mxu0 0.0
    %1351 = vmatprep.subr.mxu0 0.0
    %1352 = vmatpush1.msra.mxu0 0.0
    %1353 = vmatprep.subr.mxu0 0.0
    %1354 = vmatpush1.msra.mxu0 0.0
    %1355 = vmatprep.subr.mxu0 0.0
    %1356 = vmatpush1.msra.mxu0 0.0
    %1357 = vmatprep.subr.mxu0 0.0
    %1358 = vmatpush1.msra.mxu0 0.0
    %1359 = vmatprep.subr.mxu0 0.0
    %1360 = vmatpush1.msra.mxu0 0.0
    %1361 = vmatprep.subr.mxu0 0.0
    %1362 = vmatpush1.msra.mxu0 0.0
    %1363 = vmatprep.mubr.f32.mxu0 0.0
    %1364 = vmatmul.mubr.f32.gmra.mrb[0].mxu0 %v1297
    %v1365 = vpop.f32.mrb[0].mxu0
    %v1366 = vadd.f32 0.0, %v1365
    %v1367 = vpop.f32.mrb[0].mxu0
    %1368 = vdwg.mxu0
    %v1370 = vrot.slane %v1366, 2
    %v1372 = vadd.f32 %v144, %v1370
    %v1373 = vtanh.pop %v1372
    %v1375 = vrot.slane %v1292, 2
    %1376 = vrot.lane.b32.xlu0 %v1375, 96
    %v1377 = vpop.permute.xlu0 %1376
    %v1378 = vsel %vm155, %v1377, 0
    %1380 = vmatprep.subr.mxu0 0.0
    %1381 = vmatpush1.msra.mxu0 %v151
    %1382 = vmatprep.subr.mxu0 0.0
    %1383 = vmatpush1.msra.mxu0 %v152
    %1384 = vmatprep.subr.mxu0 0.0
    %1385 = vmatpush1.msra.mxu0 %v153
    %1386 = vmatprep.subr.mxu0 0.0
    %1387 = vmatpush1.msra.mxu0 %v154
    %1388 = vmatprep.subr.mxu0 0.0
    %1389 = vmatpush1.msra.mxu0 0.0
    %1390 = vmatprep.subr.mxu0 0.0
    %1391 = vmatpush1.msra.mxu0 0.0
    %1392 = vmatprep.subr.mxu0 0.0
    %1393 = vmatpush1.msra.mxu0 0.0
    %1394 = vmatprep.subr.mxu0 0.0
    %1395 = vmatpush1.msra.mxu0 0.0
    %1396 = vmatprep.subr.mxu0 0.0
    %1397 = vmatpush1.msra.mxu0 0.0
    %1398 = vmatprep.subr.mxu0 0.0
    %1399 = vmatpush1.msra.mxu0 0.0
    %1400 = vmatprep.subr.mxu0 0.0
    %1401 = vmatpush1.msra.mxu0 0.0
    %1402 = vmatprep.subr.mxu0 0.0
    %1403 = vmatpush1.msra.mxu0 0.0
    %1404 = vmatprep.subr.mxu0 0.0
    %1405 = vmatpush1.msra.mxu0 0.0
    %1406 = vmatprep.subr.mxu0 0.0
    %1407 = vmatpush1.msra.mxu0 0.0
    %1408 = vmatprep.subr.mxu0 0.0
    %1409 = vmatpush1.msra.mxu0 0.0
    %1410 = vmatprep.subr.mxu0 0.0
    %1411 = vmatpush1.msra.mxu0 0.0
    %1412 = vmatprep.subr.mxu0 0.0
    %1413 = vmatpush1.msra.mxu0 0.0
    %1414 = vmatprep.subr.mxu0 0.0
    %1415 = vmatpush1.msra.mxu0 0.0
    %1416 = vmatprep.subr.mxu0 0.0
    %1417 = vmatpush1.msra.mxu0 0.0
    %1418 = vmatprep.subr.mxu0 0.0
    %1419 = vmatpush1.msra.mxu0 0.0
    %1420 = vmatprep.subr.mxu0 0.0
    %1421 = vmatpush1.msra.mxu0 0.0
    %1422 = vmatprep.subr.mxu0 0.0
    %1423 = vmatpush1.msra.mxu0 0.0
    %1424 = vmatprep.subr.mxu0 0.0
    %1425 = vmatpush1.msra.mxu0 0.0
    %1426 = vmatprep.subr.mxu0 0.0
    %1427 = vmatpush1.msra.mxu0 0.0
    %1428 = vmatprep.subr.mxu0 0.0
    %1429 = vmatpush1.msra.mxu0 0.0
    %1430 = vmatprep.subr.mxu0 0.0
    %1431 = vmatpush1.msra.mxu0 0.0
    %1432 = vmatprep.subr.mxu0 0.0
    %1433 = vmatpush1.msra.mxu0 0.0
    %1434 = vmatprep.subr.mxu0 0.0
    %1435 = vmatpush1.msra.mxu0 0.0
    %1436 = vmatprep.subr.mxu0 0.0
    %1437 = vmatpush1.msra.mxu0 0.0
    %1438 = vmatprep.subr.mxu0 0.0
    %1439 = vmatpush1.msra.mxu0 0.0
    %1440 = vmatprep.subr.mxu0 0.0
    %1441 = vmatpush1.msra.mxu0 0.0
    %1442 = vmatprep.subr.mxu0 0.0
    %1443 = vmatpush1.msra.mxu0 0.0
    %1444 = vmatprep.mubr.f32.mxu0 0.0
    %1445 = vmatmul.mubr.f32.gmra.mrb[0].mxu0 %v1378
    %v1446 = vpop.f32.mrb[0].mxu0
    %v1447 = vadd.f32 0.0, %v1446
    %v1448 = vpop.f32.mrb[0].mxu0
    %1449 = vdwg.mxu0
    %1451 = vrot.lane.b32.xlu0 %v1447, 32
    %v1452 = vpop.permute.xlu0 %1451
    %v1454 = vadd.f32 %v139, %v1452
    %v1455 = vtanh.pop %v1454
    %1456 = vst.msk [vmem:[%s5 + $0x8] sm:$0xc0] %vm804, %v1373
    %1457 = vst.msk [vmem:[%s5] sm:$0x3] %vm806, %v1455
    // Predicated region
    $region30: #{ner_forward.4} parent=1 // pred_check
      _
    $region31: #{ner_forward.4} parent=1 // pred_check_branch
      %1459 = sbr.rel (0) target = $region33
    $region32: #{ner_forward.4} parent=1 // pred_region
      _
    $region33: #{ner_forward.4} parent=1 // pred_fallthru
      _
    // Predicated region
    $region34: #{ner_forward.4} parent=1 // pred_check
      _
    $region35: #{ner_forward.4} parent=1 // pred_check_branch
      %1461 = sbr.rel (0) target = $region37
    $region36: #{ner_forward.4} parent=1 // pred_region
      _
    $region37: #{ner_forward.4} parent=1 // pred_fallthru
      _
    %1462 = vsyncpa [#allocation3], 1
    %1463 = vsyncpa [#allocation5], 1

// kernel: ner_forward.5
$region0: #{ner_forward.5}
  #allocation0 [shape = 'u32[]', space=smem, size = 0x4, offset = 0x4, fixed_abs, tag = 'smem constant byte address 0x4 - core index']
  #allocation1 [shape = 'u32[144,128]{1,0:T(1,128)}', space=vmem, size = 0x12000, scoped, tag = 'internal scratch']
  %s0 = inlined_call_operand.vmem [shape: f32[16,64], index: 0, kind: input, shape index: {}]
  %s1 = inlined_call_operand.vmem [shape: f32[64,512], index: 1, kind: input, shape index: {}]
  %s2 = inlined_call_operand.vmem [shape: f32[1,512], index: 2, kind: input, shape index: {}]
  %s3 = inlined_call_operand.vmem [shape: f32[512,256], index: 3, kind: input, shape index: {}]
  %s4 = inlined_call_operand.vmem [shape: f32[1,256], index: 4, kind: input, shape index: {}]
  %s5 = inlined_call_operand.vmem [shape: f32[256,128], index: 5, kind: input, shape index: {}]
  %s6 = inlined_call_operand.vmem [shape: f32[1,128], index: 6, kind: input, shape index: {}]
  %s7 = inlined_call_operand.vmem [shape: f32[16,128], index: 7, kind: output, shape index: {}]
  %s8 = sld [smem:[#allocation0]]
  $region38: #{ner_forward.5} parent=0
    _
  %s10 = ssub.s32 1, %s8
  %s11 = scalar_select 0, %s10, %s8
  // Predicated region
  $region2: #{ner_forward.5} parent=0 // pred_check
    _
  $region3: #{ner_forward.5} parent=0 // pred_check_branch
    %13 = sbr.rel (0) target = $region5
  $region4: #{ner_forward.5} parent=0 // pred_region
    _
  $region5: #{ner_forward.5} parent=0 // pred_fallthru
    _
  // Predicated region
  $region6: #{ner_forward.5} parent=0 // pred_check
    _
  $region7: #{ner_forward.5} parent=0 // pred_check_branch
    %15 = sbr.rel (0) target = $region9
  $region8: #{ner_forward.5} parent=0 // pred_region
    _
  $region9: #{ner_forward.5} parent=0 // pred_fallthru
    _
  // Predicated region
  $region10: #{ner_forward.5} parent=0 // pred_check
    _
  $region11: #{ner_forward.5} parent=0 // pred_check_branch
    %17 = sbr.rel (0) target = $region13
  $region12: #{ner_forward.5} parent=0 // pred_region
    _
  $region13: #{ner_forward.5} parent=0 // pred_fallthru
    _
  // Predicated region
  $region14: #{ner_forward.5} parent=0 // pred_check
    _
  $region15: #{ner_forward.5} parent=0 // pred_check_branch
    %19 = sbr.rel (0) target = $region17
  $region16: #{ner_forward.5} parent=0 // pred_region
    _
  $region17: #{ner_forward.5} parent=0 // pred_fallthru
    _
  // Predicated region
  $region18: #{ner_forward.5} parent=0 // pred_check
    _
  $region19: #{ner_forward.5} parent=0 // pred_check_branch
    %21 = sbr.rel (0) target = $region21
  $region20: #{ner_forward.5} parent=0 // pred_region
    _
  $region21: #{ner_forward.5} parent=0 // pred_fallthru
    _
  // Predicated region
  $region22: #{ner_forward.5} parent=0 // pred_check
    _
  $region23: #{ner_forward.5} parent=0 // pred_check_branch
    %23 = sbr.rel (0) target = $region25
  $region24: #{ner_forward.5} parent=0 // pred_region
    _
  $region25: #{ner_forward.5} parent=0 // pred_fallthru
    _
  // Predicated region
  $region26: #{ner_forward.5} parent=0 // pred_check
    _
  $region27: #{ner_forward.5} parent=0 // pred_check_branch
    %25 = sbr.rel (0) target = $region29
  $region28: #{ner_forward.5} parent=0 // pred_region
    _
  $region29: #{ner_forward.5} parent=0 // pred_fallthru
    _
  %v26 = vld [vmem:[%s0] sm:$0xff]
  %v27 = vld [vmem:[%s0 + $0x8] sm:$0xff]
  %v28 = vld [vmem:[%s1] sm:$0xff]
  %v29 = vld [vmem:[%s1 + $0x8] sm:$0xff]
  %v30 = vld [vmem:[%s1 + $0x10] sm:$0xff]
  %v31 = vld [vmem:[%s1 + $0x18] sm:$0xff]
  %v32 = vld [vmem:[%s1 + $0x20] sm:$0xff]
  %v33 = vld [vmem:[%s1 + $0x28] sm:$0xff]
  %v34 = vld [vmem:[%s1 + $0x30] sm:$0xff]
  %v35 = vld [vmem:[%s1 + $0x38] sm:$0xff]
  %v36 = vld [vmem:[%s1 + $0x40] sm:$0xff]
  %v37 = vld [vmem:[%s1 + $0x48] sm:$0xff]
  %v38 = vld [vmem:[%s1 + $0x50] sm:$0xff]
  %v39 = vld [vmem:[%s1 + $0x58] sm:$0xff]
  %v40 = vld [vmem:[%s1 + $0x60] sm:$0xff]
  %v41 = vld [vmem:[%s1 + $0x68] sm:$0xff]
  %v42 = vld [vmem:[%s1 + $0x70] sm:$0xff]
  %v43 = vld [vmem:[%s1 + $0x78] sm:$0xff]
  %v44 = vld [vmem:[%s1 + $0x80] sm:$0xff]
  %v45 = vld [vmem:[%s1 + $0x88] sm:$0xff]
  %v46 = vld [vmem:[%s1 + $0x90] sm:$0xff]
  %v47 = vld [vmem:[%s1 + $0x98] sm:$0xff]
  %v48 = vld [vmem:[%s1 + $0xa0] sm:$0xff]
  %v49 = vld [vmem:[%s1 + $0xa8] sm:$0xff]
  %v50 = vld [vmem:[%s1 + $0xb0] sm:$0xff]
  %v51 = vld [vmem:[%s1 + $0xb8] sm:$0xff]
  %v52 = vld [vmem:[%s1 + $0xc0] sm:$0xff]
  %v53 = vld [vmem:[%s1 + $0xc8] sm:$0xff]
  %v54 = vld [vmem:[%s1 + $0xd0] sm:$0xff]
  %v55 = vld [vmem:[%s1 + $0xd8] sm:$0xff]
  %v56 = vld [vmem:[%s1 + $0xe0] sm:$0xff]
  %v57 = vld [vmem:[%s1 + $0xe8] sm:$0xff]
  %v58 = vld [vmem:[%s1 + $0xf0] sm:$0xff]
  %v59 = vld [vmem:[%s1 + $0xf8] sm:$0xff]
  %v60 = vld [vmem:[%s2] sm:$0xf]
  %v62 = vlaneseq
  %v63 = vshrl.u32 %v62, 7
  %v64 = vsub.s32 0, %v63
  %v65 = vrot.slane %v60, %v64
  %v66 = vlaneseq
  %v67 = vshrl.u32 %v66, 7
  %v68 = vsub.s32 1, %v67
  %v69 = vrot.slane %v60, %v68
  %v70 = vlaneseq
  %v71 = vshrl.u32 %v70, 7
  %v72 = vsub.s32 2, %v71
  %v73 = vrot.slane %v60, %v72
  %v74 = vlaneseq
  %v75 = vshrl.u32 %v74, 7
  %v76 = vsub.s32 3, %v75
  %v77 = vrot.slane %v60, %v76
  %vm82 = vcmask 523264
  %v84 = vsel %vm82, %v26, 0
  %v87 = vsel %vm82, %v27, 0
  %89 = vmatprep.subr.mxu0 %v29
  %90 = vmatpush1.msra.mxu0 %v28
  %91 = vmatprep.subr.mxu0 %v33
  %92 = vmatpush1.msra.mxu0 %v32
  %93 = vmatprep.subr.mxu0 %v37
  %94 = vmatpush1.msra.mxu0 %v36
  %95 = vmatprep.subr.mxu0 %v41
  %96 = vmatpush1.msra.mxu0 %v40
  %97 = vmatprep.subr.mxu0 %v45
  %98 = vmatpush1.msra.mxu0 %v44
  %99 = vmatprep.subr.mxu0 %v49
  %100 = vmatpush1.msra.mxu0 %v48
  %101 = vmatprep.subr.mxu0 %v53
  %102 = vmatpush1.msra.mxu0 %v52
  %103 = vmatprep.subr.mxu0 %v57
  %104 = vmatpush1.msra.mxu0 %v56
  %105 = vmatprep.subr.mxu0 0.0
  %106 = vmatpush1.msra.mxu0 0.0
  %107 = vmatprep.subr.mxu0 0.0
  %108 = vmatpush1.msra.mxu0 0.0
  %109 = vmatprep.subr.mxu0 0.0
  %110 = vmatpush1.msra.mxu0 0.0
  %111 = vmatprep.subr.mxu0 0.0
  %112 = vmatpush1.msra.mxu0 0.0
  %113 = vmatprep.subr.mxu0 0.0
  %114 = vmatpush1.msra.mxu0 0.0
  %115 = vmatprep.subr.mxu0 0.0
  %116 = vmatpush1.msra.mxu0 0.0
  %117 = vmatprep.subr.mxu0 0.0
  %118 = vmatpush1.msra.mxu0 0.0
  %119 = vmatprep.subr.mxu0 0.0
  %120 = vmatpush1.msra.mxu0 0.0
  %121 = vmatprep.subr.mxu0 0.0
  %122 = vmatpush1.msra.mxu0 0.0
  %123 = vmatprep.subr.mxu0 0.0
  %124 = vmatpush1.msra.mxu0 0.0
  %125 = vmatprep.subr.mxu0 0.0
  %126 = vmatpush1.msra.mxu0 0.0
  %127 = vmatprep.subr.mxu0 0.0
  %128 = vmatpush1.msra.mxu0 0.0
  %129 = vmatprep.subr.mxu0 0.0
  %130 = vmatpush1.msra.mxu0 0.0
  %131 = vmatprep.subr.mxu0 0.0
  %132 = vmatpush1.msra.mxu0 0.0
  %133 = vmatprep.subr.mxu0 0.0
  %134 = vmatpush1.msra.mxu0 0.0
  %135 = vmatprep.subr.mxu0 0.0
  %136 = vmatpush1.msra.mxu0 0.0
  %137 = vmatprep.subr.mxu0 0.0
  %138 = vmatpush1.msra.mxu0 0.0
  %139 = vmatprep.subr.mxu0 0.0
  %140 = vmatpush1.msra.mxu0 0.0
  %141 = vmatprep.subr.mxu0 0.0
  %142 = vmatpush1.msra.mxu0 0.0
  %143 = vmatprep.subr.mxu0 0.0
  %144 = vmatpush1.msra.mxu0 0.0
  %145 = vmatprep.subr.mxu0 0.0
  %146 = vmatpush1.msra.mxu0 0.0
  %147 = vmatprep.subr.mxu0 0.0
  %148 = vmatpush1.msra.mxu0 0.0
  %149 = vmatprep.subr.mxu0 0.0
  %150 = vmatpush1.msra.mxu0 0.0
  %151 = vmatprep.subr.mxu0 0.0
  %152 = vmatpush1.msra.mxu0 0.0
  %153 = vmatprep.mubr.f32.mxu0 0.0
  %154 = vmatmul.mubr.f32.gmra.mrb[0].mxu0 %v84
  %v155 = vpop.f32.mrb[0].mxu0
  %v156 = vadd.f32 %v65, %v155
  %v157 = vpop.f32.mrb[0].mxu0
  %v158 = vadd.f32 %v69, %v157
  %159 = vmatprep.mubr.f32.mxu0 0.0
  %160 = vmatmul.mubr.f32.gmra.mrb[0].mxu0 %v87
  %v161 = vpop.f32.mrb[0].mxu0
  %v162 = vadd.f32 %v65, %v161
  %v163 = vpop.f32.mrb[0].mxu0
  %v164 = vadd.f32 %v69, %v163
  %165 = vdwg.mxu0
  %166 = vmatprep.subr.mxu0 %v31
  %167 = vmatpush1.msra.mxu0 %v30
  %168 = vmatprep.subr.mxu0 %v35
  %169 = vmatpush1.msra.mxu0 %v34
  %170 = vmatprep.subr.mxu0 %v39
  %171 = vmatpush1.msra.mxu0 %v38
  %172 = vmatprep.subr.mxu0 %v43
  %173 = vmatpush1.msra.mxu0 %v42
  %174 = vmatprep.subr.mxu0 %v47
  %175 = vmatpush1.msra.mxu0 %v46
  %176 = vmatprep.subr.mxu0 %v51
  %177 = vmatpush1.msra.mxu0 %v50
  %178 = vmatprep.subr.mxu0 %v55
  %179 = vmatpush1.msra.mxu0 %v54
  %180 = vmatprep.subr.mxu0 %v59
  %181 = vmatpush1.msra.mxu0 %v58
  %182 = vmatprep.subr.mxu0 0.0
  %183 = vmatpush1.msra.mxu0 0.0
  %184 = vmatprep.subr.mxu0 0.0
  %185 = vmatpush1.msra.mxu0 0.0
  %186 = vmatprep.subr.mxu0 0.0
  %187 = vmatpush1.msra.mxu0 0.0
  %188 = vmatprep.subr.mxu0 0.0
  %189 = vmatpush1.msra.mxu0 0.0
  %190 = vmatprep.subr.mxu0 0.0
  %191 = vmatpush1.msra.mxu0 0.0
  %192 = vmatprep.subr.mxu0 0.0
  %193 = vmatpush1.msra.mxu0 0.0
  %194 = vmatprep.subr.mxu0 0.0
  %195 = vmatpush1.msra.mxu0 0.0
  %196 = vmatprep.subr.mxu0 0.0
  %197 = vmatpush1.msra.mxu0 0.0
  %198 = vmatprep.subr.mxu0 0.0
  %199 = vmatpush1.msra.mxu0 0.0
  %200 = vmatprep.subr.mxu0 0.0
  %201 = vmatpush1.msra.mxu0 0.0
  %202 = vmatprep.subr.mxu0 0.0
  %203 = vmatpush1.msra.mxu0 0.0
  %204 = vmatprep.subr.mxu0 0.0
  %205 = vmatpush1.msra.mxu0 0.0
  %206 = vmatprep.subr.mxu0 0.0
  %207 = vmatpush1.msra.mxu0 0.0
  %208 = vmatprep.subr.mxu0 0.0
  %209 = vmatpush1.msra.mxu0 0.0
  %210 = vmatprep.subr.mxu0 0.0
  %211 = vmatpush1.msra.mxu0 0.0
  %212 = vmatprep.subr.mxu0 0.0
  %213 = vmatpush1.msra.mxu0 0.0
  %214 = vmatprep.subr.mxu0 0.0
  %215 = vmatpush1.msra.mxu0 0.0
  %216 = vmatprep.subr.mxu0 0.0
  %217 = vmatpush1.msra.mxu0 0.0
  %218 = vmatprep.subr.mxu0 0.0
  %219 = vmatpush1.msra.mxu0 0.0
  %220 = vmatprep.subr.mxu0 0.0
  %221 = vmatpush1.msra.mxu0 0.0
  %222 = vmatprep.subr.mxu0 0.0
  %223 = vmatpush1.msra.mxu0 0.0
  %224 = vmatprep.subr.mxu0 0.0
  %225 = vmatpush1.msra.mxu0 0.0
  %226 = vmatprep.subr.mxu0 0.0
  %227 = vmatpush1.msra.mxu0 0.0
  %228 = vmatprep.subr.mxu0 0.0
  %229 = vmatpush1.msra.mxu0 0.0
  %230 = vmatprep.mubr.f32.mxu0 0.0
  %231 = vmatmul.mubr.f32.gmra.mrb[0].mxu0 %v84
  %v232 = vpop.f32.mrb[0].mxu0
  %v233 = vadd.f32 %v73, %v232
  %v234 = vpop.f32.mrb[0].mxu0
  %v235 = vadd.f32 %v77, %v234
  %236 = vmatprep.mubr.f32.mxu0 0.0
  %237 = vmatmul.mubr.f32.gmra.mrb[0].mxu0 %v87
  %v238 = vpop.f32.mrb[0].mxu0
  %v239 = vadd.f32 %v73, %v238
  %v240 = vpop.f32.mrb[0].mxu0
  %v241 = vadd.f32 %v77, %v240
  %242 = vdwg.mxu0
  %v243 = vmax.f32 %v156, 0.0
  %v244 = vmax.f32 %v158, 0.0
  %v245 = vmax.f32 %v233, 0.0
  %v246 = vmax.f32 %v235, 0.0
  %v247 = vmax.f32 %v162, 0.0
  %v248 = vmax.f32 %v164, 0.0
  %v249 = vmax.f32 %v239, 0.0
  %v250 = vmax.f32 %v241, 0.0
  %v251 = vld [vmem:[%s3] sm:$0xff]
  %v252 = vld [vmem:[%s3 + $0x8] sm:$0xff]
  %v253 = vld [vmem:[%s3 + $0x10] sm:$0xff]
  %v254 = vld [vmem:[%s3 + $0x18] sm:$0xff]
  %v255 = vld [vmem:[%s3 + $0x20] sm:$0xff]
  %v256 = vld [vmem:[%s3 + $0x28] sm:$0xff]
  %v257 = vld [vmem:[%s3 + $0x30] sm:$0xff]
  %v258 = vld [vmem:[%s3 + $0x38] sm:$0xff]
  %v259 = vld [vmem:[%s3 + $0x40] sm:$0xff]
  %v260 = vld [vmem:[%s3 + $0x48] sm:$0xff]
  %v261 = vld [vmem:[%s3 + $0x50] sm:$0xff]
  %v262 = vld [vmem:[%s3 + $0x58] sm:$0xff]
  %v263 = vld [vmem:[%s3 + $0x60] sm:$0xff]
  %v264 = vld [vmem:[%s3 + $0x68] sm:$0xff]
  %v265 = vld [vmem:[%s3 + $0x70] sm:$0xff]
  %v266 = vld [vmem:[%s3 + $0x78] sm:$0xff]
  %v267 = vld [vmem:[%s3 + $0x80] sm:$0xff]
  %v268 = vld [vmem:[%s3 + $0x88] sm:$0xff]
  %v269 = vld [vmem:[%s3 + $0x90] sm:$0xff]
  %v270 = vld [vmem:[%s3 + $0x98] sm:$0xff]
  %v271 = vld [vmem:[%s3 + $0xa0] sm:$0xff]
  %v272 = vld [vmem:[%s3 + $0xa8] sm:$0xff]
  %v273 = vld [vmem:[%s3 + $0xb0] sm:$0xff]
  %v274 = vld [vmem:[%s3 + $0xb8] sm:$0xff]
  %v275 = vld [vmem:[%s3 + $0xc0] sm:$0xff]
  %v276 = vld [vmem:[%s3 + $0xc8] sm:$0xff]
  %v277 = vld [vmem:[%s3 + $0xd0] sm:$0xff]
  %v278 = vld [vmem:[%s3 + $0xd8] sm:$0xff]
  %v279 = vld [vmem:[%s3 + $0xe0] sm:$0xff]
  %v280 = vld [vmem:[%s3 + $0xe8] sm:$0xff]
  %v281 = vld [vmem:[%s3 + $0xf0] sm:$0xff]
  %v282 = vld [vmem:[%s3 + $0xf8] sm:$0xff]
  %v283 = vld [vmem:[%s3 + $0x100] sm:$0xff]
  %v284 = vld [vmem:[%s3 + $0x108] sm:$0xff]
  %v285 = vld [vmem:[%s3 + $0x110] sm:$0xff]
  %v286 = vld [vmem:[%s3 + $0x118] sm:$0xff]
  %v287 = vld [vmem:[%s3 + $0x120] sm:$0xff]
  %v288 = vld [vmem:[%s3 + $0x128] sm:$0xff]
  %v289 = vld [vmem:[%s3 + $0x130] sm:$0xff]
  %v290 = vld [vmem:[%s3 + $0x138] sm:$0xff]
  %v291 = vld [vmem:[%s3 + $0x140] sm:$0xff]
  %v292 = vld [vmem:[%s3 + $0x148] sm:$0xff]
  %v293 = vld [vmem:[%s3 + $0x150] sm:$0xff]
  %v294 = vld [vmem:[%s3 + $0x158] sm:$0xff]
  %v295 = vld [vmem:[%s3 + $0x160] sm:$0xff]
  %v296 = vld [vmem:[%s3 + $0x168] sm:$0xff]
  %v297 = vld [vmem:[%s3 + $0x170] sm:$0xff]
  %v298 = vld [vmem:[%s3 + $0x178] sm:$0xff]
  %v299 = vld [vmem:[%s3 + $0x180] sm:$0xff]
  %v300 = vld [vmem:[%s3 + $0x188] sm:$0xff]
  %v301 = vld [vmem:[%s3 + $0x190] sm:$0xff]
  %v302 = vld [vmem:[%s3 + $0x198] sm:$0xff]
  %v303 = vld [vmem:[%s3 + $0x1a0] sm:$0xff]
  %v304 = vld [vmem:[%s3 + $0x1a8] sm:$0xff]
  %v305 = vld [vmem:[%s3 + $0x1b0] sm:$0xff]
  %v306 = vld [vmem:[%s3 + $0x1b8] sm:$0xff]
  %v307 = vld [vmem:[%s3 + $0x1c0] sm:$0xff]
  %v308 = vld [vmem:[%s3 + $0x1c8] sm:$0xff]
  %v309 = vld [vmem:[%s3 + $0x1d0] sm:$0xff]
  %v310 = vld [vmem:[%s3 + $0x1d8] sm:$0xff]
  %v311 = vld [vmem:[%s3 + $0x1e0] sm:$0xff]
  %v312 = vld [vmem:[%s3 + $0x1e8] sm:$0xff]
  %v313 = vld [vmem:[%s3 + $0x1f0] sm:$0xff]
  %v314 = vld [vmem:[%s3 + $0x1f8] sm:$0xff]
  %v315 = vld [vmem:[%s3 + $0x200] sm:$0xff]
  %v316 = vld [vmem:[%s3 + $0x208] sm:$0xff]
  %v317 = vld [vmem:[%s3 + $0x210] sm:$0xff]
  %v318 = vld [vmem:[%s3 + $0x218] sm:$0xff]
  %v319 = vld [vmem:[%s3 + $0x220] sm:$0xff]
  %v320 = vld [vmem:[%s3 + $0x228] sm:$0xff]
  %v321 = vld [vmem:[%s3 + $0x230] sm:$0xff]
  %v322 = vld [vmem:[%s3 + $0x238] sm:$0xff]
  %v323 = vld [vmem:[%s3 + $0x240] sm:$0xff]
  %v324 = vld [vmem:[%s3 + $0x248] sm:$0xff]
  %v325 = vld [vmem:[%s3 + $0x250] sm:$0xff]
  %v326 = vld [vmem:[%s3 + $0x258] sm:$0xff]
  %v327 = vld [vmem:[%s3 + $0x260] sm:$0xff]
  %v328 = vld [vmem:[%s3 + $0x268] sm:$0xff]
  %v329 = vld [vmem:[%s3 + $0x270] sm:$0xff]
  %v330 = vld [vmem:[%s3 + $0x278] sm:$0xff]
  %v331 = vld [vmem:[%s3 + $0x280] sm:$0xff]
  %v332 = vld [vmem:[%s3 + $0x288] sm:$0xff]
  %v333 = vld [vmem:[%s3 + $0x290] sm:$0xff]
  %v334 = vld [vmem:[%s3 + $0x298] sm:$0xff]
  %v335 = vld [vmem:[%s3 + $0x2a0] sm:$0xff]
  %v336 = vld [vmem:[%s3 + $0x2a8] sm:$0xff]
  %v337 = vld [vmem:[%s3 + $0x2b0] sm:$0xff]
  %v338 = vld [vmem:[%s3 + $0x2b8] sm:$0xff]
  %v339 = vld [vmem:[%s3 + $0x2c0] sm:$0xff]
  %v340 = vld [vmem:[%s3 + $0x2c8] sm:$0xff]
  %v341 = vld [vmem:[%s3 + $0x2d0] sm:$0xff]
  %v342 = vld [vmem:[%s3 + $0x2d8] sm:$0xff]
  %v343 = vld [vmem:[%s3 + $0x2e0] sm:$0xff]
  %v344 = vld [vmem:[%s3 + $0x2e8] sm:$0xff]
  %v345 = vld [vmem:[%s3 + $0x2f0] sm:$0xff]
  %v346 = vld [vmem:[%s3 + $0x2f8] sm:$0xff]
  %v347 = vld [vmem:[%s3 + $0x300] sm:$0xff]
  %v348 = vld [vmem:[%s3 + $0x308] sm:$0xff]
  %v349 = vld [vmem:[%s3 + $0x310] sm:$0xff]
  %v350 = vld [vmem:[%s3 + $0x318] sm:$0xff]
  %v351 = vld [vmem:[%s3 + $0x320] sm:$0xff]
  %v352 = vld [vmem:[%s3 + $0x328] sm:$0xff]
  %v353 = vld [vmem:[%s3 + $0x330] sm:$0xff]
  %v354 = vld [vmem:[%s3 + $0x338] sm:$0xff]
  %v355 = vld [vmem:[%s3 + $0x340] sm:$0xff]
  %v356 = vld [vmem:[%s3 + $0x348] sm:$0xff]
  %v357 = vld [vmem:[%s3 + $0x350] sm:$0xff]
  %v358 = vld [vmem:[%s3 + $0x358] sm:$0xff]
  %v359 = vld [vmem:[%s3 + $0x360] sm:$0xff]
  %v360 = vld [vmem:[%s3 + $0x368] sm:$0xff]
  %v361 = vld [vmem:[%s3 + $0x370] sm:$0xff]
  %v362 = vld [vmem:[%s3 + $0x378] sm:$0xff]
  %v363 = vld [vmem:[%s3 + $0x380] sm:$0xff]
  %v364 = vld [vmem:[%s3 + $0x388] sm:$0xff]
  %v365 = vld [vmem:[%s3 + $0x390] sm:$0xff]
  %v366 = vld [vmem:[%s3 + $0x398] sm:$0xff]
  %v367 = vld [vmem:[%s3 + $0x3a0] sm:$0xff]
  %v368 = vld [vmem:[%s3 + $0x3a8] sm:$0xff]
  %v369 = vld [vmem:[%s3 + $0x3b0] sm:$0xff]
  %v370 = vld [vmem:[%s3 + $0x3b8] sm:$0xff]
  %v371 = vld [vmem:[%s3 + $0x3c0] sm:$0xff]
  %v372 = vld [vmem:[%s3 + $0x3c8] sm:$0xff]
  %v373 = vld [vmem:[%s3 + $0x3d0] sm:$0xff]
  %v374 = vld [vmem:[%s3 + $0x3d8] sm:$0xff]
  %v375 = vld [vmem:[%s3 + $0x3e0] sm:$0xff]
  %v376 = vld [vmem:[%s3 + $0x3e8] sm:$0xff]
  %v377 = vld [vmem:[%s3 + $0x3f0] sm:$0xff]
  %v378 = vld [vmem:[%s3 + $0x3f8] sm:$0xff]
  %v379 = vld [vmem:[%s4] sm:$0x3]
  %v381 = vlaneseq
  %v382 = vshrl.u32 %v381, 7
  %v383 = vsub.s32 0, %v382
  %v384 = vrot.slane %v379, %v383
  %v385 = vlaneseq
  %v386 = vshrl.u32 %v385, 7
  %v387 = vsub.s32 1, %v386
  %v388 = vrot.slane %v379, %v387
  %391 = vmatprep.subr.mxu0 %v252
  %392 = vmatpush1.msra.mxu0 %v251
  %393 = vmatprep.subr.mxu0 %v254
  %394 = vmatpush1.msra.mxu0 %v253
  %395 = vmatprep.subr.mxu0 %v256
  %396 = vmatpush1.msra.mxu0 %v255
  %397 = vmatprep.subr.mxu0 %v258
  %398 = vmatpush1.msra.mxu0 %v257
  %399 = vmatprep.subr.mxu0 %v260
  %400 = vmatpush1.msra.mxu0 %v259
  %401 = vmatprep.subr.mxu0 %v262
  %402 = vmatpush1.msra.mxu0 %v261
  %403 = vmatprep.subr.mxu0 %v264
  %404 = vmatpush1.msra.mxu0 %v263
  %405 = vmatprep.subr.mxu0 %v266
  %406 = vmatpush1.msra.mxu0 %v265
  %407 = vmatprep.subr.mxu0 %v268
  %408 = vmatpush1.msra.mxu0 %v267
  %409 = vmatprep.subr.mxu0 %v270
  %410 = vmatpush1.msra.mxu0 %v269
  %411 = vmatprep.subr.mxu0 %v272
  %412 = vmatpush1.msra.mxu0 %v271
  %413 = vmatprep.subr.mxu0 %v274
  %414 = vmatpush1.msra.mxu0 %v273
  %415 = vmatprep.subr.mxu0 %v276
  %416 = vmatpush1.msra.mxu0 %v275
  %417 = vmatprep.subr.mxu0 %v278
  %418 = vmatpush1.msra.mxu0 %v277
  %419 = vmatprep.subr.mxu0 %v280
  %420 = vmatpush1.msra.mxu0 %v279
  %421 = vmatprep.subr.mxu0 %v282
  %422 = vmatpush1.msra.mxu0 %v281
  %423 = vmatprep.subr.mxu0 %v284
  %424 = vmatpush1.msra.mxu0 %v283
  %425 = vmatprep.subr.mxu0 %v286
  %426 = vmatpush1.msra.mxu0 %v285
  %427 = vmatprep.subr.mxu0 %v288
  %428 = vmatpush1.msra.mxu0 %v287
  %429 = vmatprep.subr.mxu0 %v290
  %430 = vmatpush1.msra.mxu0 %v289
  %431 = vmatprep.subr.mxu0 %v292
  %432 = vmatpush1.msra.mxu0 %v291
  %433 = vmatprep.subr.mxu0 %v294
  %434 = vmatpush1.msra.mxu0 %v293
  %435 = vmatprep.subr.mxu0 %v296
  %436 = vmatpush1.msra.mxu0 %v295
  %437 = vmatprep.subr.mxu0 %v298
  %438 = vmatpush1.msra.mxu0 %v297
  %439 = vmatprep.subr.mxu0 %v300
  %440 = vmatpush1.msra.mxu0 %v299
  %441 = vmatprep.subr.mxu0 %v302
  %442 = vmatpush1.msra.mxu0 %v301
  %443 = vmatprep.subr.mxu0 %v304
  %444 = vmatpush1.msra.mxu0 %v303
  %445 = vmatprep.subr.mxu0 %v306
  %446 = vmatpush1.msra.mxu0 %v305
  %447 = vmatprep.subr.mxu0 %v308
  %448 = vmatpush1.msra.mxu0 %v307
  %449 = vmatprep.subr.mxu0 %v310
  %450 = vmatpush1.msra.mxu0 %v309
  %451 = vmatprep.subr.mxu0 %v312
  %452 = vmatpush1.msra.mxu0 %v311
  %453 = vmatprep.subr.mxu0 %v314
  %454 = vmatpush1.msra.mxu0 %v313
  %455 = vmatprep.mubr.f32.mxu0 %v244
  %456 = vmatmul.mubr.f32.gmra.mrb[0].mxu0 %v243
  %v457 = vpop.f32.mrb[0].mxu0
  %v458 = vadd.f32 %v384, %v457
  %v459 = vpop.f32.mrb[0].mxu0
  %v460 = vadd.f32 %v388, %v459
  %461 = vmatprep.mubr.f32.mxu0 %v248
  %462 = vmatmul.mubr.f32.gmra.mrb[0].mxu0 %v247
  %v463 = vpop.f32.mrb[0].mxu0
  %v464 = vadd.f32 %v384, %v463
  %v465 = vpop.f32.mrb[0].mxu0
  %v466 = vadd.f32 %v388, %v465
  %467 = vdwg.mxu0
  %468 = vmatprep.subr.mxu0 %v316
  %469 = vmatpush1.msra.mxu0 %v315
  %470 = vmatprep.subr.mxu0 %v318
  %471 = vmatpush1.msra.mxu0 %v317
  %472 = vmatprep.subr.mxu0 %v320
  %473 = vmatpush1.msra.mxu0 %v319
  %474 = vmatprep.subr.mxu0 %v322
  %475 = vmatpush1.msra.mxu0 %v321
  %476 = vmatprep.subr.mxu0 %v324
  %477 = vmatpush1.msra.mxu0 %v323
  %478 = vmatprep.subr.mxu0 %v326
  %479 = vmatpush1.msra.mxu0 %v325
  %480 = vmatprep.subr.mxu0 %v328
  %481 = vmatpush1.msra.mxu0 %v327
  %482 = vmatprep.subr.mxu0 %v330
  %483 = vmatpush1.msra.mxu0 %v329
  %484 = vmatprep.subr.mxu0 %v332
  %485 = vmatpush1.msra.mxu0 %v331
  %486 = vmatprep.subr.mxu0 %v334
  %487 = vmatpush1.msra.mxu0 %v333
  %488 = vmatprep.subr.mxu0 %v336
  %489 = vmatpush1.msra.mxu0 %v335
  %490 = vmatprep.subr.mxu0 %v338
  %491 = vmatpush1.msra.mxu0 %v337
  %492 = vmatprep.subr.mxu0 %v340
  %493 = vmatpush1.msra.mxu0 %v339
  %494 = vmatprep.subr.mxu0 %v342
  %495 = vmatpush1.msra.mxu0 %v341
  %496 = vmatprep.subr.mxu0 %v344
  %497 = vmatpush1.msra.mxu0 %v343
  %498 = vmatprep.subr.mxu0 %v346
  %499 = vmatpush1.msra.mxu0 %v345
  %500 = vmatprep.subr.mxu0 %v348
  %501 = vmatpush1.msra.mxu0 %v347
  %502 = vmatprep.subr.mxu0 %v350
  %503 = vmatpush1.msra.mxu0 %v349
  %504 = vmatprep.subr.mxu0 %v352
  %505 = vmatpush1.msra.mxu0 %v351
  %506 = vmatprep.subr.mxu0 %v354
  %507 = vmatpush1.msra.mxu0 %v353
  %508 = vmatprep.subr.mxu0 %v356
  %509 = vmatpush1.msra.mxu0 %v355
  %510 = vmatprep.subr.mxu0 %v358
  %511 = vmatpush1.msra.mxu0 %v357
  %512 = vmatprep.subr.mxu0 %v360
  %513 = vmatpush1.msra.mxu0 %v359
  %514 = vmatprep.subr.mxu0 %v362
  %515 = vmatpush1.msra.mxu0 %v361
  %516 = vmatprep.subr.mxu0 %v364
  %517 = vmatpush1.msra.mxu0 %v363
  %518 = vmatprep.subr.mxu0 %v366
  %519 = vmatpush1.msra.mxu0 %v365
  %520 = vmatprep.subr.mxu0 %v368
  %521 = vmatpush1.msra.mxu0 %v367
  %522 = vmatprep.subr.mxu0 %v370
  %523 = vmatpush1.msra.mxu0 %v369
  %524 = vmatprep.subr.mxu0 %v372
  %525 = vmatpush1.msra.mxu0 %v371
  %526 = vmatprep.subr.mxu0 %v374
  %527 = vmatpush1.msra.mxu0 %v373
  %528 = vmatprep.subr.mxu0 %v376
  %529 = vmatpush1.msra.mxu0 %v375
  %530 = vmatprep.subr.mxu0 %v378
  %531 = vmatpush1.msra.mxu0 %v377
  %532 = vmatprep.mubr.f32.mxu0 %v246
  %533 = vmatmul.mubr.f32.gmra.mrb[0].mxu0 %v245
  %v534 = vpop.f32.mrb[0].mxu0
  %v535 = vadd.f32 %v458, %v534
  %v536 = vpop.f32.mrb[0].mxu0
  %v537 = vadd.f32 %v460, %v536
  %538 = vmatprep.mubr.f32.mxu0 %v250
  %539 = vmatmul.mubr.f32.gmra.mrb[0].mxu0 %v249
  %v540 = vpop.f32.mrb[0].mxu0
  %v541 = vadd.f32 %v464, %v540
  %v542 = vpop.f32.mrb[0].mxu0
  %v543 = vadd.f32 %v466, %v542
  %544 = vdwg.mxu0
  %v545 = vmax.f32 %v535, 0.0
  %v546 = vmax.f32 %v537, 0.0
  %v547 = vmax.f32 %v541, 0.0
  %v548 = vmax.f32 %v543, 0.0
  %v549 = vld [vmem:[%s5] sm:$0xff]
  %v550 = vld [vmem:[%s5 + $0x8] sm:$0xff]
  %v551 = vld [vmem:[%s5 + $0x10] sm:$0xff]
  %v552 = vld [vmem:[%s5 + $0x18] sm:$0xff]
  %v553 = vld [vmem:[%s5 + $0x20] sm:$0xff]
  %v554 = vld [vmem:[%s5 + $0x28] sm:$0xff]
  %v555 = vld [vmem:[%s5 + $0x30] sm:$0xff]
  %v556 = vld [vmem:[%s5 + $0x38] sm:$0xff]
  %v557 = vld [vmem:[%s5 + $0x40] sm:$0xff]
  %v558 = vld [vmem:[%s5 + $0x48] sm:$0xff]
  %v559 = vld [vmem:[%s5 + $0x50] sm:$0xff]
  %v560 = vld [vmem:[%s5 + $0x58] sm:$0xff]
  %v561 = vld [vmem:[%s5 + $0x60] sm:$0xff]
  %v562 = vld [vmem:[%s5 + $0x68] sm:$0xff]
  %v563 = vld [vmem:[%s5 + $0x70] sm:$0xff]
  %v564 = vld [vmem:[%s5 + $0x78] sm:$0xff]
  %v565 = vld [vmem:[%s5 + $0x80] sm:$0xff]
  %v566 = vld [vmem:[%s5 + $0x88] sm:$0xff]
  %v567 = vld [vmem:[%s5 + $0x90] sm:$0xff]
  %v568 = vld [vmem:[%s5 + $0x98] sm:$0xff]
  %v569 = vld [vmem:[%s5 + $0xa0] sm:$0xff]
  %v570 = vld [vmem:[%s5 + $0xa8] sm:$0xff]
  %v571 = vld [vmem:[%s5 + $0xb0] sm:$0xff]
  %v572 = vld [vmem:[%s5 + $0xb8] sm:$0xff]
  %v573 = vld [vmem:[%s5 + $0xc0] sm:$0xff]
  %v574 = vld [vmem:[%s5 + $0xc8] sm:$0xff]
  %v575 = vld [vmem:[%s5 + $0xd0] sm:$0xff]
  %v576 = vld [vmem:[%s5 + $0xd8] sm:$0xff]
  %v577 = vld [vmem:[%s5 + $0xe0] sm:$0xff]
  %v578 = vld [vmem:[%s5 + $0xe8] sm:$0xff]
  %v579 = vld [vmem:[%s5 + $0xf0] sm:$0xff]
  %v580 = vld [vmem:[%s5 + $0xf8] sm:$0xff]
  %v581 = vld [vmem:[%s6] sm:$0x1]
  %v583 = vlaneseq
  %v584 = vshrl.u32 %v583, 7
  %v585 = vsub.s32 0, %v584
  %v586 = vrot.slane %v581, %v585
  %588 = vmatprep.subr.mxu0 0.0
  %589 = vmatpush1.msra.mxu0 %v549
  %590 = vmatprep.subr.mxu0 0.0
  %591 = vmatpush1.msra.mxu0 %v550
  %592 = vmatprep.subr.mxu0 0.0
  %593 = vmatpush1.msra.mxu0 %v551
  %594 = vmatprep.subr.mxu0 0.0
  %595 = vmatpush1.msra.mxu0 %v552
  %596 = vmatprep.subr.mxu0 0.0
  %597 = vmatpush1.msra.mxu0 %v553
  %598 = vmatprep.subr.mxu0 0.0
  %599 = vmatpush1.msra.mxu0 %v554
  %600 = vmatprep.subr.mxu0 0.0
  %601 = vmatpush1.msra.mxu0 %v555
  %602 = vmatprep.subr.mxu0 0.0
  %603 = vmatpush1.msra.mxu0 %v556
  %604 = vmatprep.subr.mxu0 0.0
  %605 = vmatpush1.msra.mxu0 %v557
  %606 = vmatprep.subr.mxu0 0.0
  %607 = vmatpush1.msra.mxu0 %v558
  %608 = vmatprep.subr.mxu0 0.0
  %609 = vmatpush1.msra.mxu0 %v559
  %610 = vmatprep.subr.mxu0 0.0
  %611 = vmatpush1.msra.mxu0 %v560
  %612 = vmatprep.subr.mxu0 0.0
  %613 = vmatpush1.msra.mxu0 %v561
  %614 = vmatprep.subr.mxu0 0.0
  %615 = vmatpush1.msra.mxu0 %v562
  %616 = vmatprep.subr.mxu0 0.0
  %617 = vmatpush1.msra.mxu0 %v563
  %618 = vmatprep.subr.mxu0 0.0
  %619 = vmatpush1.msra.mxu0 %v564
  %620 = vmatprep.subr.mxu0 0.0
  %621 = vmatpush1.msra.mxu0 %v565
  %622 = vmatprep.subr.mxu0 0.0
  %623 = vmatpush1.msra.mxu0 %v566
  %624 = vmatprep.subr.mxu0 0.0
  %625 = vmatpush1.msra.mxu0 %v567
  %626 = vmatprep.subr.mxu0 0.0
  %627 = vmatpush1.msra.mxu0 %v568
  %628 = vmatprep.subr.mxu0 0.0
  %629 = vmatpush1.msra.mxu0 %v569
  %630 = vmatprep.subr.mxu0 0.0
  %631 = vmatpush1.msra.mxu0 %v570
  %632 = vmatprep.subr.mxu0 0.0
  %633 = vmatpush1.msra.mxu0 %v571
  %634 = vmatprep.subr.mxu0 0.0
  %635 = vmatpush1.msra.mxu0 %v572
  %636 = vmatprep.subr.mxu0 0.0
  %637 = vmatpush1.msra.mxu0 %v573
  %638 = vmatprep.subr.mxu0 0.0
  %639 = vmatpush1.msra.mxu0 %v574
  %640 = vmatprep.subr.mxu0 0.0
  %641 = vmatpush1.msra.mxu0 %v575
  %642 = vmatprep.subr.mxu0 0.0
  %643 = vmatpush1.msra.mxu0 %v576
  %644 = vmatprep.subr.mxu0 0.0
  %645 = vmatpush1.msra.mxu0 %v577
  %646 = vmatprep.subr.mxu0 0.0
  %647 = vmatpush1.msra.mxu0 %v578
  %648 = vmatprep.subr.mxu0 0.0
  %649 = vmatpush1.msra.mxu0 %v579
  %650 = vmatprep.subr.mxu0 0.0
  %651 = vmatpush1.msra.mxu0 %v580
  %652 = vmatprep.mubr.f32.mxu0 %v546
  %653 = vmatmul.mubr.f32.gmra.mrb[0].mxu0 %v545
  %v654 = vpop.f32.mrb[0].mxu0
  %v655 = vadd.f32 %v586, %v654
  %v656 = vpop.f32.mrb[0].mxu0
  %657 = vmatprep.mubr.f32.mxu0 %v548
  %658 = vmatmul.mubr.f32.gmra.mrb[0].mxu0 %v547
  %v659 = vpop.f32.mrb[0].mxu0
  %v660 = vadd.f32 %v586, %v659
  %v661 = vpop.f32.mrb[0].mxu0
  %662 = vdwg.mxu0
  %663 = vst [vmem:[%s7] sm:$0xff] %v655
  %664 = vst [vmem:[%s7 + $0x8] sm:$0xff] %v660
  // Predicated region
  $region30: #{ner_forward.5} parent=0 // pred_check
    _
  $region31: #{ner_forward.5} parent=0 // pred_check_branch
    %666 = sbr.rel (0) target = $region33
  $region32: #{ner_forward.5} parent=0 // pred_region
    _
  $region33: #{ner_forward.5} parent=0 // pred_fallthru
    _
  // Predicated region
  $region34: #{ner_forward.5} parent=0 // pred_check
    _
  $region35: #{ner_forward.5} parent=0 // pred_check_branch
    %668 = sbr.rel (0) target = $region37
  $region36: #{ner_forward.5} parent=0 // pred_region
    _
  $region37: #{ner_forward.5} parent=0 // pred_fallthru
    _

</llo_original>
